<compile_context>
chip_gen: v5e
topology: v5e:2x2
jax: 0.10.0
libtpu: 0.0.40
codegen_flags: <defaults>
</compile_context>

<pallas_src>
import numpy as np
import jax
import jax.numpy as jnp
from jax import lax
from jax.experimental import pallas as pl
from jax.experimental.pallas import tpu as pltpu

F32 = jnp.float32
BN_EPS = 1e-5
D_MODEL = 64
N_HEADS = 4
HEAD_DIM = D_MODEL // N_HEADS
N_PAIRS = 9                      # GNN_layers = ['self', 'cross'] * 9
SINKHORN_ITERS = 100
SINKHORN_UNROLL = 5
IOU_THRESHOLD = 0.01
MATCH_THRESHOLD = 0.01
IOU_WEIGHT = 1.0
NEG = -1e9

# ---- constant-weight slab layout (rows, width 64) ----
O_EW1, O_EW2, O_KW1, O_KW2, O_KW3, O_PW, O_B = 0, 32, 96, 128, 192, 256, 320
CW_ROWS = 328
# ---- per-pair weight slab layouts ----
S_QKV, S_W2, S_BQ = 0, 192, 320
C_QKV, C_W2, C_BQ = 328, 520, 648
W64_ROWS = 656
S_H1, S_BM = 0, 128
C_H1, C_BM = 136, 264
W128_ROWS = 272


# ----------------------------------------------------------------------------
# Fused matching kernel: encoder + kenc (pair 0), one stacked self+cross GNN
# pair per grid step, final_proj + scores + Sinkhorn (last pair).
# ----------------------------------------------------------------------------
def matching_kernel(inp_ref, pref_ref, cw_ref, w64_ref, w128_ref,
                    feat_ref, z_ref, d_ref):
    R = inp_ref.shape[0]                  # n + m + 1  (pad row at the end)
    n = feat_ref.shape[0]
    m = z_ref.shape[1] - 1
    pair = pl.program_id(0)
    dn_abT = (((1,), (1,)), ((), ()))     # A @ B.T (contract last dims)

    # ---------------- prologue: encoder (BN folded) + kenc (BN folded) -------
    @pl.when(pair == 0)
    def _prologue():
        inp = inp_ref[...]                                   # (R, 32)
        cbias = cw_ref[O_B:O_B + 8, :]                       # (8, 64)
        h = jnp.maximum(
            jnp.dot(inp, cw_ref[O_EW1:O_EW1 + 32, :],
                    preferred_element_type=F32) + cbias[0:1, :], 0.0)
        y = jnp.dot(h, cw_ref[O_EW2:O_EW2 + 64, :],
                    preferred_element_type=F32) + cbias[1:2, :]
        ss = jnp.sum(y * y, axis=1, keepdims=True)
        feat = y * lax.rsqrt(jnp.maximum(ss, 1e-24))         # == y / max(||y||, 1e-12)
        feat_ref[...] = feat[0:n, :]

        a1 = jnp.maximum(
            jnp.dot(inp, cw_ref[O_KW1:O_KW1 + 32, :],
                    preferred_element_type=F32) + cbias[2:3, :], 0.0)
        a2 = jnp.maximum(
            jnp.dot(a1, cw_ref[O_KW2:O_KW2 + 64, :],
                    preferred_element_type=F32) + cbias[3:4, :], 0.0)
        kout = jnp.dot(a2, cw_ref[O_KW3:O_KW3 + 64, :],
                       preferred_element_type=F32) + cbias[4:5, :]

        row = lax.broadcasted_iota(jnp.int32, (R, 1), 0)
        base = jnp.where(row < n, feat, pref_ref[...])       # d0 rows / d1 rows
        d_ref[...] = jnp.where(row < n + m, base + kout, 0.0)

    # ---------------- stacked self / cross attention masks -------------------
    rr = lax.broadcasted_iota(jnp.int32, (R, R), 0)
    cc = lax.broadcasted_iota(jnp.int32, (R, R), 1)
    q_b1 = rr >= n
    k_b1 = cc >= n
    padded = (rr >= n + m) | (cc >= n + m)
    self_bias = jnp.where((q_b1 == k_b1) & jnp.logical_not(padded),
                          jnp.float32(0.0), jnp.float32(NEG))
    cross_bias = jnp.where((q_b1 != k_b1) & jnp.logical_not(padded),
                           jnp.float32(0.0), jnp.float32(NEG))
    valid_rows = lax.broadcasted_iota(jnp.int32, (R, 1), 0) < (n + m)

    inv_sqrt_hd = 1.0 / np.sqrt(float(HEAD_DIM))

    def attn_delta(x, mask_bias, o_qkv, o_w2, o_bq, o_h1, o_bm):
        bqkv = w64_ref[0, o_bq:o_bq + 8, :]
        bmlp = w128_ref[0, o_bm:o_bm + 8, :]
        q = jnp.dot(x, w64_ref[0, o_qkv:o_qkv + 64, :],
                    preferred_element_type=F32) + bqkv[0:1, :]
        k = jnp.dot(x, w64_ref[0, o_qkv + 64:o_qkv + 128, :],
                    preferred_element_type=F32) + bqkv[1:2, :]
        v = jnp.dot(x, w64_ref[0, o_qkv + 128:o_qkv + 192, :],
                    preferred_element_type=F32) + bqkv[2:3, :]
        # MLP first-layer pre-activation accumulator (merge conv + BN folded).
        h1 = jnp.dot(x, w128_ref[0, o_h1:o_h1 + 64, :],
                     preferred_element_type=F32) + bmlp[0:1, :]
        a_m = w128_ref[0, o_h1 + 64:o_h1 + 128, :]           # (64, 128)
        for hh in range(N_HEADS):
            sl = slice(hh * HEAD_DIM, (hh + 1) * HEAD_DIM)
            logits = lax.dot_general(q[:, sl], k[:, sl], dn_abT,
                                     preferred_element_type=F32) * inv_sqrt_hd \
                + mask_bias
            mx = jnp.max(logits, axis=-1, keepdims=True)
            p = jnp.exp(logits - mx)
            ssum = jnp.sum(p, axis=-1, keepdims=True)
            oh = jnp.dot(p, v[:, sl], preferred_element_type=F32) \
                * pl.reciprocal(ssum, approx=True)           # (R, 16)
            h1 = h1 + jnp.dot(oh, a_m[sl, :], preferred_element_type=F32)
        h1 = jnp.maximum(h1, 0.0)
        return jnp.dot(h1, w64_ref[0, o_w2:o_w2 + 128, :],
                       preferred_element_type=F32) + bmlp[1:2, 0:D_MODEL]

    # ---------------- one self + cross GNN pair (stacked d0|d1) --------------
    d = d_ref[...]
    d = d + attn_delta(d, self_bias, S_QKV, S_W2, S_BQ, S_H1, S_BM)
    d = d + attn_delta(d, cross_bias, C_QKV, C_W2, C_BQ, C_H1, C_BM)
    d = jnp.where(valid_rows, d, 0.0)                        # keep pad row at 0
    d_ref[...] = d

    # ---------------- epilogue: final_proj + scores + Sinkhorn ---------------
    @pl.when(pair == pl.num_programs(0) - 1)
    def _epilogue():
        cbias = cw_ref[O_B:O_B + 8, :]
        mm = jnp.dot(d, cw_ref[O_PW:O_PW + 64, :],
                     preferred_element_type=F32) + cbias[5:6, :]      # (R, 64)
        # Overlapping slices: rows 0..n (bin row = junk) and rows n..n+m
        # (bin col = pad-row junk); junk is overwritten by the iota where.
        scores_p = lax.dot_general(mm[0:n + 1, :], mm[n:R, :], dn_abT,
                                   preferred_element_type=F32) \
            * (1.0 / np.sqrt(float(D_MODEL)))                         # (n+1, m+1)
        ri = lax.broadcasted_iota(jnp.int32, (n + 1, m + 1), 0)
        ci = lax.broadcasted_iota(jnp.int32, (n + 1, m + 1), 1)
        alpha = cbias[6:7, 0:1]                                       # (1, 1)
        z0 = jnp.where((ri < n) & (ci < m), scores_p, alpha)

        norm = float(-np.log(n + m))
        log_mu = jnp.where(ri[:, 0:1] < n, jnp.float32(norm),
                           jnp.float32(np.log(m) + norm))
        log_nu = jnp.where(ci[0:1, :] < m, jnp.float32(norm),
                           jnp.float32(np.log(n) + norm))

        def lse_rows(a):
            mx = jnp.max(a, axis=1, keepdims=True)
            return mx + jnp.log(jnp.sum(jnp.exp(a - mx), axis=1, keepdims=True))

        def lse_cols(a):
            mx = jnp.max(a, axis=0, keepdims=True)
            return mx + jnp.log(jnp.sum(jnp.exp(a - mx), axis=0, keepdims=True))

        def body(_, uv):
            u, v = uv
            for _k in range(SINKHORN_UNROLL):                # manual unroll
                u = log_mu - lse_rows(z0 + v)
                v = log_nu - lse_cols(z0 + u)
            return (u, v)

        u, v = lax.fori_loop(0, SINKHORN_ITERS // SINKHORN_UNROLL, body,
                             (jnp.zeros((n + 1, 1), F32),
                              jnp.zeros((1, m + 1), F32)))
        z_ref[...] = z0 + u + v - norm                       # single store


def matching_apply(mp, x_raw, kin0, kin1, pre_feat):
    n = x_raw.shape[0]
    m = pre_feat.shape[0]
    R = n + m + 1
    n_pairs = mp['slab64'].shape[0]

    # Host-side data slabs: (R, 32) = [x_raw | kin | 0], (R, 64) = padded pre_feat.
    inp = jnp.zeros((R, 32), F32)
    inp = inp.at[0:n, 0:24].set(x_raw)
    inp = inp.at[0:n, 24:29].set(kin0)
    inp = inp.at[n:n + m, 24:29].set(kin1)
    pre_p = jnp.zeros((R, D_MODEL), F32).at[n:n + m, :].set(pre_feat)

    feat, z = pl.pallas_call(
        matching_kernel,
        grid=(n_pairs,),
        in_specs=[
            pl.BlockSpec((R, 32), lambda i: (0, 0)),
            pl.BlockSpec((R, D_MODEL), lambda i: (0, 0)),
            pl.BlockSpec((CW_ROWS, D_MODEL), lambda i: (0, 0)),
            pl.BlockSpec((1, W64_ROWS, 64), lambda i: (i, 0, 0)),
            pl.BlockSpec((1, W128_ROWS, 128), lambda i: (i, 0, 0)),
        ],
        out_specs=(pl.BlockSpec((n, D_MODEL), lambda i: (0, 0)),
                   pl.BlockSpec((n + 1, m + 1), lambda i: (0, 0))),
        out_shape=(jax.ShapeDtypeStruct((n, D_MODEL), F32),
                   jax.ShapeDtypeStruct((n + 1, m + 1), F32)),
        scratch_shapes=[pltpu.VMEM((R, D_MODEL), F32)],
        compiler_params=pltpu.CompilerParams(dimension_semantics=("arbitrary",)),
    )(inp, pre_p, mp['cw'], mp['slab64'], mp['slab128'])
    return feat, z


# ----------------------------------------------------------------------------
# Fusion kernel: GRU cell (per-gate packed weights) + plane_updation + blend.
# ----------------------------------------------------------------------------
def fuse_kernel(h_ref, x_ref, cl_ref, pp_ref,
                wi_ref, wh_ref, b_ref, wu_ref, bu_ref,
                hout_ref, pout_ref):
    h = h_ref[...]
    x = x_ref[...]
    b = b_ref[...]                                            # (8, 64)

    def gate(idx):
        gi = jnp.dot(x, wi_ref[idx], preferred_element_type=F32) + b[idx:idx + 1, :]
        gh = jnp.dot(h, wh_ref[idx], preferred_element_type=F32) + b[idx + 3:idx + 4, :]
        return gi, gh

    gi_r, gh_r = gate(0)
    gi_z, gh_z = gate(1)
    gi_n, gh_n = gate(2)
    r = jax.nn.sigmoid(gi_r + gh_r)
    z = jax.nn.sigmoid(gi_z + gh_z)
    ngate = jnp.tanh(gi_n + r * gh_n)
    h_new = (1.0 - z) * ngate + z * h

    w = jax.nn.sigmoid(jnp.dot(h_new, wu_ref[...], preferred_element_type=F32)
                       + bu_ref[...])                         # (N, 1)
    pre_planes = pp_ref[...]
    clusters = cl_ref[...]
    valid = jnp.any(pre_planes != 0.0, axis=1, keepdims=True)  # per-row gate
    pout_ref[...] = jnp.where(valid, (clusters + w * pre_planes) / (1.0 + w), clusters)
    hout_ref[...] = h_new


def fuse_apply(fp, h, x, clusters, pre_planes):
    n = h.shape[0]
    args = (h, x, clusters, pre_planes,
            fp['w_i'], fp['w_h'], fp['b'], fp['w_u'], fp['b_u'])

    def spec(a):
        nd = a.ndim
        return pl.BlockSpec(a.shape, lambda i, _n=nd: (0,) * _n)

    return pl.pallas_call(
        fuse_kernel,
        grid=(1,),
        in_specs=[spec(a) for a in args],
        out_specs=(pl.BlockSpec((n, D_MODEL), lambda i: (0, 0)),
                   pl.BlockSpec((n, 4), lambda i: (0, 0))),
        out_shape=(jax.ShapeDtypeStruct((n, D_MODEL), F32),
                   jax.ShapeDtypeStruct((n, 4), F32)),
        compiler_params=pltpu.CompilerParams(dimension_semantics=("arbitrary",)),
    )(*args)


# ----------------------------------------------------------------------------
# Full forward (inference branch of TrackFuse.matching + TrackFuse.fusion)
# ----------------------------------------------------------------------------
def track_fuse_forward(packed, plane_clusters, plane_feat_raw, plane_occ,
                       iou, angle_simi, pre_id, feature_map, plane_map,
                       score_map, max_id):
    n = plane_clusters.shape[0]

    # ---- fragment_planes (gathers from persistent maps; glue) ----
    pre_features = feature_map[pre_id]           # (M, 64)
    pre_planes = plane_map[pre_id]               # (M, 4)
    pre_scores = score_map[pre_id]               # (M,)

    # ---- matching (single fused Pallas kernel) ----
    kin0 = jnp.concatenate([plane_clusters, plane_occ[:, None]], axis=1)   # (N, 5)
    kin1 = jnp.concatenate([pre_planes, pre_scores[:, None]], axis=1)      # (M, 5)
    feat, z = matching_apply(packed['matching'], plane_feat_raw, kin0, kin1, pre_features)

    # ---- inference match decision (glue) ----
    combine = iou + IOU_WEIGHT * jnp.exp(z[:-1, :-1])
    indices0 = jnp.argmax(combine, axis=1)
    r = jnp.arange(n)
    valid = (iou[r, indices0] >= IOU_THRESHOLD) \
        & (angle_simi[r, indices0] >= 0.866) \
        & (jnp.exp(z[r, indices0]) >= MATCH_THRESHOLD)
    ids = jnp.where(valid, pre_id[indices0], 0).astype(jnp.int32)
    new_mask = ids == 0
    ids = jnp.where(new_mask, max_id + jnp.cumsum(new_mask.astype(jnp.int32)), ids)
    score_map = score_map.at[ids].set(plane_occ)

    # ---- fusion ----
    pre_feat_g = feature_map[ids]
    pre_planes_g = plane_map[ids]
    x = jnp.concatenate([feat, plane_clusters], axis=1)             # (N, 68)
    h_new, upd = fuse_apply(packed['fusion'], pre_feat_g, x, plane_clusters, pre_planes_g)
    # Torch: GRU output replaces ALL features iff any plane is valid (global gate);
    # plane blending is per-row (already handled inside the kernel).
    any_valid = jnp.any(jnp.any(pre_planes_g != 0.0, axis=1))
    feat_final = jnp.where(any_valid, h_new, feat)
    updated_planes = jnp.where(any_valid, upd, plane_clusters)

    feature_map = feature_map.at[ids].set(feat_final)
    plane_map = plane_map.at[ids].set(updated_planes)
    return ids, z, updated_planes, feat_final, feature_map, plane_map, score_map


# ----------------------------------------------------------------------------
# Deterministic parameter initialization (shapes follow the module's __init__)
# ----------------------------------------------------------------------------
def _dense_init(key, fan_in, fan_out, zero_bias=False, scale=0.5):
    kw, kb = jax.random.split(key)
    w = scale * jax.random.normal(kw, (fan_in, fan_out), F32) / np.sqrt(float(fan_in))
    b = jnp.zeros((1, fan_out), F32) if zero_bias else 0.01 * jax.random.normal(kb, (1, fan_out), F32)
    return w, b


def _bn_init(c):
    return (jnp.ones((1, c), F32), jnp.zeros((1, c), F32),
            jnp.zeros((1, c), F32), jnp.ones((1, c), F32))   # gamma, beta, mean, var


def init_params(key):
    keys = jax.random.split(key, 64)
    ki = iter(keys)
    p = {}

    w1, b1 = _dense_init(next(ki), 24, 32)
    g1, bt1, m1, v1 = _bn_init(32)
    w2, b2 = _dense_init(next(ki), 32, 64)
    p['encoder'] = dict(w1=w1, b1=b1, g1=g1, bt1=bt1, m1=m1, v1=v1, w2=w2, b2=b2)

    kw1, kb1 = _dense_init(next(ki), 5, 32)
    kg1, kbt1, km1, kv1 = _bn_init(32)
    kw2, kb2 = _dense_init(next(ki), 32, 64)
    kg2, kbt2, km2, kv2 = _bn_init(64)
    kw3, kb3 = _dense_init(next(ki), 64, 64, zero_bias=True)
    p['kenc'] = dict(w1=kw1, b1=kb1, g1=kg1, bt1=kbt1, m1=km1, v1=kv1,
                     w2=kw2, b2=kb2, g2=kg2, bt2=kbt2, m2=km2, v2=kv2,
                     w3=kw3, b3=kb3)

    def attn_layer(k):
        ks = jax.random.split(k, 6)
        wq, bq = _dense_init(ks[0], 64, 64)
        wk, bk = _dense_init(ks[1], 64, 64)
        wv, bv = _dense_init(ks[2], 64, 64)
        wm, bm = _dense_init(ks[3], 64, 64)
        w1_, b1_ = _dense_init(ks[4], 128, 128)
        g, bt, mu, var = _bn_init(128)
        w2_, b2_ = _dense_init(ks[5], 128, 64, zero_bias=True)
        return dict(wq=wq, bq=bq, wk=wk, bk=bk, wv=wv, bv=bv, wm=wm, bm=bm,
                    w1=w1_, b1=b1_, g=g, bt=bt, mu=mu, var=var, w2=w2_, b2=b2_)

    p['gnn_self'] = [attn_layer(next(ki)) for _ in range(N_PAIRS)]
    p['gnn_cross'] = [attn_layer(next(ki)) for _ in range(N_PAIRS)]

    wp, bp = _dense_init(next(ki), 64, 64)
    p['final_proj'] = dict(w=wp, b=bp)
    p['bin_score'] = jnp.float32(1.0)

    wih, bih = _dense_init(next(ki), 68, 3 * 64)
    whh, bhh = _dense_init(next(ki), 64, 3 * 64)
    p['gru'] = dict(w_ih=wih, b_ih=bih, w_hh=whh, b_hh=bhh)
    wu, bu = _dense_init(next(ki), 64, 1)
    p['plane_updation'] = dict(w=wu, b=bu)
    return p


# ----------------------------------------------------------------------------
# Host-side packing: fold eval-mode BN, fold merge Conv into the MLP first
# layer, permute head channels to contiguous blocks, and pack everything into
# a handful of slabs for BlockSpec-indexed DMA.
# ----------------------------------------------------------------------------
def pack_params(p):
    def fold(w, b, g, beta, mean, var):
        s = g / jnp.sqrt(var + BN_EPS)
        return w * s, (b - mean) * s + beta

    e = p['encoder']
    enc_w1, enc_b1 = fold(e['w1'], e['b1'], e['g1'], e['bt1'], e['m1'], e['v1'])
    enc_w2, enc_b2 = e['w2'], e['b2']
    k = p['kenc']
    k_w1, k_b1 = fold(k['w1'], k['b1'], k['g1'], k['bt1'], k['m1'], k['v1'])
    k_w2, k_b2 = fold(k['w2'], k['b2'], k['g2'], k['bt2'], k['m2'], k['v2'])
    k_w3, k_b3 = k['w3'], k['b3']
    p_w, p_b = p['final_proj']['w'], p['final_proj']['b']
    alpha = jnp.float32(p['bin_score'])

    def place(rows, cols, pieces):
        out = jnp.zeros((rows, cols), F32)
        for (r0, c0, a) in pieces:
            out = out.at[r0:r0 + a.shape[0], c0:c0 + a.shape[1]].set(a)
        return out

    # Single constant slab: zero-padded blocks so the kernel prologue never
    # needs to lane-slice its inputs.
    cw = place(CW_ROWS, D_MODEL, [
        (O_EW1, 0, enc_w1),            # (24, 32) -> rows 0:24
        (O_EW2, 0, enc_w2),            # (32, 64)
        (O_KW1 + 24, 0, k_w1),         # (5, 32)  -> rows 120:125 (kin columns)
        (O_KW2, 0, k_w2),              # (32, 64)
        (O_KW3, 0, k_w3),              # (64, 64)
        (O_PW, 0, p_w),                # (64, 64)
        (O_B + 0, 0, enc_b1),
        (O_B + 1, 0, enc_b2),
        (O_B + 2, 0, k_b1),
        (O_B + 3, 0, k_b2),
        (O_B + 4, 0, k_b3),
        (O_B + 5, 0, p_b),
        (O_B + 6, 0, jnp.full((1, D_MODEL), alpha, F32)),
    ])

    # SuperGlue views 64 channels as (dim=16, heads=4); permute so each head
    # occupies a contiguous block of 16 lanes in-kernel.
    perm = np.array([d * N_HEADS + h for h in range(N_HEADS) for d in range(HEAD_DIM)],
                    dtype=np.int32)

    def pack_attn(lw):
        s = lw['g'] / jnp.sqrt(lw['var'] + BN_EPS)            # (1, 128)
        wq, bq = lw['wq'][:, perm], lw['bq'][:, perm]
        wk, bk = lw['wk'][:, perm], lw['bk'][:, perm]
        wv, bv = lw['wv'][:, perm], lw['bv'][:, perm]
        wm_p = lw['wm'][perm, :]                              # head-major merge rows
        w1x, w1m = lw['w1'][:D_MODEL, :], lw['w1'][D_MODEL:, :]
        a_x = w1x * s                                         # x -> MLP pre-act
        a_m = jnp.dot(wm_p, w1m) * s                          # heads -> MLP pre-act
        a_b = (jnp.dot(lw['bm'], w1m) + lw['b1']) * s + lw['bt'] - lw['mu'] * s
        wqkv = jnp.concatenate([wq, wk, wv], axis=0)          # (192, 64)
        wh1 = jnp.concatenate([a_x, a_m], axis=0)             # (128, 128)
        bqkv = (jnp.zeros((8, D_MODEL), F32)
                .at[0].set(bq[0]).at[1].set(bk[0]).at[2].set(bv[0]))
        bmlp = (jnp.zeros((8, 2 * D_MODEL), F32)
                .at[0].set(a_b[0]).at[1, :D_MODEL].set(lw['b2'][0]))
        return dict(wqkv=wqkv, wh1=wh1, w2=lw['w2'], bqkv=bqkv, bmlp=bmlp)

    s_packs = [pack_attn(l) for l in p['gnn_self']]
    c_packs = [pack_attn(l) for l in p['gnn_cross']]
    slab64 = jnp.stack([jnp.concatenate(
        [sp['wqkv'], sp['w2'], sp['bqkv'], cp['wqkv'], cp['w2'], cp['bqkv']], axis=0)
        for sp, cp in zip(s_packs, c_packs)])                 # (9, 656, 64)
    slab128 = jnp.stack([jnp.concatenate(
        [sp['wh1'], sp['bmlp'], cp['wh1'], cp['bmlp']], axis=0)
        for sp, cp in zip(s_packs, c_packs)])                 # (9, 272, 128)

    mp = dict(cw=cw, slab64=slab64, slab128=slab128)

    # Fusion: per-gate GRU weights (r, z, n), biases stacked into one (8, 64).
    g = p['gru']
    w_i = jnp.stack([g['w_ih'][:, 0:64], g['w_ih'][:, 64:128], g['w_ih'][:, 128:192]])
    w_h = jnp.stack([g['w_hh'][:, 0:64], g['w_hh'][:, 64:128], g['w_hh'][:, 128:192]])
    gb = jnp.zeros((8, D_MODEL), F32)
    gb = (gb.at[0].set(g['b_ih'][0, 0:64]).at[1].set(g['b_ih'][0, 64:128])
            .at[2].set(g['b_ih'][0, 128:192])
            .at[3].set(g['b_hh'][0, 0:64]).at[4].set(g['b_hh'][0, 64:128])
            .at[5].set(g['b_hh'][0, 128:192]))
    fp = dict(w_i=w_i, w_h=w_h, b=gb,
              w_u=p['plane_updation']['w'], b_u=p['plane_updation']['b'])
    return dict(matching=mp, fusion=fp)


# ----------------------------------------------------------------------------
if __name__ == "__main__":
    N_CUR, N_PRE, MAXN = 8, 8, 64

    packed = pack_params(init_params(jax.random.PRNGKey(0)))
    dkeys = jax.random.split(jax.random.PRNGKey(0), 12)

    plane_feat_raw = jax.random.normal(dkeys[0], (N_CUR, 24), F32)
    plane_clusters = jax.random.normal(dkeys[1], (N_CUR, 4), F32)
    plane_occ = jax.nn.sigmoid(jax.random.normal(dkeys[2], (N_CUR,), F32))

    pre_features = jax.random.normal(dkeys[3], (N_PRE, D_MODEL), F32)
    pre_features = pre_features / jnp.linalg.norm(pre_features, axis=1, keepdims=True)
    pre_planes = jax.random.normal(dkeys[4], (N_PRE, 4), F32)
    pre_scores = jax.nn.sigmoid(jax.random.normal(dkeys[5], (N_PRE,), F32))
    pre_id = jnp.arange(1, N_PRE + 1, dtype=jnp.int32)

    iou = 0.5 * jax.nn.sigmoid(jax.random.normal(dkeys[6], (N_CUR, N_PRE), F32))
    angle_simi = jnp.clip(0.9 + 0.1 * jax.random.normal(dkeys[7], (N_CUR, N_PRE), F32), 0.0, 1.0)

    feature_map = jnp.zeros((MAXN, D_MODEL), F32).at[pre_id].set(pre_features)
    plane_map = jnp.zeros((MAXN, 4), F32).at[pre_id].set(pre_planes)
    score_map = jnp.zeros((MAXN,), F32).at[pre_id].set(pre_scores)
    max_id = jnp.int32(N_PRE)

    fwd = jax.jit(track_fuse_forward)
    out = fwd(packed, plane_clusters, plane_feat_raw, plane_occ,
              iou, angle_simi, pre_id, feature_map, plane_map, score_map, max_id)
    jax.block_until_ready(out)

    ids, z, updated_planes, feats, *_ = out
    assert ids.shape == (N_CUR,)
    assert z.shape == (N_CUR + 1, N_PRE + 1)
    assert updated_planes.shape == (N_CUR, 4)
    assert feats.shape == (N_CUR, D_MODEL)
    assert bool(jnp.all(jnp.isfinite(z))) and bool(jnp.all(jnp.isfinite(updated_planes)))
    print("KERNEL_OK")
</pallas_src>

<mosaic_0001>
module attributes {stable_mosaic.version = 11 : i64} {
  func.func @matching_kernel(%arg0: i32, %arg1: memref<17x32xf32, #tpu.memory_space<vmem>>, %arg2: memref<17x64xf32, #tpu.memory_space<vmem>>, %arg3: memref<328x64xf32, #tpu.memory_space<vmem>>, %arg4: memref<1x656x64xf32, #tpu.memory_space<vmem>>, %arg5: memref<1x272x128xf32, #tpu.memory_space<vmem>>, %arg6: memref<8x64xf32, #tpu.memory_space<vmem>>, %arg7: memref<9x9xf32, #tpu.memory_space<vmem>>, %arg8: memref<17x64xf32, #tpu.memory_space<vmem>>) attributes {dimension_semantics = [#tpu.dimension_semantics<arbitrary>], iteration_bounds = array<i64: 9>, scalar_prefetch = 0 : i64, scratch_operands = 1 : i64, tpu.core_type = #tpu.core_type<tc>, window_params = [{pipeline_mode = #tpu.pipeline_mode<synchronous>, transform_indices = @transform_0, window_bounds = array<i64: 17, 32>}, {pipeline_mode = #tpu.pipeline_mode<synchronous>, transform_indices = @transform_1, window_bounds = array<i64: 17, 64>}, {pipeline_mode = #tpu.pipeline_mode<synchronous>, transform_indices = @transform_2, window_bounds = array<i64: 328, 64>}, {transform_indices = @transform_3, window_bounds = array<i64: 1, 656, 64>}, {transform_indices = @transform_4, window_bounds = array<i64: 1, 272, 128>}, {pipeline_mode = #tpu.pipeline_mode<synchronous>, transform_indices = @transform_5, window_bounds = array<i64: 8, 64>}, {pipeline_mode = #tpu.pipeline_mode<synchronous>, transform_indices = @transform_6, window_bounds = array<i64: 9, 9>}]} {
    %c0_i32 = arith.constant 0 : i32
    %0 = arith.cmpi eq, %arg0, %c0_i32 : i32
    %1 = arith.extui %0 : i1 to i32
    %c0_i32_0 = arith.constant 0 : i32
    %2 = arith.cmpi ne, %1, %c0_i32_0 : i32
    scf.if %2 {
      %c0_112 = arith.constant 0 : index
      %c0_113 = arith.constant 0 : index
      %285 = vector.load %arg1[%c0_112, %c0_113] : memref<17x32xf32, #tpu.memory_space<vmem>>, vector<17x32xf32>
      %c320_114 = arith.constant 320 : index
      %c0_115 = arith.constant 0 : index
      %286 = vector.load %arg3[%c320_114, %c0_115] : memref<328x64xf32, #tpu.memory_space<vmem>>, vector<8x64xf32>
      %c0_116 = arith.constant 0 : index
      %c0_117 = arith.constant 0 : index
      %287 = vector.load %arg3[%c0_116, %c0_117] : memref<328x64xf32, #tpu.memory_space<vmem>>, vector<32x64xf32>
      %cst_118 = arith.constant dense<0.000000e+00> : vector<17x64xf32>
      %288 = tpu.matmul %285, %287, %cst_118 {dimension_numbers = #tpu.dot_dimension_numbers<[1], [0], [0], [1], [0, 0, 1, 1], [], []>} : vector<17x32xf32>, vector<32x64xf32>, vector<17x64xf32> -> vector<17x64xf32>
      %289 = vector.extract_strided_slice %286 {offsets = [0, 0], sizes = [1, 64], strides = [1, 1]} : vector<8x64xf32> to vector<1x64xf32>
      %290 = vector.broadcast %289 : vector<1x64xf32> to vector<17x64xf32>
      %291 = arith.addf %288, %290 : vector<17x64xf32>
      %cst_119 = arith.constant 0.000000e+00 : f32
      %292 = vector.broadcast %cst_119 : f32 to vector<17x64xf32>
      %293 = arith.maximumf %291, %292 : vector<17x64xf32>
      %c32 = arith.constant 32 : index
      %c0_120 = arith.constant 0 : index
      %294 = vector.load %arg3[%c32, %c0_120] : memref<328x64xf32, #tpu.memory_space<vmem>>, vector<64x64xf32>
      %cst_121 = arith.constant dense<0.000000e+00> : vector<17x64xf32>
      %295 = tpu.matmul %293, %294, %cst_121 {dimension_numbers = #tpu.dot_dimension_numbers<[1], [0], [0], [1], [0, 0, 1, 1], [], []>} : vector<17x64xf32>, vector<64x64xf32>, vector<17x64xf32> -> vector<17x64xf32>
      %296 = vector.extract_strided_slice %286 {offsets = [1, 0], sizes = [1, 64], strides = [1, 1]} : vector<8x64xf32> to vector<1x64xf32>
      %297 = vector.broadcast %296 : vector<1x64xf32> to vector<17x64xf32>
      %298 = arith.addf %295, %297 : vector<17x64xf32>
      %299 = arith.mulf %298, %298 : vector<17x64xf32>
      %cst_122 = arith.constant dense<0.000000e+00> : vector<17xf32>
      %300 = vector.multi_reduction <add>, %299, %cst_122 [1] : vector<17x64xf32> to vector<17xf32>
      %301 = vector.shape_cast %300 : vector<17xf32> to vector<17x1xf32>
      %cst_123 = arith.constant 1.000000e-24 : f32
      %302 = vector.broadcast %cst_123 : f32 to vector<17x1xf32>
      %303 = arith.maximumf %301, %302 : vector<17x1xf32>
      %304 = math.rsqrt %303 : vector<17x1xf32>
      %305 = vector.broadcast %304 : vector<17x1xf32> to vector<17x64xf32>
      %306 = arith.mulf %298, %305 : vector<17x64xf32>
      %307 = vector.extract_strided_slice %306 {offsets = [0, 0], sizes = [8, 64], strides = [1, 1]} : vector<17x64xf32> to vector<8x64xf32>
      %c0_124 = arith.constant 0 : index
      %c0_125 = arith.constant 0 : index
      %308 = vector.load %arg6[%c0_124, %c0_125] : memref<8x64xf32, #tpu.memory_space<vmem>>, vector<8x64xf32>
      tpu.vector_store %arg6[%c0_124, %c0_125], %307 {strides = array<i32>} : memref<8x64xf32, #tpu.memory_space<vmem>>, vector<8x64xf32>,
      %c96 = arith.constant 96 : index
      %c0_126 = arith.constant 0 : index
      %309 = vector.load %arg3[%c96, %c0_126] : memref<328x64xf32, #tpu.memory_space<vmem>>, vector<32x64xf32>
      %cst_127 = arith.constant dense<0.000000e+00> : vector<17x64xf32>
      %310 = tpu.matmul %285, %309, %cst_127 {dimension_numbers = #tpu.dot_dimension_numbers<[1], [0], [0], [1], [0, 0, 1, 1], [], []>} : vector<17x32xf32>, vector<32x64xf32>, vector<17x64xf32> -> vector<17x64xf32>
      %311 = vector.extract_strided_slice %286 {offsets = [2, 0], sizes = [1, 64], strides = [1, 1]} : vector<8x64xf32> to vector<1x64xf32>
      %312 = vector.broadcast %311 : vector<1x64xf32> to vector<17x64xf32>
      %313 = arith.addf %310, %312 : vector<17x64xf32>
      %cst_128 = arith.constant 0.000000e+00 : f32
      %314 = vector.broadcast %cst_128 : f32 to vector<17x64xf32>
      %315 = arith.maximumf %313, %314 : vector<17x64xf32>
      %c128_129 = arith.constant 128 : index
      %c0_130 = arith.constant 0 : index
      %316 = vector.load %arg3[%c128_129, %c0_130] : memref<328x64xf32, #tpu.memory_space<vmem>>, vector<64x64xf32>
      %cst_131 = arith.constant dense<0.000000e+00> : vector<17x64xf32>
      %317 = tpu.matmul %315, %316, %cst_131 {dimension_numbers = #tpu.dot_dimension_numbers<[1], [0], [0], [1], [0, 0, 1, 1], [], []>} : vector<17x64xf32>, vector<64x64xf32>, vector<17x64xf32> -> vector<17x64xf32>
      %318 = vector.extract_strided_slice %286 {offsets = [3, 0], sizes = [1, 64], strides = [1, 1]} : vector<8x64xf32> to vector<1x64xf32>
      %319 = vector.broadcast %318 : vector<1x64xf32> to vector<17x64xf32>
      %320 = arith.addf %317, %319 : vector<17x64xf32>
      %cst_132 = arith.constant 0.000000e+00 : f32
      %321 = vector.broadcast %cst_132 : f32 to vector<17x64xf32>
      %322 = arith.maximumf %320, %321 : vector<17x64xf32>
      %c192_133 = arith.constant 192 : index
      %c0_134 = arith.constant 0 : index
      %323 = vector.load %arg3[%c192_133, %c0_134] : memref<328x64xf32, #tpu.memory_space<vmem>>, vector<64x64xf32>
      %cst_135 = arith.constant dense<0.000000e+00> : vector<17x64xf32>
      %324 = tpu.matmul %322, %323, %cst_135 {dimension_numbers = #tpu.dot_dimension_numbers<[1], [0], [0], [1], [0, 0, 1, 1], [], []>} : vector<17x64xf32>, vector<64x64xf32>, vector<17x64xf32> -> vector<17x64xf32>
      %325 = vector.extract_strided_slice %286 {offsets = [4, 0], sizes = [1, 64], strides = [1, 1]} : vector<8x64xf32> to vector<1x64xf32>
      %326 = vector.broadcast %325 : vector<1x64xf32> to vector<17x64xf32>
      %327 = arith.addf %324, %326 : vector<17x64xf32>
      %328 = tpu.iota {dimensions = array<i32: 0>} : vector<17x1xi32>
      %c8_i32_136 = arith.constant 8 : i32
      %329 = vector.broadcast %c8_i32_136 : i32 to vector<17x1xi32>
      %330 = arith.cmpi slt, %328, %329 : vector<17x1xi32>
      %c0_137 = arith.constant 0 : index
      %c0_138 = arith.constant 0 : index
      %331 = vector.load %arg2[%c0_137, %c0_138] : memref<17x64xf32, #tpu.memory_space<vmem>>, vector<17x64xf32>
      %332 = vector.shape_cast %330 : vector<17x1xi1> to vector<17x1xi1>
      %333 = vector.broadcast %332 : vector<17x1xi1> to vector<17x64xi1>
      %334 = arith.select %333, %306, %331 : vector<17x64xi1>, vector<17x64xf32>
      %c16_i32_139 = arith.constant 16 : i32
      %335 = vector.broadcast %c16_i32_139 : i32 to vector<17x1xi32>
      %336 = arith.cmpi slt, %328, %335 : vector<17x1xi32>
      %337 = arith.addf %334, %327 : vector<17x64xf32>
      %cst_140 = arith.constant 0.000000e+00 : f32
      %338 = vector.shape_cast %336 : vector<17x1xi1> to vector<17x1xi1>
      %339 = vector.broadcast %338 : vector<17x1xi1> to vector<17x64xi1>
      %340 = vector.broadcast %cst_140 : f32 to vector<17x64xf32>
      %341 = arith.select %339, %337, %340 : vector<17x64xi1>, vector<17x64xf32>
      %c0_141 = arith.constant 0 : index
      %c0_142 = arith.constant 0 : index
      %342 = vector.load %arg8[%c0_141, %c0_142] : memref<17x64xf32, #tpu.memory_space<vmem>>, vector<17x64xf32>
      tpu.vector_store %arg8[%c0_141, %c0_142], %341 {strides = array<i32>} : memref<17x64xf32, #tpu.memory_space<vmem>>, vector<17x64xf32>,
    } else {
    }
    %3 = tpu.iota {dimensions = array<i32: 0>} : vector<17x17xi32>
    %4 = tpu.iota {dimensions = array<i32: 1>} : vector<17x17xi32>
    %c8_i32 = arith.constant 8 : i32
    %5 = vector.broadcast %c8_i32 : i32 to vector<17x17xi32>
    %6 = arith.cmpi sge, %3, %5 : vector<17x17xi32>
    %c8_i32_1 = arith.constant 8 : i32
    %7 = vector.broadcast %c8_i32_1 : i32 to vector<17x17xi32>
    %8 = arith.cmpi sge, %4, %7 : vector<17x17xi32>
    %c16_i32 = arith.constant 16 : i32
    %9 = vector.broadcast %c16_i32 : i32 to vector<17x17xi32>
    %10 = arith.cmpi sge, %3, %9 : vector<17x17xi32>
    %c16_i32_2 = arith.constant 16 : i32
    %11 = vector.broadcast %c16_i32_2 : i32 to vector<17x17xi32>
    %12 = arith.cmpi sge, %4, %11 : vector<17x17xi32>
    %13 = arith.ori %10, %12 : vector<17x17xi1>
    %14 = arith.xori %6, %8 : vector<17x17xi1>
    %cst = arith.constant dense<true> : vector<17x17xi1>
    %15 = arith.xori %14, %cst : vector<17x17xi1>
    %cst_3 = arith.constant dense<true> : vector<17x17xi1>
    %16 = arith.xori %13, %cst_3 : vector<17x17xi1>
    %17 = arith.andi %15, %16 : vector<17x17xi1>
    %cst_4 = arith.constant 0.000000e+00 : f32
    %cst_5 = arith.constant -1.000000e+09 : f32
    %18 = vector.broadcast %cst_4 : f32 to vector<17x17xf32>
    %19 = vector.broadcast %cst_5 : f32 to vector<17x17xf32>
    %20 = arith.select %17, %18, %19 : vector<17x17xi1>, vector<17x17xf32>
    %21 = arith.xori %6, %8 : vector<17x17xi1>
    %cst_6 = arith.constant dense<true> : vector<17x17xi1>
    %22 = arith.xori %13, %cst_6 : vector<17x17xi1>
    %23 = arith.andi %21, %22 : vector<17x17xi1>
    %cst_7 = arith.constant 0.000000e+00 : f32
    %cst_8 = arith.constant -1.000000e+09 : f32
    %24 = vector.broadcast %cst_7 : f32 to vector<17x17xf32>
    %25 = vector.broadcast %cst_8 : f32 to vector<17x17xf32>
    %26 = arith.select %23, %24, %25 : vector<17x17xi1>, vector<17x17xf32>
    %27 = tpu.iota {dimensions = array<i32: 0>} : vector<17x1xi32>
    %c16_i32_9 = arith.constant 16 : i32
    %28 = vector.broadcast %c16_i32_9 : i32 to vector<17x1xi32>
    %29 = arith.cmpi slt, %27, %28 : vector<17x1xi32>
    %c0 = arith.constant 0 : index
    %c0_10 = arith.constant 0 : index
    %30 = vector.load %arg8[%c0, %c0_10] : memref<17x64xf32, #tpu.memory_space<vmem>>, vector<17x64xf32>
    %c0_11 = arith.constant 0 : index
    %c320 = arith.constant 320 : index
    %c0_12 = arith.constant 0 : index
    %31 = vector.load %arg4[%c0_11, %c320, %c0_12] : memref<1x656x64xf32, #tpu.memory_space<vmem>>, vector<1x8x64xf32>
    %32 = vector.shape_cast %31 : vector<1x8x64xf32> to vector<8x64xf32>
    %c0_13 = arith.constant 0 : index
    %c128 = arith.constant 128 : index
    %c0_14 = arith.constant 0 : index
    %33 = vector.load %arg5[%c0_13, %c128, %c0_14] : memref<1x272x128xf32, #tpu.memory_space<vmem>>, vector<1x8x128xf32>
    %34 = vector.shape_cast %33 : vector<1x8x128xf32> to vector<8x128xf32>
    %c0_15 = arith.constant 0 : index
    %c0_16 = arith.constant 0 : index
    %c0_17 = arith.constant 0 : index
    %35 = vector.load %arg4[%c0_15, %c0_16, %c0_17] : memref<1x656x64xf32, #tpu.memory_space<vmem>>, vector<1x64x64xf32>
    %36 = vector.shape_cast %35 : vector<1x64x64xf32> to vector<64x64xf32>
    %cst_18 = arith.constant dense<0.000000e+00> : vector<17x64xf32>
    %37 = tpu.matmul %30, %36, %cst_18 {dimension_numbers = #tpu.dot_dimension_numbers<[1], [0], [0], [1], [0, 0, 1, 1], [], []>} : vector<17x64xf32>, vector<64x64xf32>, vector<17x64xf32> -> vector<17x64xf32>
    %38 = vector.extract_strided_slice %32 {offsets = [0, 0], sizes = [1, 64], strides = [1, 1]} : vector<8x64xf32> to vector<1x64xf32>
    %39 = vector.broadcast %38 : vector<1x64xf32> to vector<17x64xf32>
    %40 = arith.addf %37, %39 : vector<17x64xf32>
    %c0_19 = arith.constant 0 : index
    %c64 = arith.constant 64 : index
    %c0_20 = arith.constant 0 : index
    %41 = vector.load %arg4[%c0_19, %c64, %c0_20] : memref<1x656x64xf32, #tpu.memory_space<vmem>>, vector<1x64x64xf32>
    %42 = vector.shape_cast %41 : vector<1x64x64xf32> to vector<64x64xf32>
    %cst_21 = arith.constant dense<0.000000e+00> : vector<17x64xf32>
    %43 = tpu.matmul %30, %42, %cst_21 {dimension_numbers = #tpu.dot_dimension_numbers<[1], [0], [0], [1], [0, 0, 1, 1], [], []>} : vector<17x64xf32>, vector<64x64xf32>, vector<17x64xf32> -> vector<17x64xf32>
    %44 = vector.extract_strided_slice %32 {offsets = [1, 0], sizes = [1, 64], strides = [1, 1]} : vector<8x64xf32> to vector<1x64xf32>
    %45 = vector.broadcast %44 : vector<1x64xf32> to vector<17x64xf32>
    %46 = arith.addf %43, %45 : vector<17x64xf32>
    %c0_22 = arith.constant 0 : index
    %c128_23 = arith.constant 128 : index
    %c0_24 = arith.constant 0 : index
    %47 = vector.load %arg4[%c0_22, %c128_23, %c0_24] : memref<1x656x64xf32, #tpu.memory_space<vmem>>, vector<1x64x64xf32>
    %48 = vector.shape_cast %47 : vector<1x64x64xf32> to vector<64x64xf32>
    %cst_25 = arith.constant dense<0.000000e+00> : vector<17x64xf32>
    %49 = tpu.matmul %30, %48, %cst_25 {dimension_numbers = #tpu.dot_dimension_numbers<[1], [0], [0], [1], [0, 0, 1, 1], [], []>} : vector<17x64xf32>, vector<64x64xf32>, vector<17x64xf32> -> vector<17x64xf32>
    %50 = vector.extract_strided_slice %32 {offsets = [2, 0], sizes = [1, 64], strides = [1, 1]} : vector<8x64xf32> to vector<1x64xf32>
    %51 = vector.broadcast %50 : vector<1x64xf32> to vector<17x64xf32>
    %52 = arith.addf %49, %51 : vector<17x64xf32>
    %c0_26 = arith.constant 0 : index
    %c0_27 = arith.constant 0 : index
    %c0_28 = arith.constant 0 : index
    %53 = vector.load %arg5[%c0_26, %c0_27, %c0_28] : memref<1x272x128xf32, #tpu.memory_space<vmem>>, vector<1x64x128xf32>
    %54 = vector.shape_cast %53 : vector<1x64x128xf32> to vector<64x128xf32>
    %cst_29 = arith.constant dense<0.000000e+00> : vector<17x128xf32>
    %55 = tpu.matmul %30, %54, %cst_29 {dimension_numbers = #tpu.dot_dimension_numbers<[1], [0], [0], [1], [0, 0, 1, 1], [], []>} : vector<17x64xf32>, vector<64x128xf32>, vector<17x128xf32> -> vector<17x128xf32>
    %56 = vector.extract_strided_slice %34 {offsets = [0, 0], sizes = [1, 128], strides = [1, 1]} : vector<8x128xf32> to vector<1x128xf32>
    %57 = vector.broadcast %56 : vector<1x128xf32> to vector<17x128xf32>
    %58 = arith.addf %55, %57 : vector<17x128xf32>
    %c0_30 = arith.constant 0 : index
    %c64_31 = arith.constant 64 : index
    %c0_32 = arith.constant 0 : index
    %59 = vector.load %arg5[%c0_30, %c64_31, %c0_32] : memref<1x272x128xf32, #tpu.memory_space<vmem>>, vector<1x64x128xf32>
    %60 = vector.shape_cast %59 : vector<1x64x128xf32> to vector<64x128xf32>
    %61 = vector.extract_strided_slice %40 {offsets = [0, 0], sizes = [17, 16], strides = [1, 1]} : vector<17x64xf32> to vector<17x16xf32>
    %62 = vector.extract_strided_slice %46 {offsets = [0, 0], sizes = [17, 16], strides = [1, 1]} : vector<17x64xf32> to vector<17x16xf32>
    %cst_33 = arith.constant dense<0.000000e+00> : vector<17x17xf32>
    %63 = tpu.matmul %61, %62, %cst_33 {dimension_numbers = #tpu.dot_dimension_numbers<[1], [1], [0], [0], [0, 0, 1, 0], [], []>} : vector<17x16xf32>, vector<17x16xf32>, vector<17x17xf32> -> vector<17x17xf32>
    %cst_34 = arith.constant 2.500000e-01 : f32
    %64 = vector.broadcast %cst_34 : f32 to vector<17x17xf32>
    %65 = arith.mulf %63, %64 : vector<17x17xf32>
    %66 = arith.addf %65, %20 : vector<17x17xf32>
    %cst_35 = arith.constant dense<0xFF800000> : vector<17xf32>
    %67 = vector.multi_reduction <maximumf>, %66, %cst_35 [1] : vector<17x17xf32> to vector<17xf32>
    %68 = vector.shape_cast %67 : vector<17xf32> to vector<17x1xf32>
    %69 = vector.broadcast %68 : vector<17x1xf32> to vector<17x17xf32>
    %70 = arith.subf %66, %69 : vector<17x17xf32>
    %71 = math.exp %70 : vector<17x17xf32>
    %cst_36 = arith.constant dense<0.000000e+00> : vector<17xf32>
    %72 = vector.multi_reduction <add>, %71, %cst_36 [1] : vector<17x17xf32> to vector<17xf32>
    %73 = vector.shape_cast %72 : vector<17xf32> to vector<17x1xf32>
    %74 = vector.extract_strided_slice %52 {offsets = [0, 0], sizes = [17, 16], strides = [1, 1]} : vector<17x64xf32> to vector<17x16xf32>
    %cst_37 = arith.constant dense<0.000000e+00> : vector<17x16xf32>
    %75 = tpu.matmul %71, %74, %cst_37 {dimension_numbers = #tpu.dot_dimension_numbers<[1], [0], [0], [1], [0, 0, 1, 1], [], []>} : vector<17x17xf32>, vector<17x16xf32>, vector<17x16xf32> -> vector<17x16xf32>
    %76 = tpu.reciprocal %73 {approx = true} : vector<17x1xf32> -> vector<17x1xf32>
    %77 = vector.broadcast %76 : vector<17x1xf32> to vector<17x16xf32>
    %78 = arith.mulf %75, %77 : vector<17x16xf32>
    %79 = vector.extract_strided_slice %60 {offsets = [0, 0], sizes = [16, 128], strides = [1, 1]} : vector<64x128xf32> to vector<16x128xf32>
    %cst_38 = arith.constant dense<0.000000e+00> : vector<17x128xf32>
    %80 = tpu.matmul %78, %79, %cst_38 {dimension_numbers = #tpu.dot_dimension_numbers<[1], [0], [0], [1], [0, 0, 1, 1], [], []>} : vector<17x16xf32>, vector<16x128xf32>, vector<17x128xf32> -> vector<17x128xf32>
    %81 = arith.addf %58, %80 : vector<17x128xf32>
    %82 = vector.extract_strided_slice %40 {offsets = [0, 16], sizes = [17, 16], strides = [1, 1]} : vector<17x64xf32> to vector<17x16xf32>
    %83 = vector.extract_strided_slice %46 {offsets = [0, 16], sizes = [17, 16], strides = [1, 1]} : vector<17x64xf32> to vector<17x16xf32>
    %cst_39 = arith.constant dense<0.000000e+00> : vector<17x17xf32>
    %84 = tpu.matmul %82, %83, %cst_39 {dimension_numbers = #tpu.dot_dimension_numbers<[1], [1], [0], [0], [0, 0, 1, 0], [], []>} : vector<17x16xf32>, vector<17x16xf32>, vector<17x17xf32> -> vector<17x17xf32>
    %cst_40 = arith.constant 2.500000e-01 : f32
    %85 = vector.broadcast %cst_40 : f32 to vector<17x17xf32>
    %86 = arith.mulf %84, %85 : vector<17x17xf32>
    %87 = arith.addf %86, %20 : vector<17x17xf32>
    %cst_41 = arith.constant dense<0xFF800000> : vector<17xf32>
    %88 = vector.multi_reduction <maximumf>, %87, %cst_41 [1] : vector<17x17xf32> to vector<17xf32>
    %89 = vector.shape_cast %88 : vector<17xf32> to vector<17x1xf32>
    %90 = vector.broadcast %89 : vector<17x1xf32> to vector<17x17xf32>
    %91 = arith.subf %87, %90 : vector<17x17xf32>
    %92 = math.exp %91 : vector<17x17xf32>
    %cst_42 = arith.constant dense<0.000000e+00> : vector<17xf32>
    %93 = vector.multi_reduction <add>, %92, %cst_42 [1] : vector<17x17xf32> to vector<17xf32>
    %94 = vector.shape_cast %93 : vector<17xf32> to vector<17x1xf32>
    %95 = vector.extract_strided_slice %52 {offsets = [0, 16], sizes = [17, 16], strides = [1, 1]} : vector<17x64xf32> to vector<17x16xf32>
    %cst_43 = arith.constant dense<0.000000e+00> : vector<17x16xf32>
    %96 = tpu.matmul %92, %95, %cst_43 {dimension_numbers = #tpu.dot_dimension_numbers<[1], [0], [0], [1], [0, 0, 1, 1], [], []>} : vector<17x17xf32>, vector<17x16xf32>, vector<17x16xf32> -> vector<17x16xf32>
    %97 = tpu.reciprocal %94 {approx = true} : vector<17x1xf32> -> vector<17x1xf32>
    %98 = vector.broadcast %97 : vector<17x1xf32> to vector<17x16xf32>
    %99 = arith.mulf %96, %98 : vector<17x16xf32>
    %100 = vector.extract_strided_slice %60 {offsets = [16, 0], sizes = [16, 128], strides = [1, 1]} : vector<64x128xf32> to vector<16x128xf32>
    %cst_44 = arith.constant dense<0.000000e+00> : vector<17x128xf32>
    %101 = tpu.matmul %99, %100, %cst_44 {dimension_numbers = #tpu.dot_dimension_numbers<[1], [0], [0], [1], [0, 0, 1, 1], [], []>} : vector<17x16xf32>, vector<16x128xf32>, vector<17x128xf32> -> vector<17x128xf32>
    %102 = arith.addf %81, %101 : vector<17x128xf32>
    %103 = vector.extract_strided_slice %40 {offsets = [0, 32], sizes = [17, 16], strides = [1, 1]} : vector<17x64xf32> to vector<17x16xf32>
    %104 = vector.extract_strided_slice %46 {offsets = [0, 32], sizes = [17, 16], strides = [1, 1]} : vector<17x64xf32> to vector<17x16xf32>
    %cst_45 = arith.constant dense<0.000000e+00> : vector<17x17xf32>
    %105 = tpu.matmul %103, %104, %cst_45 {dimension_numbers = #tpu.dot_dimension_numbers<[1], [1], [0], [0], [0, 0, 1, 0], [], []>} : vector<17x16xf32>, vector<17x16xf32>, vector<17x17xf32> -> vector<17x17xf32>
    %cst_46 = arith.constant 2.500000e-01 : f32
    %106 = vector.broadcast %cst_46 : f32 to vector<17x17xf32>
    %107 = arith.mulf %105, %106 : vector<17x17xf32>
    %108 = arith.addf %107, %20 : vector<17x17xf32>
    %cst_47 = arith.constant dense<0xFF800000> : vector<17xf32>
    %109 = vector.multi_reduction <maximumf>, %108, %cst_47 [1] : vector<17x17xf32> to vector<17xf32>
    %110 = vector.shape_cast %109 : vector<17xf32> to vector<17x1xf32>
    %111 = vector.broadcast %110 : vector<17x1xf32> to vector<17x17xf32>
    %112 = arith.subf %108, %111 : vector<17x17xf32>
    %113 = math.exp %112 : vector<17x17xf32>
    %cst_48 = arith.constant dense<0.000000e+00> : vector<17xf32>
    %114 = vector.multi_reduction <add>, %113, %cst_48 [1] : vector<17x17xf32> to vector<17xf32>
    %115 = vector.shape_cast %114 : vector<17xf32> to vector<17x1xf32>
    %116 = vector.extract_strided_slice %52 {offsets = [0, 32], sizes = [17, 16], strides = [1, 1]} : vector<17x64xf32> to vector<17x16xf32>
    %cst_49 = arith.constant dense<0.000000e+00> : vector<17x16xf32>
    %117 = tpu.matmul %113, %116, %cst_49 {dimension_numbers = #tpu.dot_dimension_numbers<[1], [0], [0], [1], [0, 0, 1, 1], [], []>} : vector<17x17xf32>, vector<17x16xf32>, vector<17x16xf32> -> vector<17x16xf32>
    %118 = tpu.reciprocal %115 {approx = true} : vector<17x1xf32> -> vector<17x1xf32>
    %119 = vector.broadcast %118 : vector<17x1xf32> to vector<17x16xf32>
    %120 = arith.mulf %117, %119 : vector<17x16xf32>
    %121 = vector.extract_strided_slice %60 {offsets = [32, 0], sizes = [16, 128], strides = [1, 1]} : vector<64x128xf32> to vector<16x128xf32>
    %cst_50 = arith.constant dense<0.000000e+00> : vector<17x128xf32>
    %122 = tpu.matmul %120, %121, %cst_50 {dimension_numbers = #tpu.dot_dimension_numbers<[1], [0], [0], [1], [0, 0, 1, 1], [], []>} : vector<17x16xf32>, vector<16x128xf32>, vector<17x128xf32> -> vector<17x128xf32>
    %123 = arith.addf %102, %122 : vector<17x128xf32>
    %124 = vector.extract_strided_slice %40 {offsets = [0, 48], sizes = [17, 16], strides = [1, 1]} : vector<17x64xf32> to vector<17x16xf32>
    %125 = vector.extract_strided_slice %46 {offsets = [0, 48], sizes = [17, 16], strides = [1, 1]} : vector<17x64xf32> to vector<17x16xf32>
    %cst_51 = arith.constant dense<0.000000e+00> : vector<17x17xf32>
    %126 = tpu.matmul %124, %125, %cst_51 {dimension_numbers = #tpu.dot_dimension_numbers<[1], [1], [0], [0], [0, 0, 1, 0], [], []>} : vector<17x16xf32>, vector<17x16xf32>, vector<17x17xf32> -> vector<17x17xf32>
    %cst_52 = arith.constant 2.500000e-01 : f32
    %127 = vector.broadcast %cst_52 : f32 to vector<17x17xf32>
    %128 = arith.mulf %126, %127 : vector<17x17xf32>
    %129 = arith.addf %128, %20 : vector<17x17xf32>
    %cst_53 = arith.constant dense<0xFF800000> : vector<17xf32>
    %130 = vector.multi_reduction <maximumf>, %129, %cst_53 [1] : vector<17x17xf32> to vector<17xf32>
    %131 = vector.shape_cast %130 : vector<17xf32> to vector<17x1xf32>
    %132 = vector.broadcast %131 : vector<17x1xf32> to vector<17x17xf32>
    %133 = arith.subf %129, %132 : vector<17x17xf32>
    %134 = math.exp %133 : vector<17x17xf32>
    %cst_54 = arith.constant dense<0.000000e+00> : vector<17xf32>
    %135 = vector.multi_reduction <add>, %134, %cst_54 [1] : vector<17x17xf32> to vector<17xf32>
    %136 = vector.shape_cast %135 : vector<17xf32> to vector<17x1xf32>
    %137 = vector.extract_strided_slice %52 {offsets = [0, 48], sizes = [17, 16], strides = [1, 1]} : vector<17x64xf32> to vector<17x16xf32>
    %cst_55 = arith.constant dense<0.000000e+00> : vector<17x16xf32>
    %138 = tpu.matmul %134, %137, %cst_55 {dimension_numbers = #tpu.dot_dimension_numbers<[1], [0], [0], [1], [0, 0, 1, 1], [], []>} : vector<17x17xf32>, vector<17x16xf32>, vector<17x16xf32> -> vector<17x16xf32>
    %139 = tpu.reciprocal %136 {approx = true} : vector<17x1xf32> -> vector<17x1xf32>
    %140 = vector.broadcast %139 : vector<17x1xf32> to vector<17x16xf32>
    %141 = arith.mulf %138, %140 : vector<17x16xf32>
    %142 = vector.extract_strided_slice %60 {offsets = [48, 0], sizes = [16, 128], strides = [1, 1]} : vector<64x128xf32> to vector<16x128xf32>
    %cst_56 = arith.constant dense<0.000000e+00> : vector<17x128xf32>
    %143 = tpu.matmul %141, %142, %cst_56 {dimension_numbers = #tpu.dot_dimension_numbers<[1], [0], [0], [1], [0, 0, 1, 1], [], []>} : vector<17x16xf32>, vector<16x128xf32>, vector<17x128xf32> -> vector<17x128xf32>
    %144 = arith.addf %123, %143 : vector<17x128xf32>
    %cst_57 = arith.constant 0.000000e+00 : f32
    %145 = vector.broadcast %cst_57 : f32 to vector<17x128xf32>
    %146 = arith.maximumf %144, %145 : vector<17x128xf32>
    %c0_58 = arith.constant 0 : index
    %c192 = arith.constant 192 : index
    %c0_59 = arith.constant 0 : index
    %147 = vector.load %arg4[%c0_58, %c192, %c0_59] : memref<1x656x64xf32, #tpu.memory_space<vmem>>, vector<1x128x64xf32>
    %148 = vector.shape_cast %147 : vector<1x128x64xf32> to vector<128x64xf32>
    %cst_60 = arith.constant dense<0.000000e+00> : vector<17x64xf32>
    %149 = tpu.matmul %146, %148, %cst_60 {dimension_numbers = #tpu.dot_dimension_numbers<[1], [0], [0], [1], [0, 0, 1, 1], [], []>} : vector<17x128xf32>, vector<128x64xf32>, vector<17x64xf32> -> vector<17x64xf32>
    %150 = vector.extract_strided_slice %34 {offsets = [1, 0], sizes = [1, 64], strides = [1, 1]} : vector<8x128xf32> to vector<1x64xf32>
    %151 = vector.broadcast %150 : vector<1x64xf32> to vector<17x64xf32>
    %152 = arith.addf %149, %151 : vector<17x64xf32>
    %153 = arith.addf %30, %152 : vector<17x64xf32>
    %c0_61 = arith.constant 0 : index
    %c648 = arith.constant 648 : index
    %c0_62 = arith.constant 0 : index
    %154 = vector.load %arg4[%c0_61, %c648, %c0_62] : memref<1x656x64xf32, #tpu.memory_space<vmem>>, vector<1x8x64xf32>
    %155 = vector.shape_cast %154 : vector<1x8x64xf32> to vector<8x64xf32>
    %c0_63 = arith.constant 0 : index
    %c264 = arith.constant 264 : index
    %c0_64 = arith.constant 0 : index
    %156 = vector.load %arg5[%c0_63, %c264, %c0_64] : memref<1x272x128xf32, #tpu.memory_space<vmem>>, vector<1x8x128xf32>
    %157 = vector.shape_cast %156 : vector<1x8x128xf32> to vector<8x128xf32>
    %c0_65 = arith.constant 0 : index
    %c328 = arith.constant 328 : index
    %c0_66 = arith.constant 0 : index
    %158 = vector.load %arg4[%c0_65, %c328, %c0_66] : memref<1x656x64xf32, #tpu.memory_space<vmem>>, vector<1x64x64xf32>
    %159 = vector.shape_cast %158 : vector<1x64x64xf32> to vector<64x64xf32>
    %cst_67 = arith.constant dense<0.000000e+00> : vector<17x64xf32>
    %160 = tpu.matmul %153, %159, %cst_67 {dimension_numbers = #tpu.dot_dimension_numbers<[1], [0], [0], [1], [0, 0, 1, 1], [], []>} : vector<17x64xf32>, vector<64x64xf32>, vector<17x64xf32> -> vector<17x64xf32>
    %161 = vector.extract_strided_slice %155 {offsets = [0, 0], sizes = [1, 64], strides = [1, 1]} : vector<8x64xf32> to vector<1x64xf32>
    %162 = vector.broadcast %161 : vector<1x64xf32> to vector<17x64xf32>
    %163 = arith.addf %160, %162 : vector<17x64xf32>
    %c0_68 = arith.constant 0 : index
    %c392 = arith.constant 392 : index
    %c0_69 = arith.constant 0 : index
    %164 = vector.load %arg4[%c0_68, %c392, %c0_69] : memref<1x656x64xf32, #tpu.memory_space<vmem>>, vector<1x64x64xf32>
    %165 = vector.shape_cast %164 : vector<1x64x64xf32> to vector<64x64xf32>
    %cst_70 = arith.constant dense<0.000000e+00> : vector<17x64xf32>
    %166 = tpu.matmul %153, %165, %cst_70 {dimension_numbers = #tpu.dot_dimension_numbers<[1], [0], [0], [1], [0, 0, 1, 1], [], []>} : vector<17x64xf32>, vector<64x64xf32>, vector<17x64xf32> -> vector<17x64xf32>
    %167 = vector.extract_strided_slice %155 {offsets = [1, 0], sizes = [1, 64], strides = [1, 1]} : vector<8x64xf32> to vector<1x64xf32>
    %168 = vector.broadcast %167 : vector<1x64xf32> to vector<17x64xf32>
    %169 = arith.addf %166, %168 : vector<17x64xf32>
    %c0_71 = arith.constant 0 : index
    %c456 = arith.constant 456 : index
    %c0_72 = arith.constant 0 : index
    %170 = vector.load %arg4[%c0_71, %c456, %c0_72] : memref<1x656x64xf32, #tpu.memory_space<vmem>>, vector<1x64x64xf32>
    %171 = vector.shape_cast %170 : vector<1x64x64xf32> to vector<64x64xf32>
    %cst_73 = arith.constant dense<0.000000e+00> : vector<17x64xf32>
    %172 = tpu.matmul %153, %171, %cst_73 {dimension_numbers = #tpu.dot_dimension_numbers<[1], [0], [0], [1], [0, 0, 1, 1], [], []>} : vector<17x64xf32>, vector<64x64xf32>, vector<17x64xf32> -> vector<17x64xf32>
    %173 = vector.extract_strided_slice %155 {offsets = [2, 0], sizes = [1, 64], strides = [1, 1]} : vector<8x64xf32> to vector<1x64xf32>
    %174 = vector.broadcast %173 : vector<1x64xf32> to vector<17x64xf32>
    %175 = arith.addf %172, %174 : vector<17x64xf32>
    %c0_74 = arith.constant 0 : index
    %c136 = arith.constant 136 : index
    %c0_75 = arith.constant 0 : index
    %176 = vector.load %arg5[%c0_74, %c136, %c0_75] : memref<1x272x128xf32, #tpu.memory_space<vmem>>, vector<1x64x128xf32>
    %177 = vector.shape_cast %176 : vector<1x64x128xf32> to vector<64x128xf32>
    %cst_76 = arith.constant dense<0.000000e+00> : vector<17x128xf32>
    %178 = tpu.matmul %153, %177, %cst_76 {dimension_numbers = #tpu.dot_dimension_numbers<[1], [0], [0], [1], [0, 0, 1, 1], [], []>} : vector<17x64xf32>, vector<64x128xf32>, vector<17x128xf32> -> vector<17x128xf32>
    %179 = vector.extract_strided_slice %157 {offsets = [0, 0], sizes = [1, 128], strides = [1, 1]} : vector<8x128xf32> to vector<1x128xf32>
    %180 = vector.broadcast %179 : vector<1x128xf32> to vector<17x128xf32>
    %181 = arith.addf %178, %180 : vector<17x128xf32>
    %c0_77 = arith.constant 0 : index
    %c200 = arith.constant 200 : index
    %c0_78 = arith.constant 0 : index
    %182 = vector.load %arg5[%c0_77, %c200, %c0_78] : memref<1x272x128xf32, #tpu.memory_space<vmem>>, vector<1x64x128xf32>
    %183 = vector.shape_cast %182 : vector<1x64x128xf32> to vector<64x128xf32>
    %184 = vector.extract_strided_slice %163 {offsets = [0, 0], sizes = [17, 16], strides = [1, 1]} : vector<17x64xf32> to vector<17x16xf32>
    %185 = vector.extract_strided_slice %169 {offsets = [0, 0], sizes = [17, 16], strides = [1, 1]} : vector<17x64xf32> to vector<17x16xf32>
    %cst_79 = arith.constant dense<0.000000e+00> : vector<17x17xf32>
    %186 = tpu.matmul %184, %185, %cst_79 {dimension_numbers = #tpu.dot_dimension_numbers<[1], [1], [0], [0], [0, 0, 1, 0], [], []>} : vector<17x16xf32>, vector<17x16xf32>, vector<17x17xf32> -> vector<17x17xf32>
    %cst_80 = arith.constant 2.500000e-01 : f32
    %187 = vector.broadcast %cst_80 : f32 to vector<17x17xf32>
    %188 = arith.mulf %186, %187 : vector<17x17xf32>
    %189 = arith.addf %188, %26 : vector<17x17xf32>
    %cst_81 = arith.constant dense<0xFF800000> : vector<17xf32>
    %190 = vector.multi_reduction <maximumf>, %189, %cst_81 [1] : vector<17x17xf32> to vector<17xf32>
    %191 = vector.shape_cast %190 : vector<17xf32> to vector<17x1xf32>
    %192 = vector.broadcast %191 : vector<17x1xf32> to vector<17x17xf32>
    %193 = arith.subf %189, %192 : vector<17x17xf32>
    %194 = math.exp %193 : vector<17x17xf32>
    %cst_82 = arith.constant dense<0.000000e+00> : vector<17xf32>
    %195 = vector.multi_reduction <add>, %194, %cst_82 [1] : vector<17x17xf32> to vector<17xf32>
    %196 = vector.shape_cast %195 : vector<17xf32> to vector<17x1xf32>
    %197 = vector.extract_strided_slice %175 {offsets = [0, 0], sizes = [17, 16], strides = [1, 1]} : vector<17x64xf32> to vector<17x16xf32>
    %cst_83 = arith.constant dense<0.000000e+00> : vector<17x16xf32>
    %198 = tpu.matmul %194, %197, %cst_83 {dimension_numbers = #tpu.dot_dimension_numbers<[1], [0], [0], [1], [0, 0, 1, 1], [], []>} : vector<17x17xf32>, vector<17x16xf32>, vector<17x16xf32> -> vector<17x16xf32>
    %199 = tpu.reciprocal %196 {approx = true} : vector<17x1xf32> -> vector<17x1xf32>
    %200 = vector.broadcast %199 : vector<17x1xf32> to vector<17x16xf32>
    %201 = arith.mulf %198, %200 : vector<17x16xf32>
    %202 = vector.extract_strided_slice %183 {offsets = [0, 0], sizes = [16, 128], strides = [1, 1]} : vector<64x128xf32> to vector<16x128xf32>
    %cst_84 = arith.constant dense<0.000000e+00> : vector<17x128xf32>
    %203 = tpu.matmul %201, %202, %cst_84 {dimension_numbers = #tpu.dot_dimension_numbers<[1], [0], [0], [1], [0, 0, 1, 1], [], []>} : vector<17x16xf32>, vector<16x128xf32>, vector<17x128xf32> -> vector<17x128xf32>
    %204 = arith.addf %181, %203 : vector<17x128xf32>
    %205 = vector.extract_strided_slice %163 {offsets = [0, 16], sizes = [17, 16], strides = [1, 1]} : vector<17x64xf32> to vector<17x16xf32>
    %206 = vector.extract_strided_slice %169 {offsets = [0, 16], sizes = [17, 16], strides = [1, 1]} : vector<17x64xf32> to vector<17x16xf32>
    %cst_85 = arith.constant dense<0.000000e+00> : vector<17x17xf32>
    %207 = tpu.matmul %205, %206, %cst_85 {dimension_numbers = #tpu.dot_dimension_numbers<[1], [1], [0], [0], [0, 0, 1, 0], [], []>} : vector<17x16xf32>, vector<17x16xf32>, vector<17x17xf32> -> vector<17x17xf32>
    %cst_86 = arith.constant 2.500000e-01 : f32
    %208 = vector.broadcast %cst_86 : f32 to vector<17x17xf32>
    %209 = arith.mulf %207, %208 : vector<17x17xf32>
    %210 = arith.addf %209, %26 : vector<17x17xf32>
    %cst_87 = arith.constant dense<0xFF800000> : vector<17xf32>
    %211 = vector.multi_reduction <maximumf>, %210, %cst_87 [1] : vector<17x17xf32> to vector<17xf32>
    %212 = vector.shape_cast %211 : vector<17xf32> to vector<17x1xf32>
    %213 = vector.broadcast %212 : vector<17x1xf32> to vector<17x17xf32>
    %214 = arith.subf %210, %213 : vector<17x17xf32>
    %215 = math.exp %214 : vector<17x17xf32>
    %cst_88 = arith.constant dense<0.000000e+00> : vector<17xf32>
    %216 = vector.multi_reduction <add>, %215, %cst_88 [1] : vector<17x17xf32> to vector<17xf32>
    %217 = vector.shape_cast %216 : vector<17xf32> to vector<17x1xf32>
    %218 = vector.extract_strided_slice %175 {offsets = [0, 16], sizes = [17, 16], strides = [1, 1]} : vector<17x64xf32> to vector<17x16xf32>
    %cst_89 = arith.constant dense<0.000000e+00> : vector<17x16xf32>
    %219 = tpu.matmul %215, %218, %cst_89 {dimension_numbers = #tpu.dot_dimension_numbers<[1], [0], [0], [1], [0, 0, 1, 1], [], []>} : vector<17x17xf32>, vector<17x16xf32>, vector<17x16xf32> -> vector<17x16xf32>
    %220 = tpu.reciprocal %217 {approx = true} : vector<17x1xf32> -> vector<17x1xf32>
    %221 = vector.broadcast %220 : vector<17x1xf32> to vector<17x16xf32>
    %222 = arith.mulf %219, %221 : vector<17x16xf32>
    %223 = vector.extract_strided_slice %183 {offsets = [16, 0], sizes = [16, 128], strides = [1, 1]} : vector<64x128xf32> to vector<16x128xf32>
    %cst_90 = arith.constant dense<0.000000e+00> : vector<17x128xf32>
    %224 = tpu.matmul %222, %223, %cst_90 {dimension_numbers = #tpu.dot_dimension_numbers<[1], [0], [0], [1], [0, 0, 1, 1], [], []>} : vector<17x16xf32>, vector<16x128xf32>, vector<17x128xf32> -> vector<17x128xf32>
    %225 = arith.addf %204, %224 : vector<17x128xf32>
    %226 = vector.extract_strided_slice %163 {offsets = [0, 32], sizes = [17, 16], strides = [1, 1]} : vector<17x64xf32> to vector<17x16xf32>
    %227 = vector.extract_strided_slice %169 {offsets = [0, 32], sizes = [17, 16], strides = [1, 1]} : vector<17x64xf32> to vector<17x16xf32>
    %cst_91 = arith.constant dense<0.000000e+00> : vector<17x17xf32>
    %228 = tpu.matmul %226, %227, %cst_91 {dimension_numbers = #tpu.dot_dimension_numbers<[1], [1], [0], [0], [0, 0, 1, 0], [], []>} : vector<17x16xf32>, vector<17x16xf32>, vector<17x17xf32> -> vector<17x17xf32>
    %cst_92 = arith.constant 2.500000e-01 : f32
    %229 = vector.broadcast %cst_92 : f32 to vector<17x17xf32>
    %230 = arith.mulf %228, %229 : vector<17x17xf32>
    %231 = arith.addf %230, %26 : vector<17x17xf32>
    %cst_93 = arith.constant dense<0xFF800000> : vector<17xf32>
    %232 = vector.multi_reduction <maximumf>, %231, %cst_93 [1] : vector<17x17xf32> to vector<17xf32>
    %233 = vector.shape_cast %232 : vector<17xf32> to vector<17x1xf32>
    %234 = vector.broadcast %233 : vector<17x1xf32> to vector<17x17xf32>
    %235 = arith.subf %231, %234 : vector<17x17xf32>
    %236 = math.exp %235 : vector<17x17xf32>
    %cst_94 = arith.constant dense<0.000000e+00> : vector<17xf32>
    %237 = vector.multi_reduction <add>, %236, %cst_94 [1] : vector<17x17xf32> to vector<17xf32>
    %238 = vector.shape_cast %237 : vector<17xf32> to vector<17x1xf32>
    %239 = vector.extract_strided_slice %175 {offsets = [0, 32], sizes = [17, 16], strides = [1, 1]} : vector<17x64xf32> to vector<17x16xf32>
    %cst_95 = arith.constant dense<0.000000e+00> : vector<17x16xf32>
    %240 = tpu.matmul %236, %239, %cst_95 {dimension_numbers = #tpu.dot_dimension_numbers<[1], [0], [0], [1], [0, 0, 1, 1], [], []>} : vector<17x17xf32>, vector<17x16xf32>, vector<17x16xf32> -> vector<17x16xf32>
    %241 = tpu.reciprocal %238 {approx = true} : vector<17x1xf32> -> vector<17x1xf32>
    %242 = vector.broadcast %241 : vector<17x1xf32> to vector<17x16xf32>
    %243 = arith.mulf %240, %242 : vector<17x16xf32>
    %244 = vector.extract_strided_slice %183 {offsets = [32, 0], sizes = [16, 128], strides = [1, 1]} : vector<64x128xf32> to vector<16x128xf32>
    %cst_96 = arith.constant dense<0.000000e+00> : vector<17x128xf32>
    %245 = tpu.matmul %243, %244, %cst_96 {dimension_numbers = #tpu.dot_dimension_numbers<[1], [0], [0], [1], [0, 0, 1, 1], [], []>} : vector<17x16xf32>, vector<16x128xf32>, vector<17x128xf32> -> vector<17x128xf32>
    %246 = arith.addf %225, %245 : vector<17x128xf32>
    %247 = vector.extract_strided_slice %163 {offsets = [0, 48], sizes = [17, 16], strides = [1, 1]} : vector<17x64xf32> to vector<17x16xf32>
    %248 = vector.extract_strided_slice %169 {offsets = [0, 48], sizes = [17, 16], strides = [1, 1]} : vector<17x64xf32> to vector<17x16xf32>
    %cst_97 = arith.constant dense<0.000000e+00> : vector<17x17xf32>
    %249 = tpu.matmul %247, %248, %cst_97 {dimension_numbers = #tpu.dot_dimension_numbers<[1], [1], [0], [0], [0, 0, 1, 0], [], []>} : vector<17x16xf32>, vector<17x16xf32>, vector<17x17xf32> -> vector<17x17xf32>
    %cst_98 = arith.constant 2.500000e-01 : f32
    %250 = vector.broadcast %cst_98 : f32 to vector<17x17xf32>
    %251 = arith.mulf %249, %250 : vector<17x17xf32>
    %252 = arith.addf %251, %26 : vector<17x17xf32>
    %cst_99 = arith.constant dense<0xFF800000> : vector<17xf32>
    %253 = vector.multi_reduction <maximumf>, %252, %cst_99 [1] : vector<17x17xf32> to vector<17xf32>
    %254 = vector.shape_cast %253 : vector<17xf32> to vector<17x1xf32>
    %255 = vector.broadcast %254 : vector<17x1xf32> to vector<17x17xf32>
    %256 = arith.subf %252, %255 : vector<17x17xf32>
    %257 = math.exp %256 : vector<17x17xf32>
    %cst_100 = arith.constant dense<0.000000e+00> : vector<17xf32>
    %258 = vector.multi_reduction <add>, %257, %cst_100 [1] : vector<17x17xf32> to vector<17xf32>
    %259 = vector.shape_cast %258 : vector<17xf32> to vector<17x1xf32>
    %260 = vector.extract_strided_slice %175 {offsets = [0, 48], sizes = [17, 16], strides = [1, 1]} : vector<17x64xf32> to vector<17x16xf32>
    %cst_101 = arith.constant dense<0.000000e+00> : vector<17x16xf32>
    %261 = tpu.matmul %257, %260, %cst_101 {dimension_numbers = #tpu.dot_dimension_numbers<[1], [0], [0], [1], [0, 0, 1, 1], [], []>} : vector<17x17xf32>, vector<17x16xf32>, vector<17x16xf32> -> vector<17x16xf32>
    %262 = tpu.reciprocal %259 {approx = true} : vector<17x1xf32> -> vector<17x1xf32>
    %263 = vector.broadcast %262 : vector<17x1xf32> to vector<17x16xf32>
    %264 = arith.mulf %261, %263 : vector<17x16xf32>
    %265 = vector.extract_strided_slice %183 {offsets = [48, 0], sizes = [16, 128], strides = [1, 1]} : vector<64x128xf32> to vector<16x128xf32>
    %cst_102 = arith.constant dense<0.000000e+00> : vector<17x128xf32>
    %266 = tpu.matmul %264, %265, %cst_102 {dimension_numbers = #tpu.dot_dimension_numbers<[1], [0], [0], [1], [0, 0, 1, 1], [], []>} : vector<17x16xf32>, vector<16x128xf32>, vector<17x128xf32> -> vector<17x128xf32>
    %267 = arith.addf %246, %266 : vector<17x128xf32>
    %cst_103 = arith.constant 0.000000e+00 : f32
    %268 = vector.broadcast %cst_103 : f32 to vector<17x128xf32>
    %269 = arith.maximumf %267, %268 : vector<17x128xf32>
    %c0_104 = arith.constant 0 : index
    %c520 = arith.constant 520 : index
    %c0_105 = arith.constant 0 : index
    %270 = vector.load %arg4[%c0_104, %c520, %c0_105] : memref<1x656x64xf32, #tpu.memory_space<vmem>>, vector<1x128x64xf32>
    %271 = vector.shape_cast %270 : vector<1x128x64xf32> to vector<128x64xf32>
    %cst_106 = arith.constant dense<0.000000e+00> : vector<17x64xf32>
    %272 = tpu.matmul %269, %271, %cst_106 {dimension_numbers = #tpu.dot_dimension_numbers<[1], [0], [0], [1], [0, 0, 1, 1], [], []>} : vector<17x128xf32>, vector<128x64xf32>, vector<17x64xf32> -> vector<17x64xf32>
    %273 = vector.extract_strided_slice %157 {offsets = [1, 0], sizes = [1, 64], strides = [1, 1]} : vector<8x128xf32> to vector<1x64xf32>
    %274 = vector.broadcast %273 : vector<1x64xf32> to vector<17x64xf32>
    %275 = arith.addf %272, %274 : vector<17x64xf32>
    %276 = arith.addf %153, %275 : vector<17x64xf32>
    %cst_107 = arith.constant 0.000000e+00 : f32
    %277 = vector.shape_cast %29 : vector<17x1xi1> to vector<17x1xi1>
    %278 = vector.broadcast %277 : vector<17x1xi1> to vector<17x64xi1>
    %279 = vector.broadcast %cst_107 : f32 to vector<17x64xf32>
    %280 = arith.select %278, %276, %279 : vector<17x64xi1>, vector<17x64xf32>
    %c0_108 = arith.constant 0 : index
    %c0_109 = arith.constant 0 : index
    %281 = vector.load %arg8[%c0_108, %c0_109] : memref<17x64xf32, #tpu.memory_space<vmem>>, vector<17x64xf32>
    tpu.vector_store %arg8[%c0_108, %c0_109], %280 {strides = array<i32>} : memref<17x64xf32, #tpu.memory_space<vmem>>, vector<17x64xf32>,
    %c8_i32_110 = arith.constant 8 : i32
    %282 = arith.cmpi eq, %arg0, %c8_i32_110 : i32
    %283 = arith.extui %282 : i1 to i32
    %c0_i32_111 = arith.constant 0 : i32
    %284 = arith.cmpi ne, %283, %c0_i32_111 : i32
    scf.if %284 {
      %c320_112 = arith.constant 320 : index
      %c0_113 = arith.constant 0 : index
      %285 = vector.load %arg3[%c320_112, %c0_113] : memref<328x64xf32, #tpu.memory_space<vmem>>, vector<8x64xf32>
      %c256 = arith.constant 256 : index
      %c0_114 = arith.constant 0 : index
      %286 = vector.load %arg3[%c256, %c0_114] : memref<328x64xf32, #tpu.memory_space<vmem>>, vector<64x64xf32>
      %cst_115 = arith.constant dense<0.000000e+00> : vector<17x64xf32>
      %287 = tpu.matmul %280, %286, %cst_115 {dimension_numbers = #tpu.dot_dimension_numbers<[1], [0], [0], [1], [0, 0, 1, 1], [], []>} : vector<17x64xf32>, vector<64x64xf32>, vector<17x64xf32> -> vector<17x64xf32>
      %288 = vector.extract_strided_slice %285 {offsets = [5, 0], sizes = [1, 64], strides = [1, 1]} : vector<8x64xf32> to vector<1x64xf32>
      %289 = vector.broadcast %288 : vector<1x64xf32> to vector<17x64xf32>
      %290 = arith.addf %287, %289 : vector<17x64xf32>
      %291 = vector.extract_strided_slice %290 {offsets = [0, 0], sizes = [9, 64], strides = [1, 1]} : vector<17x64xf32> to vector<9x64xf32>
      %292 = vector.extract_strided_slice %290 {offsets = [8, 0], sizes = [9, 64], strides = [1, 1]} : vector<17x64xf32> to vector<9x64xf32>
      %cst_116 = arith.constant dense<0.000000e+00> : vector<9x9xf32>
      %293 = tpu.matmul %291, %292, %cst_116 {dimension_numbers = #tpu.dot_dimension_numbers<[1], [1], [0], [0], [0, 0, 1, 0], [], []>} : vector<9x64xf32>, vector<9x64xf32>, vector<9x9xf32> -> vector<9x9xf32>
      %cst_117 = arith.constant 1.250000e-01 : f32
      %294 = vector.broadcast %cst_117 : f32 to vector<9x9xf32>
      %295 = arith.mulf %293, %294 : vector<9x9xf32>
      %296 = tpu.iota {dimensions = array<i32: 0>} : vector<9x9xi32>
      %297 = tpu.iota {dimensions = array<i32: 1>} : vector<9x9xi32>
      %298 = vector.extract_strided_slice %285 {offsets = [6, 0], sizes = [1, 1], strides = [1, 1]} : vector<8x64xf32> to vector<1x1xf32>
      %c8_i32_118 = arith.constant 8 : i32
      %299 = vector.broadcast %c8_i32_118 : i32 to vector<9x9xi32>
      %300 = arith.cmpi slt, %296, %299 : vector<9x9xi32>
      %c8_i32_119 = arith.constant 8 : i32
      %301 = vector.broadcast %c8_i32_119 : i32 to vector<9x9xi32>
      %302 = arith.cmpi slt, %297, %301 : vector<9x9xi32>
      %303 = arith.andi %300, %302 : vector<9x9xi1>
      %304 = vector.shape_cast %298 : vector<1x1xf32> to vector<1x1xf32>
      %305 = vector.broadcast %304 : vector<1x1xf32> to vector<9x9xf32>
      %306 = arith.select %303, %295, %305 : vector<9x9xi1>, vector<9x9xf32>
      %307 = vector.extract_strided_slice %296 {offsets = [0, 0], sizes = [9, 1], strides = [1, 1]} : vector<9x9xi32> to vector<9x1xi32>
      %c8_i32_120 = arith.constant 8 : i32
      %308 = vector.broadcast %c8_i32_120 : i32 to vector<9x1xi32>
      %309 = arith.cmpi slt, %307, %308 : vector<9x1xi32>
      %cst_121 = arith.constant -2.77258873 : f32
      %cst_122 = arith.constant -0.693147182 : f32
      %310 = vector.broadcast %cst_121 : f32 to vector<9x1xf32>
      %311 = vector.broadcast %cst_122 : f32 to vector<9x1xf32>
      %312 = arith.select %309, %310, %311 : vector<9x1xi1>, vector<9x1xf32>
      %313 = vector.extract_strided_slice %297 {offsets = [0, 0], sizes = [1, 9], strides = [1, 1]} : vector<9x9xi32> to vector<1x9xi32>
      %c8_i32_123 = arith.constant 8 : i32
      %314 = vector.broadcast %c8_i32_123 : i32 to vector<1x9xi32>
      %315 = arith.cmpi slt, %313, %314 : vector<1x9xi32>
      %cst_124 = arith.constant -2.77258873 : f32
      %cst_125 = arith.constant -0.693147182 : f32
      %316 = vector.broadcast %cst_124 : f32 to vector<1x9xf32>
      %317 = vector.broadcast %cst_125 : f32 to vector<1x9xf32>
      %318 = arith.select %315, %316, %317 : vector<1x9xi1>, vector<1x9xf32>
      %cst_126 = arith.constant 0.000000e+00 : f32
      %319 = vector.broadcast %cst_126 : f32 to vector<9x1xf32>
      %cst_127 = arith.constant 0.000000e+00 : f32
      %320 = vector.broadcast %cst_127 : f32 to vector<1x9xf32>
      %c0_i32_128 = arith.constant 0 : i32
      %c20_i32 = arith.constant 20 : i32
      %321 = arith.addi %c0_i32_128, %c20_i32 : i32
      %c1_i32 = arith.constant 1 : i32
      %322:2 = scf.for %arg9 = %c0_i32_128 to %321 step %c1_i32 iter_args(%arg10 = %319, %arg11 = %320) -> (vector<9x1xf32>, vector<1x9xf32>)  : i32 {
        %330 = vector.broadcast %arg11 : vector<1x9xf32> to vector<9x9xf32>
        %331 = arith.addf %306, %330 : vector<9x9xf32>
        %cst_132 = arith.constant dense<0xFF800000> : vector<9xf32>
        %332 = vector.multi_reduction <maximumf>, %331, %cst_132 [1] : vector<9x9xf32> to vector<9xf32>
        %333 = vector.shape_cast %332 : vector<9xf32> to vector<9x1xf32>
        %334 = vector.broadcast %333 : vector<9x1xf32> to vector<9x9xf32>
        %335 = arith.subf %331, %334 : vector<9x9xf32>
        %336 = math.exp %335 : vector<9x9xf32>
        %cst_133 = arith.constant dense<0.000000e+00> : vector<9xf32>
        %337 = vector.multi_reduction <add>, %336, %cst_133 [1] : vector<9x9xf32> to vector<9xf32>
        %338 = vector.shape_cast %337 : vector<9xf32> to vector<9x1xf32>
        %339 = math.log %338 : vector<9x1xf32>
        %340 = arith.addf %333, %339 : vector<9x1xf32>
        %341 = arith.subf %312, %340 : vector<9x1xf32>
        %342 = vector.broadcast %341 : vector<9x1xf32> to vector<9x9xf32>
        %343 = arith.addf %306, %342 : vector<9x9xf32>
        %cst_134 = arith.constant dense<0xFF800000> : vector<9xf32>
        %344 = vector.multi_reduction <maximumf>, %343, %cst_134 [0] : vector<9x9xf32> to vector<9xf32>
        %345 = vector.shape_cast %344 : vector<9xf32> to vector<1x9xf32>
        %346 = vector.broadcast %345 : vector<1x9xf32> to vector<9x9xf32>
        %347 = arith.subf %343, %346 : vector<9x9xf32>
        %348 = math.exp %347 : vector<9x9xf32>
        %cst_135 = arith.constant dense<0.000000e+00> : vector<9xf32>
        %349 = vector.multi_reduction <add>, %348, %cst_135 [0] : vector<9x9xf32> to vector<9xf32>
        %350 = vector.shape_cast %349 : vector<9xf32> to vector<1x9xf32>
        %351 = math.log %350 : vector<1x9xf32>
        %352 = arith.addf %345, %351 : vector<1x9xf32>
        %353 = arith.subf %318, %352 : vector<1x9xf32>
        %354 = vector.broadcast %353 : vector<1x9xf32> to vector<9x9xf32>
        %355 = arith.addf %306, %354 : vector<9x9xf32>
        %cst_136 = arith.constant dense<0xFF800000> : vector<9xf32>
        %356 = vector.multi_reduction <maximumf>, %355, %cst_136 [1] : vector<9x9xf32> to vector<9xf32>
        %357 = vector.shape_cast %356 : vector<9xf32> to vector<9x1xf32>
        %358 = vector.broadcast %357 : vector<9x1xf32> to vector<9x9xf32>
        %359 = arith.subf %355, %358 : vector<9x9xf32>
        %360 = math.exp %359 : vector<9x9xf32>
        %cst_137 = arith.constant dense<0.000000e+00> : vector<9xf32>
        %361 = vector.multi_reduction <add>, %360, %cst_137 [1] : vector<9x9xf32> to vector<9xf32>
        %362 = vector.shape_cast %361 : vector<9xf32> to vector<9x1xf32>
        %363 = math.log %362 : vector<9x1xf32>
        %364 = arith.addf %357, %363 : vector<9x1xf32>
        %365 = arith.subf %312, %364 : vector<9x1xf32>
        %366 = vector.broadcast %365 : vector<9x1xf32> to vector<9x9xf32>
        %367 = arith.addf %306, %366 : vector<9x9xf32>
        %cst_138 = arith.constant dense<0xFF800000> : vector<9xf32>
        %368 = vector.multi_reduction <maximumf>, %367, %cst_138 [0] : vector<9x9xf32> to vector<9xf32>
        %369 = vector.shape_cast %368 : vector<9xf32> to vector<1x9xf32>
        %370 = vector.broadcast %369 : vector<1x9xf32> to vector<9x9xf32>
        %371 = arith.subf %367, %370 : vector<9x9xf32>
        %372 = math.exp %371 : vector<9x9xf32>
        %cst_139 = arith.constant dense<0.000000e+00> : vector<9xf32>
        %373 = vector.multi_reduction <add>, %372, %cst_139 [0] : vector<9x9xf32> to vector<9xf32>
        %374 = vector.shape_cast %373 : vector<9xf32> to vector<1x9xf32>
        %375 = math.log %374 : vector<1x9xf32>
        %376 = arith.addf %369, %375 : vector<1x9xf32>
        %377 = arith.subf %318, %376 : vector<1x9xf32>
        %378 = vector.broadcast %377 : vector<1x9xf32> to vector<9x9xf32>
        %379 = arith.addf %306, %378 : vector<9x9xf32>
        %cst_140 = arith.constant dense<0xFF800000> : vector<9xf32>
        %380 = vector.multi_reduction <maximumf>, %379, %cst_140 [1] : vector<9x9xf32> to vector<9xf32>
        %381 = vector.shape_cast %380 : vector<9xf32> to vector<9x1xf32>
        %382 = vector.broadcast %381 : vector<9x1xf32> to vector<9x9xf32>
        %383 = arith.subf %379, %382 : vector<9x9xf32>
        %384 = math.exp %383 : vector<9x9xf32>
        %cst_141 = arith.constant dense<0.000000e+00> : vector<9xf32>
        %385 = vector.multi_reduction <add>, %384, %cst_141 [1] : vector<9x9xf32> to vector<9xf32>
        %386 = vector.shape_cast %385 : vector<9xf32> to vector<9x1xf32>
        %387 = math.log %386 : vector<9x1xf32>
        %388 = arith.addf %381, %387 : vector<9x1xf32>
        %389 = arith.subf %312, %388 : vector<9x1xf32>
        %390 = vector.broadcast %389 : vector<9x1xf32> to vector<9x9xf32>
        %391 = arith.addf %306, %390 : vector<9x9xf32>
        %cst_142 = arith.constant dense<0xFF800000> : vector<9xf32>
        %392 = vector.multi_reduction <maximumf>, %391, %cst_142 [0] : vector<9x9xf32> to vector<9xf32>
        %393 = vector.shape_cast %392 : vector<9xf32> to vector<1x9xf32>
        %394 = vector.broadcast %393 : vector<1x9xf32> to vector<9x9xf32>
        %395 = arith.subf %391, %394 : vector<9x9xf32>
        %396 = math.exp %395 : vector<9x9xf32>
        %cst_143 = arith.constant dense<0.000000e+00> : vector<9xf32>
        %397 = vector.multi_reduction <add>, %396, %cst_143 [0] : vector<9x9xf32> to vector<9xf32>
        %398 = vector.shape_cast %397 : vector<9xf32> to vector<1x9xf32>
        %399 = math.log %398 : vector<1x9xf32>
        %400 = arith.addf %393, %399 : vector<1x9xf32>
        %401 = arith.subf %318, %400 : vector<1x9xf32>
        %402 = vector.broadcast %401 : vector<1x9xf32> to vector<9x9xf32>
        %403 = arith.addf %306, %402 : vector<9x9xf32>
        %cst_144 = arith.constant dense<0xFF800000> : vector<9xf32>
        %404 = vector.multi_reduction <maximumf>, %403, %cst_144 [1] : vector<9x9xf32> to vector<9xf32>
        %405 = vector.shape_cast %404 : vector<9xf32> to vector<9x1xf32>
        %406 = vector.broadcast %405 : vector<9x1xf32> to vector<9x9xf32>
        %407 = arith.subf %403, %406 : vector<9x9xf32>
        %408 = math.exp %407 : vector<9x9xf32>
        %cst_145 = arith.constant dense<0.000000e+00> : vector<9xf32>
        %409 = vector.multi_reduction <add>, %408, %cst_145 [1] : vector<9x9xf32> to vector<9xf32>
        %410 = vector.shape_cast %409 : vector<9xf32> to vector<9x1xf32>
        %411 = math.log %410 : vector<9x1xf32>
        %412 = arith.addf %405, %411 : vector<9x1xf32>
        %413 = arith.subf %312, %412 : vector<9x1xf32>
        %414 = vector.broadcast %413 : vector<9x1xf32> to vector<9x9xf32>
        %415 = arith.addf %306, %414 : vector<9x9xf32>
        %cst_146 = arith.constant dense<0xFF800000> : vector<9xf32>
        %416 = vector.multi_reduction <maximumf>, %415, %cst_146 [0] : vector<9x9xf32> to vector<9xf32>
        %417 = vector.shape_cast %416 : vector<9xf32> to vector<1x9xf32>
        %418 = vector.broadcast %417 : vector<1x9xf32> to vector<9x9xf32>
        %419 = arith.subf %415, %418 : vector<9x9xf32>
        %420 = math.exp %419 : vector<9x9xf32>
        %cst_147 = arith.constant dense<0.000000e+00> : vector<9xf32>
        %421 = vector.multi_reduction <add>, %420, %cst_147 [0] : vector<9x9xf32> to vector<9xf32>
        %422 = vector.shape_cast %421 : vector<9xf32> to vector<1x9xf32>
        %423 = math.log %422 : vector<1x9xf32>
        %424 = arith.addf %417, %423 : vector<1x9xf32>
        %425 = arith.subf %318, %424 : vector<1x9xf32>
        %426 = vector.broadcast %425 : vector<1x9xf32> to vector<9x9xf32>
        %427 = arith.addf %306, %426 : vector<9x9xf32>
        %cst_148 = arith.constant dense<0xFF800000> : vector<9xf32>
        %428 = vector.multi_reduction <maximumf>, %427, %cst_148 [1] : vector<9x9xf32> to vector<9xf32>
        %429 = vector.shape_cast %428 : vector<9xf32> to vector<9x1xf32>
        %430 = vector.broadcast %429 : vector<9x1xf32> to vector<9x9xf32>
        %431 = arith.subf %427, %430 : vector<9x9xf32>
        %432 = math.exp %431 : vector<9x9xf32>
        %cst_149 = arith.constant dense<0.000000e+00> : vector<9xf32>
        %433 = vector.multi_reduction <add>, %432, %cst_149 [1] : vector<9x9xf32> to vector<9xf32>
        %434 = vector.shape_cast %433 : vector<9xf32> to vector<9x1xf32>
        %435 = math.log %434 : vector<9x1xf32>
        %436 = arith.addf %429, %435 : vector<9x1xf32>
        %437 = arith.subf %312, %436 : vector<9x1xf32>
        %438 = vector.broadcast %437 : vector<9x1xf32> to vector<9x9xf32>
        %439 = arith.addf %306, %438 : vector<9x9xf32>
        %cst_150 = arith.constant dense<0xFF800000> : vector<9xf32>
        %440 = vector.multi_reduction <maximumf>, %439, %cst_150 [0] : vector<9x9xf32> to vector<9xf32>
        %441 = vector.shape_cast %440 : vector<9xf32> to vector<1x9xf32>
        %442 = vector.broadcast %441 : vector<1x9xf32> to vector<9x9xf32>
        %443 = arith.subf %439, %442 : vector<9x9xf32>
        %444 = math.exp %443 : vector<9x9xf32>
        %cst_151 = arith.constant dense<0.000000e+00> : vector<9xf32>
        %445 = vector.multi_reduction <add>, %444, %cst_151 [0] : vector<9x9xf32> to vector<9xf32>
        %446 = vector.shape_cast %445 : vector<9xf32> to vector<1x9xf32>
        %447 = math.log %446 : vector<1x9xf32>
        %448 = arith.addf %441, %447 : vector<1x9xf32>
        %449 = arith.subf %318, %448 : vector<1x9xf32>
        scf.yield %437, %449 : vector<9x1xf32>, vector<1x9xf32>
      }
      %323 = vector.broadcast %322#0 : vector<9x1xf32> to vector<9x9xf32>
      %324 = arith.addf %306, %323 : vector<9x9xf32>
      %325 = vector.broadcast %322#1 : vector<1x9xf32> to vector<9x9xf32>
      %326 = arith.addf %324, %325 : vector<9x9xf32>
      %cst_129 = arith.constant -2.77258873 : f32
      %327 = vector.broadcast %cst_129 : f32 to vector<9x9xf32>
      %328 = arith.subf %326, %327 : vector<9x9xf32>
      %c0_130 = arith.constant 0 : index
      %c0_131 = arith.constant 0 : index
      %329 = vector.load %arg7[%c0_130, %c0_131] : memref<9x9xf32, #tpu.memory_space<vmem>>, vector<9x9xf32>
      tpu.vector_store %arg7[%c0_130, %c0_131], %328 {strides = array<i32>} : memref<9x9xf32, #tpu.memory_space<vmem>>, vector<9x9xf32>,
    } else {
    }
    return
  }
  func.func @transform_0(%arg0: i32) -> (i32, i32) {
    %c0_i32 = arith.constant 0 : i32
    %c0_i32_0 = arith.constant 0 : i32
    %c0_i32_1 = arith.constant 0 : i32
    return %c0_i32, %c0_i32_0 : i32, i32
  }
  func.func @transform_1(%arg0: i32) -> (i32, i32) {
    %c0_i32 = arith.constant 0 : i32
    %c0_i32_0 = arith.constant 0 : i32
    %c0_i32_1 = arith.constant 0 : i32
    return %c0_i32, %c0_i32_0 : i32, i32
  }
  func.func @transform_2(%arg0: i32) -> (i32, i32) {
    %c0_i32 = arith.constant 0 : i32
    %c0_i32_0 = arith.constant 0 : i32
    %c0_i32_1 = arith.constant 0 : i32
    return %c0_i32, %c0_i32_0 : i32, i32
  }
  func.func @transform_3(%arg0: i32) -> (i32, i32, i32) {
    %c0_i32 = arith.constant 0 : i32
    %c0_i32_0 = arith.constant 0 : i32
    %c0_i32_1 = arith.constant 0 : i32
    return %arg0, %c0_i32, %c0_i32_0 : i32, i32, i32
  }
  func.func @transform_4(%arg0: i32) -> (i32, i32, i32) {
    %c0_i32 = arith.constant 0 : i32
    %c0_i32_0 = arith.constant 0 : i32
    %c0_i32_1 = arith.constant 0 : i32
    return %arg0, %c0_i32, %c0_i32_0 : i32, i32, i32
  }
  func.func @transform_5(%arg0: i32) -> (i32, i32) {
    %c0_i32 = arith.constant 0 : i32
    %c0_i32_0 = arith.constant 0 : i32
    %c0_i32_1 = arith.constant 0 : i32
    return %c0_i32, %c0_i32_0 : i32, i32
  }
  func.func @transform_6(%arg0: i32) -> (i32, i32) {
    %c0_i32 = arith.constant 0 : i32
    %c0_i32_0 = arith.constant 0 : i32
    %c0_i32_1 = arith.constant 0 : i32
    return %c0_i32, %c0_i32_0 : i32, i32
  }
}

module attributes {stable_mosaic.version = 11 : i64} {
  func.func @fuse_kernel(%arg0: i32, %arg1: memref<8x64xf32, #tpu.memory_space<vmem>>, %arg2: memref<8x68xf32, #tpu.memory_space<vmem>>, %arg3: memref<8x4xf32, #tpu.memory_space<vmem>>, %arg4: memref<8x4xf32, #tpu.memory_space<vmem>>, %arg5: memref<3x68x64xf32, #tpu.memory_space<vmem>>, %arg6: memref<3x64x64xf32, #tpu.memory_space<vmem>>, %arg7: memref<8x64xf32, #tpu.memory_space<vmem>>, %arg8: memref<64x1xf32, #tpu.memory_space<vmem>>, %arg9: memref<1x1xf32, #tpu.memory_space<vmem>>, %arg10: memref<8x64xf32, #tpu.memory_space<vmem>>, %arg11: memref<8x4xf32, #tpu.memory_space<vmem>>) attributes {dimension_semantics = [#tpu.dimension_semantics<arbitrary>], iteration_bounds = array<i64: 1>, scalar_prefetch = 0 : i64, scratch_operands = 0 : i64, tpu.core_type = #tpu.core_type<tc>, window_params = [{pipeline_mode = #tpu.pipeline_mode<synchronous>, transform_indices = @transform_0, window_bounds = array<i64: 8, 64>}, {pipeline_mode = #tpu.pipeline_mode<synchronous>, transform_indices = @transform_1, window_bounds = array<i64: 8, 68>}, {pipeline_mode = #tpu.pipeline_mode<synchronous>, transform_indices = @transform_2, window_bounds = array<i64: 8, 4>}, {pipeline_mode = #tpu.pipeline_mode<synchronous>, transform_indices = @transform_3, window_bounds = array<i64: 8, 4>}, {pipeline_mode = #tpu.pipeline_mode<synchronous>, transform_indices = @transform_4, window_bounds = array<i64: 3, 68, 64>}, {pipeline_mode = #tpu.pipeline_mode<synchronous>, transform_indices = @transform_5, window_bounds = array<i64: 3, 64, 64>}, {pipeline_mode = #tpu.pipeline_mode<synchronous>, transform_indices = @transform_6, window_bounds = array<i64: 8, 64>}, {pipeline_mode = #tpu.pipeline_mode<synchronous>, transform_indices = @transform_7, window_bounds = array<i64: 64, 1>}, {pipeline_mode = #tpu.pipeline_mode<synchronous>, transform_indices = @transform_8, window_bounds = array<i64: 1, 1>}, {pipeline_mode = #tpu.pipeline_mode<synchronous>, transform_indices = @transform_9, window_bounds = array<i64: 8, 64>}, {pipeline_mode = #tpu.pipeline_mode<synchronous>, transform_indices = @transform_10, window_bounds = array<i64: 8, 4>}]} {
    %c0 = arith.constant 0 : index
    %c0_0 = arith.constant 0 : index
    %0 = vector.load %arg1[%c0, %c0_0] : memref<8x64xf32, #tpu.memory_space<vmem>>, vector<8x64xf32>
    %c0_1 = arith.constant 0 : index
    %c0_2 = arith.constant 0 : index
    %1 = vector.load %arg2[%c0_1, %c0_2] : memref<8x68xf32, #tpu.memory_space<vmem>>, vector<8x68xf32>
    %c0_3 = arith.constant 0 : index
    %c0_4 = arith.constant 0 : index
    %2 = vector.load %arg7[%c0_3, %c0_4] : memref<8x64xf32, #tpu.memory_space<vmem>>, vector<8x64xf32>
    %c0_5 = arith.constant 0 : index
    %c0_6 = arith.constant 0 : index
    %c0_7 = arith.constant 0 : index
    %3 = vector.load %arg5[%c0_5, %c0_6, %c0_7] : memref<3x68x64xf32, #tpu.memory_space<vmem>>, vector<1x68x64xf32>
    %4 = vector.shape_cast %3 : vector<1x68x64xf32> to vector<68x64xf32>
    %cst = arith.constant dense<0.000000e+00> : vector<8x64xf32>
    %5 = tpu.matmul %1, %4, %cst {dimension_numbers = #tpu.dot_dimension_numbers<[1], [0], [0], [1], [0, 0, 1, 1], [], []>} : vector<8x68xf32>, vector<68x64xf32>, vector<8x64xf32> -> vector<8x64xf32>
    %6 = vector.extract_strided_slice %2 {offsets = [0, 0], sizes = [1, 64], strides = [1, 1]} : vector<8x64xf32> to vector<1x64xf32>
    %7 = vector.broadcast %6 : vector<1x64xf32> to vector<8x64xf32>
    %8 = arith.addf %5, %7 : vector<8x64xf32>
    %c0_8 = arith.constant 0 : index
    %c0_9 = arith.constant 0 : index
    %c0_10 = arith.constant 0 : index
    %9 = vector.load %arg6[%c0_8, %c0_9, %c0_10] : memref<3x64x64xf32, #tpu.memory_space<vmem>>, vector<1x64x64xf32>
    %10 = vector.shape_cast %9 : vector<1x64x64xf32> to vector<64x64xf32>
    %cst_11 = arith.constant dense<0.000000e+00> : vector<8x64xf32>
    %11 = tpu.matmul %0, %10, %cst_11 {dimension_numbers = #tpu.dot_dimension_numbers<[1], [0], [0], [1], [0, 0, 1, 1], [], []>} : vector<8x64xf32>, vector<64x64xf32>, vector<8x64xf32> -> vector<8x64xf32>
    %12 = vector.extract_strided_slice %2 {offsets = [3, 0], sizes = [1, 64], strides = [1, 1]} : vector<8x64xf32> to vector<1x64xf32>
    %13 = vector.broadcast %12 : vector<1x64xf32> to vector<8x64xf32>
    %14 = arith.addf %11, %13 : vector<8x64xf32>
    %c1 = arith.constant 1 : index
    %c0_12 = arith.constant 0 : index
    %c0_13 = arith.constant 0 : index
    %15 = vector.load %arg5[%c1, %c0_12, %c0_13] : memref<3x68x64xf32, #tpu.memory_space<vmem>>, vector<1x68x64xf32>
    %16 = vector.shape_cast %15 : vector<1x68x64xf32> to vector<68x64xf32>
    %cst_14 = arith.constant dense<0.000000e+00> : vector<8x64xf32>
    %17 = tpu.matmul %1, %16, %cst_14 {dimension_numbers = #tpu.dot_dimension_numbers<[1], [0], [0], [1], [0, 0, 1, 1], [], []>} : vector<8x68xf32>, vector<68x64xf32>, vector<8x64xf32> -> vector<8x64xf32>
    %18 = vector.extract_strided_slice %2 {offsets = [1, 0], sizes = [1, 64], strides = [1, 1]} : vector<8x64xf32> to vector<1x64xf32>
    %19 = vector.broadcast %18 : vector<1x64xf32> to vector<8x64xf32>
    %20 = arith.addf %17, %19 : vector<8x64xf32>
    %c1_15 = arith.constant 1 : index
    %c0_16 = arith.constant 0 : index
    %c0_17 = arith.constant 0 : index
    %21 = vector.load %arg6[%c1_15, %c0_16, %c0_17] : memref<3x64x64xf32, #tpu.memory_space<vmem>>, vector<1x64x64xf32>
    %22 = vector.shape_cast %21 : vector<1x64x64xf32> to vector<64x64xf32>
    %cst_18 = arith.constant dense<0.000000e+00> : vector<8x64xf32>
    %23 = tpu.matmul %0, %22, %cst_18 {dimension_numbers = #tpu.dot_dimension_numbers<[1], [0], [0], [1], [0, 0, 1, 1], [], []>} : vector<8x64xf32>, vector<64x64xf32>, vector<8x64xf32> -> vector<8x64xf32>
    %24 = vector.extract_strided_slice %2 {offsets = [4, 0], sizes = [1, 64], strides = [1, 1]} : vector<8x64xf32> to vector<1x64xf32>
    %25 = vector.broadcast %24 : vector<1x64xf32> to vector<8x64xf32>
    %26 = arith.addf %23, %25 : vector<8x64xf32>
    %c2 = arith.constant 2 : index
    %c0_19 = arith.constant 0 : index
    %c0_20 = arith.constant 0 : index
    %27 = vector.load %arg5[%c2, %c0_19, %c0_20] : memref<3x68x64xf32, #tpu.memory_space<vmem>>, vector<1x68x64xf32>
    %28 = vector.shape_cast %27 : vector<1x68x64xf32> to vector<68x64xf32>
    %cst_21 = arith.constant dense<0.000000e+00> : vector<8x64xf32>
    %29 = tpu.matmul %1, %28, %cst_21 {dimension_numbers = #tpu.dot_dimension_numbers<[1], [0], [0], [1], [0, 0, 1, 1], [], []>} : vector<8x68xf32>, vector<68x64xf32>, vector<8x64xf32> -> vector<8x64xf32>
    %30 = vector.extract_strided_slice %2 {offsets = [2, 0], sizes = [1, 64], strides = [1, 1]} : vector<8x64xf32> to vector<1x64xf32>
    %31 = vector.broadcast %30 : vector<1x64xf32> to vector<8x64xf32>
    %32 = arith.addf %29, %31 : vector<8x64xf32>
    %c2_22 = arith.constant 2 : index
    %c0_23 = arith.constant 0 : index
    %c0_24 = arith.constant 0 : index
    %33 = vector.load %arg6[%c2_22, %c0_23, %c0_24] : memref<3x64x64xf32, #tpu.memory_space<vmem>>, vector<1x64x64xf32>
    %34 = vector.shape_cast %33 : vector<1x64x64xf32> to vector<64x64xf32>
    %cst_25 = arith.constant dense<0.000000e+00> : vector<8x64xf32>
    %35 = tpu.matmul %0, %34, %cst_25 {dimension_numbers = #tpu.dot_dimension_numbers<[1], [0], [0], [1], [0, 0, 1, 1], [], []>} : vector<8x64xf32>, vector<64x64xf32>, vector<8x64xf32> -> vector<8x64xf32>
    %36 = vector.extract_strided_slice %2 {offsets = [5, 0], sizes = [1, 64], strides = [1, 1]} : vector<8x64xf32> to vector<1x64xf32>
    %37 = vector.broadcast %36 : vector<1x64xf32> to vector<8x64xf32>
    %38 = arith.addf %35, %37 : vector<8x64xf32>
    %39 = arith.addf %8, %14 : vector<8x64xf32>
    %40 = arith.negf %39 : vector<8x64xf32>
    %41 = math.exp %40 : vector<8x64xf32>
    %cst_26 = arith.constant 1.000000e+00 : f32
    %42 = vector.broadcast %cst_26 : f32 to vector<8x64xf32>
    %43 = arith.addf %42, %41 : vector<8x64xf32>
    %44 = arith.divf %42, %43 : vector<8x64xf32>
    %45 = arith.addf %20, %26 : vector<8x64xf32>
    %46 = arith.negf %45 : vector<8x64xf32>
    %47 = math.exp %46 : vector<8x64xf32>
    %cst_27 = arith.constant 1.000000e+00 : f32
    %48 = vector.broadcast %cst_27 : f32 to vector<8x64xf32>
    %49 = arith.addf %48, %47 : vector<8x64xf32>
    %50 = arith.divf %48, %49 : vector<8x64xf32>
    %51 = arith.mulf %44, %38 : vector<8x64xf32>
    %52 = arith.addf %32, %51 : vector<8x64xf32>
    %53 = math.tanh %52 : vector<8x64xf32>
    %cst_28 = arith.constant 1.000000e+00 : f32
    %54 = vector.broadcast %cst_28 : f32 to vector<8x64xf32>
    %55 = arith.subf %54, %50 : vector<8x64xf32>
    %56 = arith.mulf %55, %53 : vector<8x64xf32>
    %57 = arith.mulf %50, %0 : vector<8x64xf32>
    %58 = arith.addf %56, %57 : vector<8x64xf32>
    %c0_29 = arith.constant 0 : index
    %c0_30 = arith.constant 0 : index
    %59 = vector.load %arg8[%c0_29, %c0_30] : memref<64x1xf32, #tpu.memory_space<vmem>>, vector<64x1xf32>
    %cst_31 = arith.constant dense<0.000000e+00> : vector<8x1xf32>
    %60 = tpu.matmul %58, %59, %cst_31 {dimension_numbers = #tpu.dot_dimension_numbers<[1], [0], [0], [1], [0, 0, 1, 1], [], []>} : vector<8x64xf32>, vector<64x1xf32>, vector<8x1xf32> -> vector<8x1xf32>
    %c0_32 = arith.constant 0 : index
    %c0_33 = arith.constant 0 : index
    %61 = vector.load %arg9[%c0_32, %c0_33] : memref<1x1xf32, #tpu.memory_space<vmem>>, vector<1x1xf32>
    %62 = vector.broadcast %61 : vector<1x1xf32> to vector<8x1xf32>
    %63 = arith.addf %60, %62 : vector<8x1xf32>
    %64 = arith.negf %63 : vector<8x1xf32>
    %65 = math.exp %64 : vector<8x1xf32>
    %cst_34 = arith.constant 1.000000e+00 : f32
    %66 = vector.broadcast %cst_34 : f32 to vector<8x1xf32>
    %67 = arith.addf %66, %65 : vector<8x1xf32>
    %68 = arith.divf %66, %67 : vector<8x1xf32>
    %c0_35 = arith.constant 0 : index
    %c0_36 = arith.constant 0 : index
    %69 = vector.load %arg4[%c0_35, %c0_36] : memref<8x4xf32, #tpu.memory_space<vmem>>, vector<8x4xf32>
    %c0_37 = arith.constant 0 : index
    %c0_38 = arith.constant 0 : index
    %70 = vector.load %arg3[%c0_37, %c0_38] : memref<8x4xf32, #tpu.memory_space<vmem>>, vector<8x4xf32>
    %cst_39 = arith.constant 0.000000e+00 : f32
    %71 = vector.broadcast %cst_39 : f32 to vector<8x4xf32>
    %72 = arith.cmpf one, %69, %71 : vector<8x4xf32>
    %cst_40 = arith.constant 1.000000e+00 : f32
    %cst_41 = arith.constant 0.000000e+00 : f32
    %73 = vector.broadcast %cst_40 : f32 to vector<8x4xf32>
    %74 = vector.broadcast %cst_41 : f32 to vector<8x4xf32>
    %75 = arith.select %72, %73, %74 : vector<8x4xi1>, vector<8x4xf32>
    %cst_42 = arith.constant dense<0xFF800000> : vector<8xf32>
    %76 = vector.multi_reduction <maximumf>, %75, %cst_42 [1] : vector<8x4xf32> to vector<8xf32>
    %cst_43 = arith.constant 0.000000e+00 : f32
    %77 = vector.broadcast %cst_43 : f32 to vector<8xf32>
    %78 = arith.cmpf ogt, %76, %77 : vector<8xf32>
    %79 = vector.shape_cast %78 : vector<8xi1> to vector<8x1xi1>
    %80 = vector.broadcast %68 : vector<8x1xf32> to vector<8x4xf32>
    %81 = arith.mulf %80, %69 : vector<8x4xf32>
    %82 = arith.addf %70, %81 : vector<8x4xf32>
    %cst_44 = arith.constant 1.000000e+00 : f32
    %83 = vector.broadcast %cst_44 : f32 to vector<8x1xf32>
    %84 = arith.addf %83, %68 : vector<8x1xf32>
    %85 = vector.broadcast %84 : vector<8x1xf32> to vector<8x4xf32>
    %86 = arith.divf %82, %85 : vector<8x4xf32>
    %87 = vector.shape_cast %79 : vector<8x1xi1> to vector<8x1xi1>
    %88 = vector.broadcast %87 : vector<8x1xi1> to vector<8x4xi1>
    %89 = arith.select %88, %86, %70 : vector<8x4xi1>, vector<8x4xf32>
    %c0_45 = arith.constant 0 : index
    %c0_46 = arith.constant 0 : index
    %90 = vector.load %arg11[%c0_45, %c0_46] : memref<8x4xf32, #tpu.memory_space<vmem>>, vector<8x4xf32>
    tpu.vector_store %arg11[%c0_45, %c0_46], %89 {strides = array<i32>} : memref<8x4xf32, #tpu.memory_space<vmem>>, vector<8x4xf32>,
    %c0_47 = arith.constant 0 : index
    %c0_48 = arith.constant 0 : index
    %91 = vector.load %arg10[%c0_47, %c0_48] : memref<8x64xf32, #tpu.memory_space<vmem>>, vector<8x64xf32>
    tpu.vector_store %arg10[%c0_47, %c0_48], %58 {strides = array<i32>} : memref<8x64xf32, #tpu.memory_space<vmem>>, vector<8x64xf32>,
    return
  }
  func.func @transform_0(%arg0: i32) -> (i32, i32) {
    %c0_i32 = arith.constant 0 : i32
    %c0_i32_0 = arith.constant 0 : i32
    %c0_i32_1 = arith.constant 0 : i32
    return %c0_i32, %c0_i32_0 : i32, i32
  }
  func.func @transform_1(%arg0: i32) -> (i32, i32) {
    %c0_i32 = arith.constant 0 : i32
    %c0_i32_0 = arith.constant 0 : i32
    %c0_i32_1 = arith.constant 0 : i32
    return %c0_i32, %c0_i32_0 : i32, i32
  }
  func.func @transform_2(%arg0: i32) -> (i32, i32) {
    %c0_i32 = arith.constant 0 : i32
    %c0_i32_0 = arith.constant 0 : i32
    %c0_i32_1 = arith.constant 0 : i32
    return %c0_i32, %c0_i32_0 : i32, i32
  }
  func.func @transform_3(%arg0: i32) -> (i32, i32) {
    %c0_i32 = arith.constant 0 : i32
    %c0_i32_0 = arith.constant 0 : i32
    %c0_i32_1 = arith.constant 0 : i32
    return %c0_i32, %c0_i32_0 : i32, i32
  }
  func.func @transform_4(%arg0: i32) -> (i32, i32, i32) {
    %c0_i32 = arith.constant 0 : i32
    %c0_i32_0 = arith.constant 0 : i32
    %c0_i32_1 = arith.constant 0 : i32
    %c0_i32_2 = arith.constant 0 : i32
    return %c0_i32, %c0_i32_0, %c0_i32_1 : i32, i32, i32
  }
  func.func @transform_5(%arg0: i32) -> (i32, i32, i32) {
    %c0_i32 = arith.constant 0 : i32
    %c0_i32_0 = arith.constant 0 : i32
    %c0_i32_1 = arith.constant 0 : i32
    %c0_i32_2 = arith.constant 0 : i32
    return %c0_i32, %c0_i32_0, %c0_i32_1 : i32, i32, i32
  }
  func.func @transform_6(%arg0: i32) -> (i32, i32) {
    %c0_i32 = arith.constant 0 : i32
    %c0_i32_0 = arith.constant 0 : i32
    %c0_i32_1 = arith.constant 0 : i32
    return %c0_i32, %c0_i32_0 : i32, i32
  }
  func.func @transform_7(%arg0: i32) -> (i32, i32) {
    %c0_i32 = arith.constant 0 : i32
    %c0_i32_0 = arith.constant 0 : i32
    %c0_i32_1 = arith.constant 0 : i32
    return %c0_i32, %c0_i32_0 : i32, i32
  }
  func.func @transform_8(%arg0: i32) -> (i32, i32) {
    %c0_i32 = arith.constant 0 : i32
    %c0_i32_0 = arith.constant 0 : i32
    %c0_i32_1 = arith.constant 0 : i32
    return %c0_i32, %c0_i32_0 : i32, i32
  }
  func.func @transform_9(%arg0: i32) -> (i32, i32) {
    %c0_i32 = arith.constant 0 : i32
    %c0_i32_0 = arith.constant 0 : i32
    %c0_i32_1 = arith.constant 0 : i32
    return %c0_i32, %c0_i32_0 : i32, i32
  }
  func.func @transform_10(%arg0: i32) -> (i32, i32) {
    %c0_i32 = arith.constant 0 : i32
    %c0_i32_0 = arith.constant 0 : i32
    %c0_i32_1 = arith.constant 0 : i32
    return %c0_i32, %c0_i32_0 : i32, i32
  }
}

</mosaic_0001>

<llo_original>
// kernel: track_fuse_forward.3
$region0: #{track_fuse_forward.3}
  #allocation0 [shape = 'u32[]', space=smem, size = 0x4, offset = 0x4, fixed_abs, tag = 'smem constant byte address 0x4 - core index']
  #allocation1 [shape = 'u32[72,128]{1,0:T(1,128)}', space=vmem, size = 0x9000, scoped, tag = 'internal scratch']
  #allocation2 [shape = 'f32[1,1]{1,0:T(1,128)S(1)}', space=vmem, size = 0x200, scoped, tag = 'scoped memory for track_fuse_forward.3']
  %s0 = inlined_call_operand.vmem [shape: f32[8,64], index: 0, kind: input, shape index: {}]
  %s1 = inlined_call_operand.vmem [shape: f32[8,68], index: 1, kind: input, shape index: {}]
  %s2 = inlined_call_operand.vmem [shape: f32[8,4], index: 2, kind: input, shape index: {}]
  %s3 = inlined_call_operand.vmem [shape: f32[8,4], index: 3, kind: input, shape index: {}]
  %s4 = inlined_call_operand.vmem [shape: f32[3,68,64], index: 4, kind: input, shape index: {}]
  %s5 = inlined_call_operand.vmem [shape: f32[3,64,64], index: 5, kind: input, shape index: {}]
  %s6 = inlined_call_operand.vmem [shape: f32[8,64], index: 6, kind: input, shape index: {}]
  %s7 = inlined_call_operand.vmem [shape: f32[64,1], index: 7, kind: input, shape index: {}]
  %s8 = inlined_call_operand.<no memory space> [shape: f32[1,1], index: 8, kind: input, shape index: {}]
  %s9 = inlined_call_operand.vmem [shape: f32[8,64], index: 9, kind: output, shape index: {0}]
  %s10 = inlined_call_operand.vmem [shape: f32[8,4], index: 10, kind: output, shape index: {1}]
  %11 = xla_tuple %s9, %s10
  %s12 = sld [smem:[#allocation0]]
  $region54: #{track_fuse_forward.3} parent=0
    _
  %s14 = ssub.s32 1, %s12
  %s15 = scalar_select 0, %s14, %s12
  %v16 = vstv %s8
  %17 = vst [vmem:[#allocation2] sm:$0x1] %v16
  // Predicated region
  $region2: #{track_fuse_forward.3} parent=0 // pred_check
    _
  $region3: #{track_fuse_forward.3} parent=0 // pred_check_branch
    %19 = sbr.rel (0) target = $region5
  $region4: #{track_fuse_forward.3} parent=0 // pred_region
    _
  $region5: #{track_fuse_forward.3} parent=0 // pred_fallthru
    _
  // Predicated region
  $region6: #{track_fuse_forward.3} parent=0 // pred_check
    _
  $region7: #{track_fuse_forward.3} parent=0 // pred_check_branch
    %21 = sbr.rel (0) target = $region9
  $region8: #{track_fuse_forward.3} parent=0 // pred_region
    _
  $region9: #{track_fuse_forward.3} parent=0 // pred_fallthru
    _
  // Predicated region
  $region10: #{track_fuse_forward.3} parent=0 // pred_check
    _
  $region11: #{track_fuse_forward.3} parent=0 // pred_check_branch
    %23 = sbr.rel (0) target = $region13
  $region12: #{track_fuse_forward.3} parent=0 // pred_region
    _
  $region13: #{track_fuse_forward.3} parent=0 // pred_fallthru
    _
  // Predicated region
  $region14: #{track_fuse_forward.3} parent=0 // pred_check
    _
  $region15: #{track_fuse_forward.3} parent=0 // pred_check_branch
    %25 = sbr.rel (0) target = $region17
  $region16: #{track_fuse_forward.3} parent=0 // pred_region
    _
  $region17: #{track_fuse_forward.3} parent=0 // pred_fallthru
    _
  // Predicated region
  $region18: #{track_fuse_forward.3} parent=0 // pred_check
    _
  $region19: #{track_fuse_forward.3} parent=0 // pred_check_branch
    %27 = sbr.rel (0) target = $region21
  $region20: #{track_fuse_forward.3} parent=0 // pred_region
    _
  $region21: #{track_fuse_forward.3} parent=0 // pred_fallthru
    _
  // Predicated region
  $region22: #{track_fuse_forward.3} parent=0 // pred_check
    _
  $region23: #{track_fuse_forward.3} parent=0 // pred_check_branch
    %29 = sbr.rel (0) target = $region25
  $region24: #{track_fuse_forward.3} parent=0 // pred_region
    _
  $region25: #{track_fuse_forward.3} parent=0 // pred_fallthru
    _
  // Predicated region
  $region26: #{track_fuse_forward.3} parent=0 // pred_check
    _
  $region27: #{track_fuse_forward.3} parent=0 // pred_check_branch
    %31 = sbr.rel (0) target = $region29
  $region28: #{track_fuse_forward.3} parent=0 // pred_region
    _
  $region29: #{track_fuse_forward.3} parent=0 // pred_fallthru
    _
  // Predicated region
  $region30: #{track_fuse_forward.3} parent=0 // pred_check
    _
  $region31: #{track_fuse_forward.3} parent=0 // pred_check_branch
    %33 = sbr.rel (0) target = $region33
  $region32: #{track_fuse_forward.3} parent=0 // pred_region
    _
  $region33: #{track_fuse_forward.3} parent=0 // pred_fallthru
    _
  // Predicated region
  $region34: #{track_fuse_forward.3} parent=0 // pred_check
    _
  $region35: #{track_fuse_forward.3} parent=0 // pred_check_branch
    %35 = sbr.rel (0) target = $region37
  $region36: #{track_fuse_forward.3} parent=0 // pred_region
    _
  $region37: #{track_fuse_forward.3} parent=0 // pred_fallthru
    _
  %v36 = vld [vmem:[%s0] sm:$0xff]
  %v37 = vld [vmem:[%s1] sm:$0xff]
  %v38 = vld [vmem:[%s6] sm:$0xff]
  %v39 = vld [vmem:[%s4] sm:$0xff]
  %v40 = vld [vmem:[%s4 + $0x8] sm:$0xff]
  %v41 = vld [vmem:[%s4 + $0x10] sm:$0xff]
  %v42 = vld [vmem:[%s4 + $0x18] sm:$0xff]
  %v43 = vld [vmem:[%s4 + $0x20] sm:$0xff]
  %v44 = vld [vmem:[%s4 + $0x28] sm:$0xff]
  %v45 = vld [vmem:[%s4 + $0x30] sm:$0xff]
  %v46 = vld [vmem:[%s4 + $0x38] sm:$0xff]
  %v47 = vld [vmem:[%s4 + $0x40] sm:$0xf]
  %v48 = vperm.slane %v38, 0
  %vm49 = vcmask 556032
  %v51 = vsel %vm49, %v37, 0
  %vm53 = vcmask 1043456
  %v55 = vsel %vm53, %v47, 0
  %57 = vmatpush.msra.mxu0 0.0
  %58 = vmatpush.msra.mxu0 0.0
  %59 = vmatpush.msra.mxu0 0.0
  %60 = vmatpush.msra.mxu0 0.0
  %61 = vmatpush.msra.mxu0 0.0
  %62 = vmatpush.msra.mxu0 0.0
  %63 = vmatpush.msra.mxu0 0.0
  %64 = vmatpush.msra.mxu0 %v55
  %65 = vmatpush.msra.mxu0 %v46
  %66 = vmatpush.msra.mxu0 %v45
  %67 = vmatpush.msra.mxu0 %v44
  %68 = vmatpush.msra.mxu0 %v43
  %69 = vmatpush.msra.mxu0 %v42
  %70 = vmatpush.msra.mxu0 %v41
  %71 = vmatpush.msra.mxu0 %v40
  %72 = vmatpush.msra.mxu0 %v39
  %73 = vmatmul.f32.gmra.mxu0 %v51
  %v74 = vpop.f32.mrf.mxu0
  %v75 = vadd.f32 %v48, %v74
  %76 = vdwg.mxu0
  %v77 = vld [vmem:[%s5] sm:$0xff]
  %v78 = vld [vmem:[%s5 + $0x8] sm:$0xff]
  %v79 = vld [vmem:[%s5 + $0x10] sm:$0xff]
  %v80 = vld [vmem:[%s5 + $0x18] sm:$0xff]
  %v81 = vld [vmem:[%s5 + $0x20] sm:$0xff]
  %v82 = vld [vmem:[%s5 + $0x28] sm:$0xff]
  %v83 = vld [vmem:[%s5 + $0x30] sm:$0xff]
  %v84 = vld [vmem:[%s5 + $0x38] sm:$0xff]
  %v85 = vperm.slane %v38, 3
  %vm86 = vcmask 523264
  %v88 = vsel %vm86, %v36, 0
  %90 = vmatpush.msra.mxu0 0.0
  %91 = vmatpush.msra.mxu0 0.0
  %92 = vmatpush.msra.mxu0 0.0
  %93 = vmatpush.msra.mxu0 0.0
  %94 = vmatpush.msra.mxu0 0.0
  %95 = vmatpush.msra.mxu0 0.0
  %96 = vmatpush.msra.mxu0 0.0
  %97 = vmatpush.msra.mxu0 0.0
  %98 = vmatpush.msra.mxu0 %v84
  %99 = vmatpush.msra.mxu0 %v83
  %100 = vmatpush.msra.mxu0 %v82
  %101 = vmatpush.msra.mxu0 %v81
  %102 = vmatpush.msra.mxu0 %v80
  %103 = vmatpush.msra.mxu0 %v79
  %104 = vmatpush.msra.mxu0 %v78
  %105 = vmatpush.msra.mxu0 %v77
  %106 = vmatmul.f32.gmra.mxu0 %v88
  %v107 = vpop.f32.mrf.mxu0
  %v108 = vadd.f32 %v85, %v107
  %109 = vdwg.mxu0
  %s110 = scalar_lea.vmem %s4, 72
  %v111 = vld [vmem:[%s110] sm:$0xff]
  %v112 = vld [vmem:[%s110 + $0x8] sm:$0xff]
  %v113 = vld [vmem:[%s110 + $0x10] sm:$0xff]
  %v114 = vld [vmem:[%s110 + $0x18] sm:$0xff]
  %v115 = vld [vmem:[%s110 + $0x20] sm:$0xff]
  %v116 = vld [vmem:[%s110 + $0x28] sm:$0xff]
  %v117 = vld [vmem:[%s110 + $0x30] sm:$0xff]
  %v118 = vld [vmem:[%s110 + $0x38] sm:$0xff]
  %v119 = vld [vmem:[%s110 + $0x40] sm:$0xf]
  %v120 = vperm.slane %v38, 1
  %v122 = vsel %vm53, %v119, 0
  %124 = vmatpush.msra.mxu0 0.0
  %125 = vmatpush.msra.mxu0 0.0
  %126 = vmatpush.msra.mxu0 0.0
  %127 = vmatpush.msra.mxu0 0.0
  %128 = vmatpush.msra.mxu0 0.0
  %129 = vmatpush.msra.mxu0 0.0
  %130 = vmatpush.msra.mxu0 0.0
  %131 = vmatpush.msra.mxu0 %v122
  %132 = vmatpush.msra.mxu0 %v118
  %133 = vmatpush.msra.mxu0 %v117
  %134 = vmatpush.msra.mxu0 %v116
  %135 = vmatpush.msra.mxu0 %v115
  %136 = vmatpush.msra.mxu0 %v114
  %137 = vmatpush.msra.mxu0 %v113
  %138 = vmatpush.msra.mxu0 %v112
  %139 = vmatpush.msra.mxu0 %v111
  %140 = vmatmul.f32.gmra.mxu0 %v51
  %v141 = vpop.f32.mrf.mxu0
  %v142 = vadd.f32 %v120, %v141
  %143 = vdwg.mxu0
  %s144 = scalar_lea.vmem %s5, 64
  %v145 = vld [vmem:[%s144] sm:$0xff]
  %v146 = vld [vmem:[%s144 + $0x8] sm:$0xff]
  %v147 = vld [vmem:[%s144 + $0x10] sm:$0xff]
  %v148 = vld [vmem:[%s144 + $0x18] sm:$0xff]
  %v149 = vld [vmem:[%s144 + $0x20] sm:$0xff]
  %v150 = vld [vmem:[%s144 + $0x28] sm:$0xff]
  %v151 = vld [vmem:[%s144 + $0x30] sm:$0xff]
  %v152 = vld [vmem:[%s144 + $0x38] sm:$0xff]
  %v153 = vperm.slane %v38, 4
  %154 = vmatpush.msra.mxu0 0.0
  %155 = vmatpush.msra.mxu0 0.0
  %156 = vmatpush.msra.mxu0 0.0
  %157 = vmatpush.msra.mxu0 0.0
  %158 = vmatpush.msra.mxu0 0.0
  %159 = vmatpush.msra.mxu0 0.0
  %160 = vmatpush.msra.mxu0 0.0
  %161 = vmatpush.msra.mxu0 0.0
  %162 = vmatpush.msra.mxu0 %v152
  %163 = vmatpush.msra.mxu0 %v151
  %164 = vmatpush.msra.mxu0 %v150
  %165 = vmatpush.msra.mxu0 %v149
  %166 = vmatpush.msra.mxu0 %v148
  %167 = vmatpush.msra.mxu0 %v147
  %168 = vmatpush.msra.mxu0 %v146
  %169 = vmatpush.msra.mxu0 %v145
  %170 = vmatmul.f32.gmra.mxu0 %v88
  %v171 = vpop.f32.mrf.mxu0
  %v172 = vadd.f32 %v153, %v171
  %173 = vdwg.mxu0
  %s174 = scalar_lea.vmem %s4, 144
  %v175 = vld [vmem:[%s174] sm:$0xff]
  %v176 = vld [vmem:[%s174 + $0x8] sm:$0xff]
  %v177 = vld [vmem:[%s174 + $0x10] sm:$0xff]
  %v178 = vld [vmem:[%s174 + $0x18] sm:$0xff]
  %v179 = vld [vmem:[%s174 + $0x20] sm:$0xff]
  %v180 = vld [vmem:[%s174 + $0x28] sm:$0xff]
  %v181 = vld [vmem:[%s174 + $0x30] sm:$0xff]
  %v182 = vld [vmem:[%s174 + $0x38] sm:$0xff]
  %v183 = vld [vmem:[%s174 + $0x40] sm:$0xf]
  %v184 = vperm.slane %v38, 2
  %v186 = vsel %vm53, %v183, 0
  %188 = vmatpush.msra.mxu0 0.0
  %189 = vmatpush.msra.mxu0 0.0
  %190 = vmatpush.msra.mxu0 0.0
  %191 = vmatpush.msra.mxu0 0.0
  %192 = vmatpush.msra.mxu0 0.0
  %193 = vmatpush.msra.mxu0 0.0
  %194 = vmatpush.msra.mxu0 0.0
  %195 = vmatpush.msra.mxu0 %v186
  %196 = vmatpush.msra.mxu0 %v182
  %197 = vmatpush.msra.mxu0 %v181
  %198 = vmatpush.msra.mxu0 %v180
  %199 = vmatpush.msra.mxu0 %v179
  %200 = vmatpush.msra.mxu0 %v178
  %201 = vmatpush.msra.mxu0 %v177
  %202 = vmatpush.msra.mxu0 %v176
  %203 = vmatpush.msra.mxu0 %v175
  %204 = vmatmul.f32.gmra.mxu0 %v51
  %v205 = vpop.f32.mrf.mxu0
  %v206 = vadd.f32 %v184, %v205
  %207 = vdwg.mxu0
  %s208 = scalar_lea.vmem %s5, 128
  %v209 = vld [vmem:[%s208] sm:$0xff]
  %v210 = vld [vmem:[%s208 + $0x8] sm:$0xff]
  %v211 = vld [vmem:[%s208 + $0x10] sm:$0xff]
  %v212 = vld [vmem:[%s208 + $0x18] sm:$0xff]
  %v213 = vld [vmem:[%s208 + $0x20] sm:$0xff]
  %v214 = vld [vmem:[%s208 + $0x28] sm:$0xff]
  %v215 = vld [vmem:[%s208 + $0x30] sm:$0xff]
  %v216 = vld [vmem:[%s208 + $0x38] sm:$0xff]
  %v217 = vperm.slane %v38, 5
  %218 = vmatpush.msra.mxu0 0.0
  %219 = vmatpush.msra.mxu0 0.0
  %220 = vmatpush.msra.mxu0 0.0
  %221 = vmatpush.msra.mxu0 0.0
  %222 = vmatpush.msra.mxu0 0.0
  %223 = vmatpush.msra.mxu0 0.0
  %224 = vmatpush.msra.mxu0 0.0
  %225 = vmatpush.msra.mxu0 0.0
  %226 = vmatpush.msra.mxu0 %v216
  %227 = vmatpush.msra.mxu0 %v215
  %228 = vmatpush.msra.mxu0 %v214
  %229 = vmatpush.msra.mxu0 %v213
  %230 = vmatpush.msra.mxu0 %v212
  %231 = vmatpush.msra.mxu0 %v211
  %232 = vmatpush.msra.mxu0 %v210
  %233 = vmatpush.msra.mxu0 %v209
  %234 = vmatmul.f32.gmra.mxu0 %v88
  %v235 = vpop.f32.mrf.mxu0
  %v236 = vadd.f32 %v217, %v235
  %237 = vdwg.mxu0
  %v238 = vadd.f32 %v75, %v108
  %v239 = vxor.u32 %v238, 2147483648
  %v240 = vmul.f32 %v239, 1.442695
  %v241 = vpow.pop %v240
  %v242 = vadd.f32 %v241, 1.0
  %v243 = vrcp.pop %v242
  %v244 = vmul.f32 %v242, %v243
  %v245 = vsub.f32 1.0, %v244
  %v246 = vmul.f32 %v243, %v245
  %v247 = vadd.f32 %v243, %v246
  %vm248 = vweird.f32 %v242
  %vm249 = vweird.f32 %v243
  %vm250 = vmor %vm248, %vm249
  %v251 = vsel %vm250, %v243, %v247
  %v252 = vand.u32 2147483647, %v242
  %vm253 = vcmp.eq.f32.partialorder %v252, 8.507059e+37
  %v254 = vand.u32 %v242, 2147483648
  %v255 = vor.u32 1.1754944e-38, %v254
  %v256 = vsel %vm253, %v255, %v251
  %v257 = vmul.f32 1.0, %v256
  %v258 = vadd.f32 %v142, %v172
  %v259 = vxor.u32 %v258, 2147483648
  %v260 = vmul.f32 %v259, 1.442695
  %v261 = vpow.pop %v260
  %v262 = vadd.f32 %v261, 1.0
  %v263 = vrcp.pop %v262
  %v264 = vmul.f32 %v262, %v263
  %v265 = vsub.f32 1.0, %v264
  %v266 = vmul.f32 %v263, %v265
  %v267 = vadd.f32 %v263, %v266
  %vm268 = vweird.f32 %v262
  %vm269 = vweird.f32 %v263
  %vm270 = vmor %vm268, %vm269
  %v271 = vsel %vm270, %v263, %v267
  %v272 = vand.u32 2147483647, %v262
  %vm273 = vcmp.eq.f32.partialorder %v272, 8.507059e+37
  %v274 = vand.u32 %v262, 2147483648
  %v275 = vor.u32 1.1754944e-38, %v274
  %v276 = vsel %vm273, %v275, %v271
  %v277 = vmul.f32 1.0, %v276
  %v278 = vmul.f32 %v257, %v236
  %v279 = vadd.f32 %v206, %v278
  %v280 = vtanh.pop %v279
  %v281 = vsub.f32 1.0, %v277
  %v282 = vmul.f32 %v281, %v280
  %v283 = vmul.f32 %v277, %v36
  %v284 = vadd.f32 %v282, %v283
  %v285 = vld [vmem:[%s7] sm:$0xff]
  %v286 = vld [vmem:[%s7 + $0x8] sm:$0xff]
  %v287 = vld [vmem:[%s7 + $0x10] sm:$0xff]
  %v288 = vld [vmem:[%s7 + $0x18] sm:$0xff]
  %v289 = vld [vmem:[%s7 + $0x20] sm:$0xff]
  %v290 = vld [vmem:[%s7 + $0x28] sm:$0xff]
  %v291 = vld [vmem:[%s7 + $0x30] sm:$0xff]
  %v292 = vld [vmem:[%s7 + $0x38] sm:$0xff]
  %v293 = vld [vmem:[#allocation2] sm:$0x1]
  %v295 = vperm.slane %v293, 0
  %v298 = vsel %vm86, %v284, 0
  %300 = vmatpush.msra.mxu0 0.0
  %301 = vmatpush.msra.mxu0 0.0
  %302 = vmatpush.msra.mxu0 0.0
  %303 = vmatpush.msra.mxu0 0.0
  %304 = vmatpush.msra.mxu0 0.0
  %305 = vmatpush.msra.mxu0 0.0
  %306 = vmatpush.msra.mxu0 0.0
  %307 = vmatpush.msra.mxu0 0.0
  %308 = vmatpush.msra.mxu0 %v292
  %309 = vmatpush.msra.mxu0 %v291
  %310 = vmatpush.msra.mxu0 %v290
  %311 = vmatpush.msra.mxu0 %v289
  %312 = vmatpush.msra.mxu0 %v288
  %313 = vmatpush.msra.mxu0 %v287
  %314 = vmatpush.msra.mxu0 %v286
  %315 = vmatpush.msra.mxu0 %v285
  %316 = vmatmul.f32.gmra.mxu0 %v298
  %v317 = vpop.f32.mrf.mxu0
  %v318 = vadd.f32 %v295, %v317
  %319 = vdwg.mxu0
  %v320 = vxor.u32 %v318, 2147483648
  %v321 = vmul.f32 %v320, 1.442695
  %v322 = vpow.pop %v321
  %v323 = vadd.f32 %v322, 1.0
  %v324 = vrcp.pop %v323
  %v325 = vmul.f32 %v323, %v324
  %v326 = vsub.f32 1.0, %v325
  %v327 = vmul.f32 %v324, %v326
  %v328 = vadd.f32 %v324, %v327
  %vm329 = vweird.f32 %v323
  %vm330 = vweird.f32 %v324
  %vm331 = vmor %vm329, %vm330
  %v332 = vsel %vm331, %v324, %v328
  %v333 = vand.u32 2147483647, %v323
  %vm334 = vcmp.eq.f32.partialorder %v333, 8.507059e+37
  %v335 = vand.u32 %v323, 2147483648
  %v336 = vor.u32 1.1754944e-38, %v335
  %v337 = vsel %vm334, %v336, %v332
  %v338 = vmul.f32 1.0, %v337
  %v339 = vld [vmem:[%s3] sm:$0xff]
  %v340 = vld [vmem:[%s2] sm:$0xff]
  %vm341 = vcmp.ne.f32.partialorder %v339, 0.0
  %v342 = vsel %vm341, 1.0, 0.0
  %vm343 = vcmask 31744
  %v344 = vsel %vm343, %v342, -inf
  %345 = vmax.xlane.f32.xlu0 %v344
  %v346 = vpop.xlane.xlu0 %345
  %vm347 = vcmp.gt.f32.partialorder %v346, 0.0
  %349 = vset.pattern.permute.xlu0 0
  %350 = vperm.xlu0 %349, %v338
  %v351 = vpop.permute.xlu0 %350
  %v353 = vmul.f32 %v351, %v339
  %v354 = vadd.f32 %v340, %v353
  %v355 = vadd.f32 %v338, 1.0
  %357 = vset.pattern.permute.xlu0 0
  %358 = vperm.xlu0 %357, %v355
  %v359 = vpop.permute.xlu0 %358
  %v361 = vrcp.pop %v359
  %v362 = vmul.f32 %v359, %v361
  %v363 = vsub.f32 1.0, %v362
  %v364 = vmul.f32 %v361, %v363
  %v365 = vadd.f32 %v361, %v364
  %vm366 = vweird.f32 %v359
  %vm367 = vweird.f32 %v361
  %vm368 = vmor %vm366, %vm367
  %v369 = vsel %vm368, %v361, %v365
  %v370 = vand.u32 2147483647, %v359
  %vm371 = vcmp.eq.f32.partialorder %v370, 8.507059e+37
  %v372 = vand.u32 %v359, 2147483648
  %v373 = vor.u32 1.1754944e-38, %v372
  %v374 = vsel %vm371, %v373, %v369
  %v375 = vmul.f32 %v354, %v374
  %v376 = vsel %vm347, 1, 0
  %vm377 = vcmp.eq.s32.totalorder %v376, 1
  %v378 = vsel %vm377, %v375, %v340
  %379 = vst.msk [vmem:[%s10] sm:$0xff] %vm343, %v378
  %380 = vst.msk [vmem:[%s9] sm:$0xff] %vm86, %v284
  // Predicated region
  $region38: #{track_fuse_forward.3} parent=0 // pred_check
    _
  $region39: #{track_fuse_forward.3} parent=0 // pred_check_branch
    %382 = sbr.rel (0) target = $region41
  $region40: #{track_fuse_forward.3} parent=0 // pred_region
    _
  $region41: #{track_fuse_forward.3} parent=0 // pred_fallthru
    _
  // Predicated region
  $region42: #{track_fuse_forward.3} parent=0 // pred_check
    _
  $region43: #{track_fuse_forward.3} parent=0 // pred_check_branch
    %384 = sbr.rel (0) target = $region45
  $region44: #{track_fuse_forward.3} parent=0 // pred_region
    _
  $region45: #{track_fuse_forward.3} parent=0 // pred_fallthru
    _
  // Predicated region
  $region46: #{track_fuse_forward.3} parent=0 // pred_check
    _
  $region47: #{track_fuse_forward.3} parent=0 // pred_check_branch
    %386 = sbr.rel (0) target = $region49
  $region48: #{track_fuse_forward.3} parent=0 // pred_region
    _
  $region49: #{track_fuse_forward.3} parent=0 // pred_fallthru
    _
  // Predicated region
  $region50: #{track_fuse_forward.3} parent=0 // pred_check
    _
  $region51: #{track_fuse_forward.3} parent=0 // pred_check_branch
    %388 = sbr.rel (0) target = $region53
  $region52: #{track_fuse_forward.3} parent=0 // pred_region
    _
  $region53: #{track_fuse_forward.3} parent=0 // pred_fallthru
    _

// kernel: track_fuse_forward.2
$region0: #{track_fuse_forward.2}
  #allocation0 [shape = 'u32[]', space=smem, size = 0x4, offset = 0x4, fixed_abs, tag = 'smem constant byte address 0x4 - core index']
  #allocation1 [shape = 'u32[72,128]{1,0:T(1,128)}', space=vmem, size = 0x9000, scoped, tag = 'internal scratch']
  #allocation2 [shape = 'f32[17,64]{1,0:T(8,128)}', space=vmem, size = 0x3000, scoped, tag = 'scratch operand']
  %s0 = inlined_call_operand.vmem [shape: f32[17,32], index: 0, kind: input, shape index: {}]
  %s1 = inlined_call_operand.vmem [shape: f32[17,64], index: 1, kind: input, shape index: {}]
  %s2 = inlined_call_operand.vmem [shape: f32[328,64], index: 2, kind: input, shape index: {}]
  %s3 = inlined_call_operand.vmem [shape: f32[9,656,64], index: 3, kind: input, shape index: {}]
  %s4 = inlined_call_operand.vmem [shape: f32[9,272,128], index: 4, kind: input, shape index: {}]
  %s5 = inlined_call_operand.vmem [shape: f32[8,64], index: 5, kind: output, shape index: {0}]
  %s6 = inlined_call_operand.vmem [shape: f32[9,9], index: 6, kind: output, shape index: {1}]
  %7 = xla_tuple %s5, %s6
  %s8 = sld [smem:[#allocation0]]
  $region76: #{track_fuse_forward.2} parent=0
    _
  %s10 = ssub.s32 1, %s8
  %s11 = scalar_select 0, %s10, %s8
  loop: start=0, step=1, limit=11
  $region2: #{track_fuse_forward.2} parent=0 // loop_pre_header
    _
  $region3: #{track_fuse_forward.2} parent=0 // loop_header
    %s13 = sphi 0, %s17
    %p14 = scmp.ge.s32.totalorder %s13, 11
    %s21 = sphi 0, %s21
    %s23 = sphi 0, %s21
    %s24 = sphi 0, %s23
    %s38 = sphi 0, %s24
    %s42 = sphi 0, %s42
    %s44 = sphi 0, %s42
    %s45 = sphi 0, %s44
    %s59 = sphi 0, %s45
    %s63 = sphi 0, %s63
    %s65 = sphi 0, %s63
    %s66 = sphi 0, %s65
    %s80 = sphi 0, %s66
    %s86 = sphi 0, %s88
    %s89 = sphi 0, %s86
    %s90 = sphi 0, %s89
    %s106 = sphi 0, %s90
    %s112 = sphi 0, %s114
    %s115 = sphi 0, %s112
    %s116 = sphi 0, %s115
    %s132 = sphi 0, %s116
    %s136 = sphi 0, %s136
    %s138 = sphi 0, %s136
    %s139 = sphi 0, %s138
    %s153 = sphi 0, %s139
    %s157 = sphi 0, %s157
    %s159 = sphi 0, %s157
    %s160 = sphi 0, %s159
    %s174 = sphi 0, %s160
  $region4: #{track_fuse_forward.2} parent=0 // loop_header_branch
    %16 = sbr.rel (%p14) target = $region8
  $region5: #{track_fuse_forward.2} parent=0 // loop_body
    %s18 = ssub.s32 %s13, 1
    %s19 = ssub.s32 %s13, 2
    %s20 = sadd.s32 %s13, 1
    %s22 = sadd.s32 %s21, 1
    %p25 = scmp.eq.s32.totalorder %s13, 8
    %p26 = scmp.ne.s32.totalorder %s21, %s23
    %p27 = scmp.eq.s32.totalorder %s13, 0
    %p28 = por %p26, %p27
    %p29 = scmp.ne.s32.totalorder %s21, %s23
    %p30 = scmp.eq.s32.totalorder %s18, 8
    %p31 = por %p29, %p30
    %p32 = scmp.ne.s32.totalorder %s23, %s24
    %p33 = scmp.eq.s32.totalorder %s18, 0
    %p34 = por %p32, %p33
    %p35 = scmp.ne.s32.totalorder %s23, %s24
    %p36 = scmp.eq.s32.totalorder %s19, 8
    %p37 = por %p35, %p36
    %p39 = scmp.ne.s32.totalorder %s24, %s38
    %p40 = scmp.eq.s32.totalorder %s19, 0
    %p41 = por %p39, %p40
    %s43 = sadd.s32 %s42, 1
    %p46 = scmp.eq.s32.totalorder %s13, 8
    %p47 = scmp.ne.s32.totalorder %s42, %s44
    %p48 = scmp.eq.s32.totalorder %s13, 0
    %p49 = por %p47, %p48
    %p50 = scmp.ne.s32.totalorder %s42, %s44
    %p51 = scmp.eq.s32.totalorder %s18, 8
    %p52 = por %p50, %p51
    %p53 = scmp.ne.s32.totalorder %s44, %s45
    %p54 = scmp.eq.s32.totalorder %s18, 0
    %p55 = por %p53, %p54
    %p56 = scmp.ne.s32.totalorder %s44, %s45
    %p57 = scmp.eq.s32.totalorder %s19, 8
    %p58 = por %p56, %p57
    %p60 = scmp.ne.s32.totalorder %s45, %s59
    %p61 = scmp.eq.s32.totalorder %s19, 0
    %p62 = por %p60, %p61
    %s64 = sadd.s32 %s63, 1
    %p67 = scmp.eq.s32.totalorder %s13, 8
    %p68 = scmp.ne.s32.totalorder %s63, %s65
    %p69 = scmp.eq.s32.totalorder %s13, 0
    %p70 = por %p68, %p69
    %p71 = scmp.ne.s32.totalorder %s63, %s65
    %p72 = scmp.eq.s32.totalorder %s18, 8
    %p73 = por %p71, %p72
    %p74 = scmp.ne.s32.totalorder %s65, %s66
    %p75 = scmp.eq.s32.totalorder %s18, 0
    %p76 = por %p74, %p75
    %p77 = scmp.ne.s32.totalorder %s65, %s66
    %p78 = scmp.eq.s32.totalorder %s19, 8
    %p79 = por %p77, %p78
    %p81 = scmp.ne.s32.totalorder %s66, %s80
    %p82 = scmp.eq.s32.totalorder %s19, 0
    %p83 = por %p81, %p82
    %s84 = ssub.s32 %s13, %s20
    %p85 = scmp.eq.s32.totalorder %s84, 0
    %s87 = sadd.s32 %s86, 1
    %s88 = scalar_select %p85, %s86, %s87
    %p91 = pneg %p85
    %p92 = scmp.eq.s32.totalorder %s13, 8
    %p93 = por %p91, %p92
    %p94 = scmp.ne.s32.totalorder %s86, %s89
    %p95 = scmp.eq.s32.totalorder %s13, 0
    %p96 = por %p94, %p95
    %p97 = scmp.ne.s32.totalorder %s86, %s89
    %p98 = scmp.eq.s32.totalorder %s18, 8
    %p99 = por %p97, %p98
    %p100 = scmp.ne.s32.totalorder %s89, %s90
    %p101 = scmp.eq.s32.totalorder %s18, 0
    %p102 = por %p100, %p101
    %p103 = scmp.ne.s32.totalorder %s89, %s90
    %p104 = scmp.eq.s32.totalorder %s19, 8
    %p105 = por %p103, %p104
    %p107 = scmp.ne.s32.totalorder %s90, %s106
    %p108 = scmp.eq.s32.totalorder %s19, 0
    %p109 = por %p107, %p108
    %s110 = ssub.s32 %s13, %s20
    %p111 = scmp.eq.s32.totalorder %s110, 0
    %s113 = sadd.s32 %s112, 1
    %s114 = scalar_select %p111, %s112, %s113
    %p117 = pneg %p111
    %p118 = scmp.eq.s32.totalorder %s13, 8
    %p119 = por %p117, %p118
    %p120 = scmp.ne.s32.totalorder %s112, %s115
    %p121 = scmp.eq.s32.totalorder %s13, 0
    %p122 = por %p120, %p121
    %p123 = scmp.ne.s32.totalorder %s112, %s115
    %p124 = scmp.eq.s32.totalorder %s18, 8
    %p125 = por %p123, %p124
    %p126 = scmp.ne.s32.totalorder %s115, %s116
    %p127 = scmp.eq.s32.totalorder %s18, 0
    %p128 = por %p126, %p127
    %p129 = scmp.ne.s32.totalorder %s115, %s116
    %p130 = scmp.eq.s32.totalorder %s19, 8
    %p131 = por %p129, %p130
    %p133 = scmp.ne.s32.totalorder %s116, %s132
    %p134 = scmp.eq.s32.totalorder %s19, 0
    %p135 = por %p133, %p134
    %s137 = sadd.s32 %s136, 1
    %p140 = scmp.eq.s32.totalorder %s13, 8
    %p141 = scmp.ne.s32.totalorder %s136, %s138
    %p142 = scmp.eq.s32.totalorder %s13, 0
    %p143 = por %p141, %p142
    %p144 = scmp.ne.s32.totalorder %s136, %s138
    %p145 = scmp.eq.s32.totalorder %s18, 8
    %p146 = por %p144, %p145
    %p147 = scmp.ne.s32.totalorder %s138, %s139
    %p148 = scmp.eq.s32.totalorder %s18, 0
    %p149 = por %p147, %p148
    %p150 = scmp.ne.s32.totalorder %s138, %s139
    %p151 = scmp.eq.s32.totalorder %s19, 8
    %p152 = por %p150, %p151
    %p154 = scmp.ne.s32.totalorder %s139, %s153
    %p155 = scmp.eq.s32.totalorder %s19, 0
    %p156 = por %p154, %p155
    %s158 = sadd.s32 %s157, 1
    %p161 = scmp.eq.s32.totalorder %s13, 8
    %p162 = scmp.ne.s32.totalorder %s157, %s159
    %p163 = scmp.eq.s32.totalorder %s13, 0
    %p164 = por %p162, %p163
    %p165 = scmp.ne.s32.totalorder %s157, %s159
    %p166 = scmp.eq.s32.totalorder %s18, 8
    %p167 = por %p165, %p166
    %p168 = scmp.ne.s32.totalorder %s159, %s160
    %p169 = scmp.eq.s32.totalorder %s18, 0
    %p170 = por %p168, %p169
    %p171 = scmp.ne.s32.totalorder %s159, %s160
    %p172 = scmp.eq.s32.totalorder %s19, 8
    %p173 = por %p171, %p172
    %p175 = scmp.ne.s32.totalorder %s160, %s174
    %p176 = scmp.eq.s32.totalorder %s19, 0
    %p177 = por %p175, %p176
    %p178 = scmp.le.s32.totalorder 1, %s13
    %p179 = scmp.lt.s32.totalorder %s13, 10
    %p180 = pnand %p178, %p179
    %p181 = pneg %p180
    // Predicated region
    $region9: #{track_fuse_forward.2} parent=5 // pred_check
      _
    $region10: #{track_fuse_forward.2} parent=5 // pred_check_branch
      %183 = sbr.rel (%p180) target = $region12
    $region11: #{track_fuse_forward.2} parent=5 // pred_region
      %s184 = ssub.s32 %s13, 1
      // Predicated region
      $region13: #{track_fuse_forward.2} parent=11 // pred_check
        %p185 = pneg %p34
      $region14: #{track_fuse_forward.2} parent=11 // pred_check_branch
        %187 = sbr.rel (%p185) target = $region16
      $region15: #{track_fuse_forward.2} parent=11 // pred_region
        _
      $region16: #{track_fuse_forward.2} parent=11 // pred_fallthru
        _
      // Predicated region
      $region17: #{track_fuse_forward.2} parent=11 // pred_check
        %p188 = pneg %p55
      $region18: #{track_fuse_forward.2} parent=11 // pred_check_branch
        %190 = sbr.rel (%p188) target = $region20
      $region19: #{track_fuse_forward.2} parent=11 // pred_region
        _
      $region20: #{track_fuse_forward.2} parent=11 // pred_fallthru
        _
      // Predicated region
      $region21: #{track_fuse_forward.2} parent=11 // pred_check
        %p191 = pneg %p76
      $region22: #{track_fuse_forward.2} parent=11 // pred_check_branch
        %193 = sbr.rel (%p191) target = $region24
      $region23: #{track_fuse_forward.2} parent=11 // pred_region
        _
      $region24: #{track_fuse_forward.2} parent=11 // pred_fallthru
        _
    $region12: #{track_fuse_forward.2} parent=5 // pred_fallthru
      _
    %p194 = scmp.lt.s32.totalorder %s13, 9
    // Predicated region
    $region25: #{track_fuse_forward.2} parent=5 // pred_check
      %p195 = pneg %p194
    $region26: #{track_fuse_forward.2} parent=5 // pred_check_branch
      %197 = sbr.rel (%p195) target = $region28
    $region27: #{track_fuse_forward.2} parent=5 // pred_region
      // Predicated region
      $region29: #{track_fuse_forward.2} parent=27 // pred_check
        %p198 = pneg %p96
      $region30: #{track_fuse_forward.2} parent=27 // pred_check_branch
        %200 = sbr.rel (%p198) target = $region32
      $region31: #{track_fuse_forward.2} parent=27 // pred_region
        %p201 = scmp.lt.s32.totalorder %s13, 8
        %s202 = scalar_select %p201, %s13, 8
        %s203 = smul.addr %s202, 82
        %s204 = smul.addr %s203, 8
        %s205 = scalar_lea.vmem %s3, %s204
      $region32: #{track_fuse_forward.2} parent=27 // pred_fallthru
        _
      // Predicated region
      $region33: #{track_fuse_forward.2} parent=27 // pred_check
        %p206 = pneg %p122
      $region34: #{track_fuse_forward.2} parent=27 // pred_check_branch
        %208 = sbr.rel (%p206) target = $region36
      $region35: #{track_fuse_forward.2} parent=27 // pred_region
        %p209 = scmp.lt.s32.totalorder %s13, 8
        %s210 = scalar_select %p209, %s13, 8
        %s211 = smul.addr %s210, 34
        %s212 = smul.addr %s211, 8
        %s213 = scalar_lea.vmem %s4, %s212
      $region36: #{track_fuse_forward.2} parent=27 // pred_fallthru
        _
    $region28: #{track_fuse_forward.2} parent=5 // pred_fallthru
      _
    %p214 = scmp.le.s32.totalorder 1, %s13
    %p215 = scmp.lt.s32.totalorder %s13, 10
    %p216 = pnand %p214, %p215
    %p217 = pneg %p216
    // Predicated region
    $region37: #{track_fuse_forward.2} parent=5 // pred_check
      _
    $region38: #{track_fuse_forward.2} parent=5 // pred_check_branch
      %219 = sbr.rel (%p216) target = $region40
    $region39: #{track_fuse_forward.2} parent=5 // pred_region
      %s220 = ssub.s32 %s13, 1
      %p221 = pneg %p34
      %p222 = pneg %p31
      %p223 = pneg %p55
      %p224 = pneg %p52
      %p225 = pneg %p76
      %p226 = pneg %p73
      %p227 = scmp.lt.s32.totalorder %s18, 8
      %s228 = scalar_select %p227, %s18, 8
      %s229 = smul.addr %s228, 82
      %s230 = smul.addr %s229, 8
      %s231 = scalar_lea.vmem %s3, %s230
      %p232 = pneg %p102
      %p233 = pneg %p99
      %p234 = scmp.lt.s32.totalorder %s18, 8
      %s235 = scalar_select %p234, %s18, 8
      %s236 = smul.addr %s235, 34
      %s237 = smul.addr %s236, 8
      %s238 = scalar_lea.vmem %s4, %s237
      %p239 = pneg %p128
      %p240 = pneg %p125
      %p241 = pneg %p149
      %p242 = pneg %p146
      %p243 = pneg %p170
      %p244 = pneg %p167
      %p245 = scmp.lt.s32.totalorder %s18, 8
      %s246 = scalar_select %p245, %s18, 8
      %s247 = smul.addr %s246, 82
      %s248 = smul.addr %s247, 8
      %s249 = scalar_lea.vmem %s3, %s248
      %p250 = scmp.lt.s32.totalorder %s18, 8
      %s251 = scalar_select %p250, %s18, 8
      %s252 = smul.addr %s251, 34
      %s253 = smul.addr %s252, 8
      %s254 = scalar_lea.vmem %s4, %s253
      %p255 = scmp.eq.s32.totalorder %s18, 0
      // Predicated region
      $region41: #{track_fuse_forward.2} parent=39 // pred_check
        %p256 = pneg %p255
      $region42: #{track_fuse_forward.2} parent=39 // pred_check_branch
        %258 = sbr.rel (%p256) target = $region44
      $region43: #{track_fuse_forward.2} parent=39 // pred_region
        %v259 = vld [vmem:[%s0] sm:$0xff]
        %v260 = vld [vmem:[%s0 + $0x8] sm:$0xff]
        %v261 = vld [vmem:[%s0 + $0x10] sm:$0x1]
        %v262 = vld [vmem:[%s2 + $0x140] sm:$0xff]
        %v263 = vld [vmem:[%s2] sm:$0xff]
        %v264 = vld [vmem:[%s2 + $0x8] sm:$0xff]
        %v265 = vld [vmem:[%s2 + $0x10] sm:$0xff]
        %v266 = vld [vmem:[%s2 + $0x18] sm:$0xff]
        %v267 = vperm.slane %v262, 0
        %vm268 = vcmask 261120
        %v270 = vsel %vm268, %v259, 0
        %v273 = vsel %vm268, %v260, 0
        %v276 = vsel %vm268, %v261, 0
        %278 = vmatpush.msra.mxu0 0.0
        %279 = vmatpush.msra.mxu0 0.0
        %280 = vmatpush.msra.mxu0 0.0
        %281 = vmatpush.msra.mxu0 0.0
        %282 = vmatpush.msra.mxu0 0.0
        %283 = vmatpush.msra.mxu0 0.0
        %284 = vmatpush.msra.mxu0 0.0
        %285 = vmatpush.msra.mxu0 0.0
        %286 = vmatpush.msra.mxu0 0.0
        %287 = vmatpush.msra.mxu0 0.0
        %288 = vmatpush.msra.mxu0 0.0
        %289 = vmatpush.msra.mxu0 0.0
        %290 = vmatpush.msra.mxu0 %v266
        %291 = vmatpush.msra.mxu0 %v265
        %292 = vmatpush.msra.mxu0 %v264
        %293 = vmatpush.msra.mxu0 %v263
        %294 = vmatmul.f32.gmra.mxu0 %v270
        %v295 = vpop.f32.mrf.mxu0
        %v296 = vadd.f32 %v267, %v295
        %297 = vmatmul.f32.gmra.mxu0 %v273
        %v298 = vpop.f32.mrf.mxu0
        %v299 = vadd.f32 %v267, %v298
        %300 = vmatmul.f32.gmra.mxu0 %v276
        %v301 = vpop.f32.mrf.mxu0
        %v302 = vadd.f32 %v267, %v301
        %303 = vdwg.mxu0
        %v304 = vmax.f32 %v296, 0.0
        %v305 = vmax.f32 %v299, 0.0
        %v306 = vmax.f32 %v302, 0.0
        %v307 = vld [vmem:[%s2 + $0x20] sm:$0xff]
        %v308 = vld [vmem:[%s2 + $0x28] sm:$0xff]
        %v309 = vld [vmem:[%s2 + $0x30] sm:$0xff]
        %v310 = vld [vmem:[%s2 + $0x38] sm:$0xff]
        %v311 = vld [vmem:[%s2 + $0x40] sm:$0xff]
        %v312 = vld [vmem:[%s2 + $0x48] sm:$0xff]
        %v313 = vld [vmem:[%s2 + $0x50] sm:$0xff]
        %v314 = vld [vmem:[%s2 + $0x58] sm:$0xff]
        %v315 = vperm.slane %v262, 1
        %vm316 = vcmask 523264
        %v318 = vsel %vm316, %v304, 0
        %v321 = vsel %vm316, %v305, 0
        %v324 = vsel %vm316, %v306, 0
        %326 = vmatpush.msra.mxu0 0.0
        %327 = vmatpush.msra.mxu0 0.0
        %328 = vmatpush.msra.mxu0 0.0
        %329 = vmatpush.msra.mxu0 0.0
        %330 = vmatpush.msra.mxu0 0.0
        %331 = vmatpush.msra.mxu0 0.0
        %332 = vmatpush.msra.mxu0 0.0
        %333 = vmatpush.msra.mxu0 0.0
        %334 = vmatpush.msra.mxu0 %v314
        %335 = vmatpush.msra.mxu0 %v313
        %336 = vmatpush.msra.mxu0 %v312
        %337 = vmatpush.msra.mxu0 %v311
        %338 = vmatpush.msra.mxu0 %v310
        %339 = vmatpush.msra.mxu0 %v309
        %340 = vmatpush.msra.mxu0 %v308
        %341 = vmatpush.msra.mxu0 %v307
        %342 = vmatmul.f32.gmra.mxu0 %v318
        %v343 = vpop.f32.mrf.mxu0
        %v344 = vadd.f32 %v315, %v343
        %345 = vmatmul.f32.gmra.mxu0 %v321
        %v346 = vpop.f32.mrf.mxu0
        %v347 = vadd.f32 %v315, %v346
        %348 = vmatmul.f32.gmra.mxu0 %v324
        %v349 = vpop.f32.mrf.mxu0
        %v350 = vadd.f32 %v315, %v349
        %351 = vdwg.mxu0
        %v352 = vmul.f32 %v344, %v344
        %v353 = vmul.f32 %v347, %v347
        %v354 = vmul.f32 %v350, %v350
        %v355 = vsel %vm316, %v352, 0.0
        %356 = vadd.xlane.f32.xlu0 %v355
        %v357 = vpop.xlane.xlu0 %356
        %v358 = vsel %vm316, %v353, 0.0
        %359 = vadd.xlane.f32.xlu0 %v358
        %v360 = vpop.xlane.xlu0 %359
        %vm361 = vcmask 516096
        %v362 = vsel %vm361, %v354, 0.0
        %363 = vadd.xlane.f32.xlu0 %v362
        %v364 = vpop.xlane.xlu0 %363
        %v365 = vmax.f32 %v357, 1e-24
        %v366 = vmax.f32 %v360, 1e-24
        %v367 = vmax.f32 %v364, 1e-24
        %v368 = vrsqrt.pop %v365
        %v369 = vmul.f32 %v368, %v365
        %v370 = vmul.f32 %v369, %v368
        %v371 = vmul.f32 0.5, %v370
        %v372 = vsub.f32 1.5, %v371
        %v373 = vmul.f32 %v368, %v372
        %vm374 = vweird.f32 %v365
        %vm375 = vweird.f32 %v368
        %vm376 = vmor %vm374, %vm375
        %v377 = vsel %vm376, %v368, %v373
        %v378 = vrsqrt.pop %v366
        %v379 = vmul.f32 %v378, %v366
        %v380 = vmul.f32 %v379, %v378
        %v381 = vmul.f32 0.5, %v380
        %v382 = vsub.f32 1.5, %v381
        %v383 = vmul.f32 %v378, %v382
        %vm384 = vweird.f32 %v366
        %vm385 = vweird.f32 %v378
        %vm386 = vmor %vm384, %vm385
        %v387 = vsel %vm386, %v378, %v383
        %v388 = vrsqrt.pop %v367
        %v389 = vmul.f32 %v388, %v367
        %v390 = vmul.f32 %v389, %v388
        %v391 = vmul.f32 0.5, %v390
        %v392 = vsub.f32 1.5, %v391
        %v393 = vmul.f32 %v388, %v392
        %vm394 = vweird.f32 %v367
        %vm395 = vweird.f32 %v388
        %vm396 = vmor %vm394, %vm395
        %v397 = vsel %vm396, %v388, %v393
        %v398 = vmul.f32 %v344, %v377
        %v399 = vmul.f32 %v347, %v387
        %v400 = vmul.f32 %v350, %v397
        %401 = vst.msk [vmem:[%s5] sm:$0xff] %vm316, %v398
        %v402 = vld [vmem:[%s2 + $0x60] sm:$0xff]
        %v403 = vld [vmem:[%s2 + $0x68] sm:$0xff]
        %v404 = vld [vmem:[%s2 + $0x70] sm:$0xff]
        %v405 = vld [vmem:[%s2 + $0x78] sm:$0xff]
        %v406 = vperm.slane %v262, 2
        %407 = vmatpush.msra.mxu0 0.0
        %408 = vmatpush.msra.mxu0 0.0
        %409 = vmatpush.msra.mxu0 0.0
        %410 = vmatpush.msra.mxu0 0.0
        %411 = vmatpush.msra.mxu0 0.0
        %412 = vmatpush.msra.mxu0 0.0
        %413 = vmatpush.msra.mxu0 0.0
        %414 = vmatpush.msra.mxu0 0.0
        %415 = vmatpush.msra.mxu0 0.0
        %416 = vmatpush.msra.mxu0 0.0
        %417 = vmatpush.msra.mxu0 0.0
        %418 = vmatpush.msra.mxu0 0.0
        %419 = vmatpush.msra.mxu0 %v405
        %420 = vmatpush.msra.mxu0 %v404
        %421 = vmatpush.msra.mxu0 %v403
        %422 = vmatpush.msra.mxu0 %v402
        %423 = vmatmul.f32.gmra.mxu0 %v270
        %v424 = vpop.f32.mrf.mxu0
        %v425 = vadd.f32 %v406, %v424
        %426 = vmatmul.f32.gmra.mxu0 %v273
        %v427 = vpop.f32.mrf.mxu0
        %v428 = vadd.f32 %v406, %v427
        %429 = vmatmul.f32.gmra.mxu0 %v276
        %v430 = vpop.f32.mrf.mxu0
        %v431 = vadd.f32 %v406, %v430
        %432 = vdwg.mxu0
        %v433 = vmax.f32 %v425, 0.0
        %v434 = vmax.f32 %v428, 0.0
        %v435 = vmax.f32 %v431, 0.0
        %v436 = vld [vmem:[%s2 + $0x80] sm:$0xff]
        %v437 = vld [vmem:[%s2 + $0x88] sm:$0xff]
        %v438 = vld [vmem:[%s2 + $0x90] sm:$0xff]
        %v439 = vld [vmem:[%s2 + $0x98] sm:$0xff]
        %v440 = vld [vmem:[%s2 + $0xa0] sm:$0xff]
        %v441 = vld [vmem:[%s2 + $0xa8] sm:$0xff]
        %v442 = vld [vmem:[%s2 + $0xb0] sm:$0xff]
        %v443 = vld [vmem:[%s2 + $0xb8] sm:$0xff]
        %v444 = vperm.slane %v262, 3
        %v446 = vsel %vm316, %v433, 0
        %v449 = vsel %vm316, %v434, 0
        %v452 = vsel %vm316, %v435, 0
        %454 = vmatpush.msra.mxu0 0.0
        %455 = vmatpush.msra.mxu0 0.0
        %456 = vmatpush.msra.mxu0 0.0
        %457 = vmatpush.msra.mxu0 0.0
        %458 = vmatpush.msra.mxu0 0.0
        %459 = vmatpush.msra.mxu0 0.0
        %460 = vmatpush.msra.mxu0 0.0
        %461 = vmatpush.msra.mxu0 0.0
        %462 = vmatpush.msra.mxu0 %v443
        %463 = vmatpush.msra.mxu0 %v442
        %464 = vmatpush.msra.mxu0 %v441
        %465 = vmatpush.msra.mxu0 %v440
        %466 = vmatpush.msra.mxu0 %v439
        %467 = vmatpush.msra.mxu0 %v438
        %468 = vmatpush.msra.mxu0 %v437
        %469 = vmatpush.msra.mxu0 %v436
        %470 = vmatmul.f32.gmra.mxu0 %v446
        %v471 = vpop.f32.mrf.mxu0
        %v472 = vadd.f32 %v444, %v471
        %473 = vmatmul.f32.gmra.mxu0 %v449
        %v474 = vpop.f32.mrf.mxu0
        %v475 = vadd.f32 %v444, %v474
        %476 = vmatmul.f32.gmra.mxu0 %v452
        %v477 = vpop.f32.mrf.mxu0
        %v478 = vadd.f32 %v444, %v477
        %479 = vdwg.mxu0
        %v480 = vmax.f32 %v472, 0.0
        %v481 = vmax.f32 %v475, 0.0
        %v482 = vmax.f32 %v478, 0.0
        %v483 = vld [vmem:[%s2 + $0xc0] sm:$0xff]
        %v484 = vld [vmem:[%s2 + $0xc8] sm:$0xff]
        %v485 = vld [vmem:[%s2 + $0xd0] sm:$0xff]
        %v486 = vld [vmem:[%s2 + $0xd8] sm:$0xff]
        %v487 = vld [vmem:[%s2 + $0xe0] sm:$0xff]
        %v488 = vld [vmem:[%s2 + $0xe8] sm:$0xff]
        %v489 = vld [vmem:[%s2 + $0xf0] sm:$0xff]
        %v490 = vld [vmem:[%s2 + $0xf8] sm:$0xff]
        %v491 = vperm.slane %v262, 4
        %v493 = vsel %vm316, %v480, 0
        %v496 = vsel %vm316, %v481, 0
        %v499 = vsel %vm316, %v482, 0
        %501 = vmatpush.msra.mxu0 0.0
        %502 = vmatpush.msra.mxu0 0.0
        %503 = vmatpush.msra.mxu0 0.0
        %504 = vmatpush.msra.mxu0 0.0
        %505 = vmatpush.msra.mxu0 0.0
        %506 = vmatpush.msra.mxu0 0.0
        %507 = vmatpush.msra.mxu0 0.0
        %508 = vmatpush.msra.mxu0 0.0
        %509 = vmatpush.msra.mxu0 %v490
        %510 = vmatpush.msra.mxu0 %v489
        %511 = vmatpush.msra.mxu0 %v488
        %512 = vmatpush.msra.mxu0 %v487
        %513 = vmatpush.msra.mxu0 %v486
        %514 = vmatpush.msra.mxu0 %v485
        %515 = vmatpush.msra.mxu0 %v484
        %516 = vmatpush.msra.mxu0 %v483
        %517 = vmatmul.f32.gmra.mxu0 %v493
        %v518 = vpop.f32.mrf.mxu0
        %v519 = vadd.f32 %v491, %v518
        %520 = vmatmul.f32.gmra.mxu0 %v496
        %v521 = vpop.f32.mrf.mxu0
        %v522 = vadd.f32 %v491, %v521
        %523 = vmatmul.f32.gmra.mxu0 %v499
        %v524 = vpop.f32.mrf.mxu0
        %v525 = vadd.f32 %v491, %v524
        %526 = vdwg.mxu0
        %v527 = vlaneseq
        %v528 = vshrl.u32 %v527, 7
        %v529 = vadd.s32 %v528, 8
        %v530 = vadd.s32 %v528, 16
        %vm531 = vcmp.lt.s32.totalorder %v528, 8
        %vm532 = vcmp.lt.s32.totalorder %v529, 8
        %vm533 = vcmp.lt.s32.totalorder %v530, 8
        %v534 = vld [vmem:[%s1] sm:$0xff]
        %v535 = vld [vmem:[%s1 + $0x8] sm:$0xff]
        %v536 = vld [vmem:[%s1 + $0x10] sm:$0x1]
        %v537 = vsel %vm531, 1, 0
        %v538 = vsel %vm532, 1, 0
        %v539 = vsel %vm533, 1, 0
        %vm540 = vcmp.eq.s32.totalorder %v537, 1
        %vm541 = vcmp.eq.s32.totalorder %v538, 1
        %vm542 = vcmp.eq.s32.totalorder %v539, 1
        %v543 = vsel %vm540, %v398, %v534
        %v544 = vsel %vm541, %v399, %v535
        %v545 = vsel %vm542, %v400, %v536
        %vm546 = vcmp.lt.s32.totalorder %v528, 16
        %vm547 = vcmp.lt.s32.totalorder %v529, 16
        %vm548 = vcmp.lt.s32.totalorder %v530, 16
        %v549 = vadd.f32 %v543, %v519
        %v550 = vadd.f32 %v544, %v522
        %v551 = vadd.f32 %v545, %v525
        %v552 = vsel %vm546, 1, 0
        %v553 = vsel %vm547, 1, 0
        %v554 = vsel %vm548, 1, 0
        %vm555 = vcmp.eq.s32.totalorder %v552, 1
        %vm556 = vcmp.eq.s32.totalorder %v553, 1
        %vm557 = vcmp.eq.s32.totalorder %v554, 1
        %v558 = vsel %vm555, %v549, 0.0
        %v559 = vsel %vm556, %v550, 0.0
        %v560 = vsel %vm557, %v551, 0.0
        %561 = vst.msk [vmem:[#allocation2] sm:$0xff] %vm316, %v558
        %562 = vst.msk [vmem:[#allocation2 + $0x8] sm:$0xff] %vm316, %v559
        %563 = vst.msk [vmem:[#allocation2 + $0x10] sm:$0x1] %vm361, %v560
      $region44: #{track_fuse_forward.2} parent=39 // pred_fallthru
        _
      %v564 = vlaneseq
      %v565 = vshrl.u32 %v564, 7
      %v566 = vadd.s32 %v565, 8
      %v567 = vadd.s32 %v565, 16
      %v568 = vlaneseq
      %v569 = vand.u32 %v568, 127
      %vm570 = vcmp.ge.s32.totalorder %v565, 8
      %vm571 = vcmp.ge.s32.totalorder %v566, 8
      %vm572 = vcmp.ge.s32.totalorder %v567, 8
      %vm573 = vcmp.ge.s32.totalorder %v569, 8
      %vm574 = vcmp.ge.s32.totalorder %v565, 16
      %vm575 = vcmp.ge.s32.totalorder %v566, 16
      %vm576 = vcmp.ge.s32.totalorder %v567, 16
      %vm577 = vcmp.ge.s32.totalorder %v569, 16
      %vm578 = vmor %vm574, %vm577
      %vm579 = vmor %vm575, %vm577
      %vm580 = vmor %vm576, %vm577
      %vm581 = vmxor %vm570, %vm573
      %vm582 = vmxor %vm571, %vm573
      %vm583 = vmxor %vm572, %vm573
      %vm584 = vmxor %vm581, 1
      %vm585 = vmxor %vm582, 1
      %vm586 = vmxor %vm583, 1
      %vm587 = vmxor %vm578, 1
      %vm588 = vmxor %vm579, 1
      %vm589 = vmxor %vm580, 1
      %vm590 = vmand %vm584, %vm587
      %vm591 = vmand %vm585, %vm588
      %vm592 = vmand %vm586, %vm589
      %v593 = vsel %vm590, 0.0, -1e+09
      %v594 = vsel %vm591, 0.0, -1e+09
      %v595 = vsel %vm592, 0.0, -1e+09
      %vm596 = vmand %vm581, %vm587
      %vm597 = vmand %vm582, %vm588
      %vm598 = vmand %vm583, %vm589
      %v599 = vsel %vm596, 0.0, -1e+09
      %v600 = vsel %vm597, 0.0, -1e+09
      %v601 = vsel %vm598, 0.0, -1e+09
      %vm602 = vcmp.lt.s32.totalorder %v565, 16
      %vm603 = vcmp.lt.s32.totalorder %v566, 16
      %vm604 = vcmp.lt.s32.totalorder %v567, 16
      %v605 = vld [vmem:[#allocation2] sm:$0xff]
      %v606 = vld [vmem:[#allocation2 + $0x8] sm:$0xff]
      %v607 = vld [vmem:[#allocation2 + $0x10] sm:$0x1]
      %v608 = vld [vmem:[%s249 + $0x140] sm:$0xff]
      %v609 = vld [vmem:[%s254 + $0x80] sm:$0xff]
      %v610 = vld [vmem:[%s249] sm:$0xff]
      %v611 = vld [vmem:[%s249 + $0x8] sm:$0xff]
      %v612 = vld [vmem:[%s249 + $0x10] sm:$0xff]
      %v613 = vld [vmem:[%s249 + $0x18] sm:$0xff]
      %v614 = vld [vmem:[%s249 + $0x20] sm:$0xff]
      %v615 = vld [vmem:[%s249 + $0x28] sm:$0xff]
      %v616 = vld [vmem:[%s249 + $0x30] sm:$0xff]
      %v617 = vld [vmem:[%s249 + $0x38] sm:$0xff]
      %v618 = vperm.slane %v608, 0
      %vm619 = vcmask 523264
      %v621 = vsel %vm619, %v605, 0
      %v624 = vsel %vm619, %v606, 0
      %v627 = vsel %vm619, %v607, 0
      %629 = vmatpush.msra.mxu0 0.0
      %630 = vmatpush.msra.mxu0 0.0
      %631 = vmatpush.msra.mxu0 0.0
      %632 = vmatpush.msra.mxu0 0.0
      %633 = vmatpush.msra.mxu0 0.0
      %634 = vmatpush.msra.mxu0 0.0
      %635 = vmatpush.msra.mxu0 0.0
      %636 = vmatpush.msra.mxu0 0.0
      %637 = vmatpush.msra.mxu0 %v617
      %638 = vmatpush.msra.mxu0 %v616
      %639 = vmatpush.msra.mxu0 %v615
      %640 = vmatpush.msra.mxu0 %v614
      %641 = vmatpush.msra.mxu0 %v613
      %642 = vmatpush.msra.mxu0 %v612
      %643 = vmatpush.msra.mxu0 %v611
      %644 = vmatpush.msra.mxu0 %v610
      %645 = vmatmul.f32.gmra.mxu0 %v621
      %v646 = vpop.f32.mrf.mxu0
      %v647 = vadd.f32 %v618, %v646
      %648 = vmatmul.f32.gmra.mxu0 %v624
      %v649 = vpop.f32.mrf.mxu0
      %v650 = vadd.f32 %v618, %v649
      %651 = vmatmul.f32.gmra.mxu0 %v627
      %v652 = vpop.f32.mrf.mxu0
      %v653 = vadd.f32 %v618, %v652
      %654 = vdwg.mxu0
      %v655 = vld [vmem:[%s249 + $0x40] sm:$0xff]
      %v656 = vld [vmem:[%s249 + $0x48] sm:$0xff]
      %v657 = vld [vmem:[%s249 + $0x50] sm:$0xff]
      %v658 = vld [vmem:[%s249 + $0x58] sm:$0xff]
      %v659 = vld [vmem:[%s249 + $0x60] sm:$0xff]
      %v660 = vld [vmem:[%s249 + $0x68] sm:$0xff]
      %v661 = vld [vmem:[%s249 + $0x70] sm:$0xff]
      %v662 = vld [vmem:[%s249 + $0x78] sm:$0xff]
      %v663 = vperm.slane %v608, 1
      %664 = vmatpush.msra.mxu0 0.0
      %665 = vmatpush.msra.mxu0 0.0
      %666 = vmatpush.msra.mxu0 0.0
      %667 = vmatpush.msra.mxu0 0.0
      %668 = vmatpush.msra.mxu0 0.0
      %669 = vmatpush.msra.mxu0 0.0
      %670 = vmatpush.msra.mxu0 0.0
      %671 = vmatpush.msra.mxu0 0.0
      %672 = vmatpush.msra.mxu0 %v662
      %673 = vmatpush.msra.mxu0 %v661
      %674 = vmatpush.msra.mxu0 %v660
      %675 = vmatpush.msra.mxu0 %v659
      %676 = vmatpush.msra.mxu0 %v658
      %677 = vmatpush.msra.mxu0 %v657
      %678 = vmatpush.msra.mxu0 %v656
      %679 = vmatpush.msra.mxu0 %v655
      %680 = vmatmul.f32.gmra.mxu0 %v621
      %v681 = vpop.f32.mrf.mxu0
      %v682 = vadd.f32 %v663, %v681
      %683 = vmatmul.f32.gmra.mxu0 %v624
      %v684 = vpop.f32.mrf.mxu0
      %v685 = vadd.f32 %v663, %v684
      %686 = vmatmul.f32.gmra.mxu0 %v627
      %v687 = vpop.f32.mrf.mxu0
      %v688 = vadd.f32 %v663, %v687
      %689 = vdwg.mxu0
      %v690 = vld [vmem:[%s249 + $0x80] sm:$0xff]
      %v691 = vld [vmem:[%s249 + $0x88] sm:$0xff]
      %v692 = vld [vmem:[%s249 + $0x90] sm:$0xff]
      %v693 = vld [vmem:[%s249 + $0x98] sm:$0xff]
      %v694 = vld [vmem:[%s249 + $0xa0] sm:$0xff]
      %v695 = vld [vmem:[%s249 + $0xa8] sm:$0xff]
      %v696 = vld [vmem:[%s249 + $0xb0] sm:$0xff]
      %v697 = vld [vmem:[%s249 + $0xb8] sm:$0xff]
      %v698 = vperm.slane %v608, 2
      %699 = vmatpush.msra.mxu0 0.0
      %700 = vmatpush.msra.mxu0 0.0
      %701 = vmatpush.msra.mxu0 0.0
      %702 = vmatpush.msra.mxu0 0.0
      %703 = vmatpush.msra.mxu0 0.0
      %704 = vmatpush.msra.mxu0 0.0
      %705 = vmatpush.msra.mxu0 0.0
      %706 = vmatpush.msra.mxu0 0.0
      %707 = vmatpush.msra.mxu0 %v697
      %708 = vmatpush.msra.mxu0 %v696
      %709 = vmatpush.msra.mxu0 %v695
      %710 = vmatpush.msra.mxu0 %v694
      %711 = vmatpush.msra.mxu0 %v693
      %712 = vmatpush.msra.mxu0 %v692
      %713 = vmatpush.msra.mxu0 %v691
      %714 = vmatpush.msra.mxu0 %v690
      %715 = vmatmul.f32.gmra.mxu0 %v621
      %v716 = vpop.f32.mrf.mxu0
      %v717 = vadd.f32 %v698, %v716
      %718 = vmatmul.f32.gmra.mxu0 %v624
      %v719 = vpop.f32.mrf.mxu0
      %v720 = vadd.f32 %v698, %v719
      %721 = vmatmul.f32.gmra.mxu0 %v627
      %v722 = vpop.f32.mrf.mxu0
      %v723 = vadd.f32 %v698, %v722
      %724 = vdwg.mxu0
      %v725 = vld [vmem:[%s254] sm:$0xff]
      %v726 = vld [vmem:[%s254 + $0x8] sm:$0xff]
      %v727 = vld [vmem:[%s254 + $0x10] sm:$0xff]
      %v728 = vld [vmem:[%s254 + $0x18] sm:$0xff]
      %v729 = vld [vmem:[%s254 + $0x20] sm:$0xff]
      %v730 = vld [vmem:[%s254 + $0x28] sm:$0xff]
      %v731 = vld [vmem:[%s254 + $0x30] sm:$0xff]
      %v732 = vld [vmem:[%s254 + $0x38] sm:$0xff]
      %v733 = vperm.slane %v609, 0
      %734 = vmatpush.msra.mxu0 0.0
      %735 = vmatpush.msra.mxu0 0.0
      %736 = vmatpush.msra.mxu0 0.0
      %737 = vmatpush.msra.mxu0 0.0
      %738 = vmatpush.msra.mxu0 0.0
      %739 = vmatpush.msra.mxu0 0.0
      %740 = vmatpush.msra.mxu0 0.0
      %741 = vmatpush.msra.mxu0 0.0
      %742 = vmatpush.msra.mxu0 %v732
      %743 = vmatpush.msra.mxu0 %v731
      %744 = vmatpush.msra.mxu0 %v730
      %745 = vmatpush.msra.mxu0 %v729
      %746 = vmatpush.msra.mxu0 %v728
      %747 = vmatpush.msra.mxu0 %v727
      %748 = vmatpush.msra.mxu0 %v726
      %749 = vmatpush.msra.mxu0 %v725
      %750 = vmatmul.f32.gmra.mxu0 %v621
      %v751 = vpop.f32.mrf.mxu0
      %v752 = vadd.f32 %v733, %v751
      %753 = vmatmul.f32.gmra.mxu0 %v624
      %v754 = vpop.f32.mrf.mxu0
      %v755 = vadd.f32 %v733, %v754
      %756 = vmatmul.f32.gmra.mxu0 %v627
      %v757 = vpop.f32.mrf.mxu0
      %v758 = vadd.f32 %v733, %v757
      %759 = vdwg.mxu0
      %v760 = vld [vmem:[%s254 + $0x40] sm:$0xff]
      %v761 = vld [vmem:[%s254 + $0x48] sm:$0xff]
      %v762 = vld [vmem:[%s254 + $0x50] sm:$0xff]
      %v763 = vld [vmem:[%s254 + $0x58] sm:$0xff]
      %v764 = vld [vmem:[%s254 + $0x60] sm:$0xff]
      %v765 = vld [vmem:[%s254 + $0x68] sm:$0xff]
      %v766 = vld [vmem:[%s254 + $0x70] sm:$0xff]
      %v767 = vld [vmem:[%s254 + $0x78] sm:$0xff]
      %vm768 = vcmask 130048
      %v770 = vsel %vm768, %v647, 0
      %v773 = vsel %vm768, %v650, 0
      %v776 = vsel %vm768, %v653, 0
      %v779 = vsel %vm768, %v682, 0
      %v782 = vsel %vm768, %v685, 0
      %v785 = vsel %vm768, %v688, 0
      %787 = vmatpush.xpose.msra.mxu0 0.0
      %788 = vmatpush.xpose.msra.mxu0 0.0
      %789 = vmatpush.xpose.msra.mxu0 0.0
      %790 = vmatpush.xpose.msra.mxu0 0.0
      %791 = vmatpush.xpose.msra.mxu0 0.0
      %792 = vmatpush.xpose.msra.mxu0 0.0
      %793 = vmatpush.xpose.msra.mxu0 0.0
      %794 = vmatpush.xpose.msra.mxu0 0.0
      %795 = vmatpush.xpose.msra.mxu0 0.0
      %796 = vmatpush.xpose.msra.mxu0 0.0
      %797 = vmatpush.xpose.msra.mxu0 0.0
      %798 = vmatpush.xpose.msra.mxu0 0.0
      %799 = vmatpush.xpose.msra.mxu0 0.0
      %800 = vmatpush.xpose.msra.mxu0 %v785
      %801 = vmatpush.xpose.msra.mxu0 %v782
      %802 = vmatpush.xpose.msra.mxu0 %v779
      %803 = vmatmul.f32.gmra.mxu0 %v770
      %v804 = vpop.f32.mrf.mxu0
      %v805 = vadd.f32 0.0, %v804
      %806 = vmatmul.f32.gmra.mxu0 %v773
      %v807 = vpop.f32.mrf.mxu0
      %v808 = vadd.f32 0.0, %v807
      %809 = vmatmul.f32.gmra.mxu0 %v776
      %v810 = vpop.f32.mrf.mxu0
      %v811 = vadd.f32 0.0, %v810
      %812 = vdwg.mxu0
      %v813 = vmul.f32 %v805, 0.25
      %v814 = vmul.f32 %v808, 0.25
      %v815 = vmul.f32 %v811, 0.25
      %v816 = vadd.f32 %v813, %v593
      %v817 = vadd.f32 %v814, %v594
      %v818 = vadd.f32 %v815, %v595
      %vm819 = vcmask 138240
      %v820 = vsel %vm819, %v816, -inf
      %821 = vmax.xlane.f32.xlu0 %v820
      %v822 = vpop.xlane.xlu0 %821
      %v823 = vsel %vm819, %v817, -inf
      %824 = vmax.xlane.f32.xlu0 %v823
      %v825 = vpop.xlane.xlu0 %824
      %vm826 = vcmask 131072
      %v827 = vsel %vm826, %v818, -inf
      %828 = vmax.xlane.f32.xlu0 %v827
      %v829 = vpop.xlane.xlu0 %828
      %v830 = vsub.f32 %v816, %v822
      %v831 = vsub.f32 %v817, %v825
      %v832 = vsub.f32 %v818, %v829
      %v833 = vmul.f32 %v830, 1.442695
      %v834 = vpow.pop %v833
      %v835 = vmul.f32 %v831, 1.442695
      %v836 = vpow.pop %v835
      %v837 = vmul.f32 %v832, 1.442695
      %v838 = vpow.pop %v837
      %v839 = vsel %vm819, %v834, 0.0
      %840 = vadd.xlane.f32.xlu0 %v839
      %v841 = vpop.xlane.xlu0 %840
      %v842 = vsel %vm819, %v836, 0.0
      %843 = vadd.xlane.f32.xlu0 %v842
      %v844 = vpop.xlane.xlu0 %843
      %v845 = vsel %vm826, %v838, 0.0
      %846 = vadd.xlane.f32.xlu0 %v845
      %v847 = vpop.xlane.xlu0 %846
      %v849 = vsel %vm819, %v834, 0
      %v852 = vsel %vm819, %v836, 0
      %v855 = vsel %vm819, %v838, 0
      %vm857 = vcmask 1040384
      %v859 = vsel %vm857, %v723, 0
      %861 = vmatpush.msra.mxu0 0.0
      %862 = vmatpush.msra.mxu0 0.0
      %863 = vmatpush.msra.mxu0 0.0
      %864 = vmatpush.msra.mxu0 0.0
      %865 = vmatpush.msra.mxu0 0.0
      %866 = vmatpush.msra.mxu0 0.0
      %867 = vmatpush.msra.mxu0 0.0
      %868 = vmatpush.msra.mxu0 0.0
      %869 = vmatpush.msra.mxu0 0.0
      %870 = vmatpush.msra.mxu0 0.0
      %871 = vmatpush.msra.mxu0 0.0
      %872 = vmatpush.msra.mxu0 0.0
      %873 = vmatpush.msra.mxu0 0.0
      %874 = vmatpush.msra.mxu0 %v859
      %875 = vmatpush.msra.mxu0 %v720
      %876 = vmatpush.msra.mxu0 %v717
      %877 = vmatmul.f32.gmra.mxu0 %v849
      %v878 = vpop.f32.mrf.mxu0
      %v879 = vadd.f32 0.0, %v878
      %880 = vmatmul.f32.gmra.mxu0 %v852
      %v881 = vpop.f32.mrf.mxu0
      %v882 = vadd.f32 0.0, %v881
      %883 = vmatmul.f32.gmra.mxu0 %v855
      %v884 = vpop.f32.mrf.mxu0
      %v885 = vadd.f32 0.0, %v884
      %886 = vdwg.mxu0
      %v887 = vrcp.pop %v841
      %v888 = vrcp.pop %v844
      %v889 = vrcp.pop %v847
      %v890 = vmul.f32 %v879, %v887
      %v891 = vmul.f32 %v882, %v888
      %v892 = vmul.f32 %v885, %v889
      %v894 = vsel %vm768, %v890, 0
      %v897 = vsel %vm768, %v891, 0
      %v900 = vsel %vm768, %v892, 0
      %902 = vmatpush.msra.mxu0 0.0
      %903 = vmatpush.msra.mxu0 0.0
      %904 = vmatpush.msra.mxu0 0.0
      %905 = vmatpush.msra.mxu0 0.0
      %906 = vmatpush.msra.mxu0 0.0
      %907 = vmatpush.msra.mxu0 0.0
      %908 = vmatpush.msra.mxu0 0.0
      %909 = vmatpush.msra.mxu0 0.0
      %910 = vmatpush.msra.mxu0 0.0
      %911 = vmatpush.msra.mxu0 0.0
      %912 = vmatpush.msra.mxu0 0.0
      %913 = vmatpush.msra.mxu0 0.0
      %914 = vmatpush.msra.mxu0 0.0
      %915 = vmatpush.msra.mxu0 0.0
      %916 = vmatpush.msra.mxu0 %v761
      %917 = vmatpush.msra.mxu0 %v760
      %918 = vmatmul.f32.gmra.mxu0 %v894
      %v919 = vpop.f32.mrf.mxu0
      %v920 = vadd.f32 0.0, %v919
      %921 = vmatmul.f32.gmra.mxu0 %v897
      %v922 = vpop.f32.mrf.mxu0
      %v923 = vadd.f32 0.0, %v922
      %924 = vmatmul.f32.gmra.mxu0 %v900
      %v925 = vpop.f32.mrf.mxu0
      %v926 = vadd.f32 0.0, %v925
      %927 = vdwg.mxu0
      %v928 = vadd.f32 %v752, %v920
      %v929 = vadd.f32 %v755, %v923
      %v930 = vadd.f32 %v758, %v926
      %931 = vrot.lane.b32.xlu0 %v647, 112
      %v932 = vpop.permute.xlu0 %931
      %933 = vrot.lane.b32.xlu0 %v650, 112
      %v934 = vpop.permute.xlu0 %933
      %935 = vrot.lane.b32.xlu0 %v653, 112
      %v936 = vpop.permute.xlu0 %935
      %937 = vrot.lane.b32.xlu0 %v682, 112
      %v938 = vpop.permute.xlu0 %937
      %939 = vrot.lane.b32.xlu0 %v685, 112
      %v940 = vpop.permute.xlu0 %939
      %941 = vrot.lane.b32.xlu0 %v688, 112
      %v942 = vpop.permute.xlu0 %941
      %v943 = vsel %vm768, %v932, 0
      %v945 = vsel %vm768, %v934, 0
      %v947 = vsel %vm768, %v936, 0
      %v949 = vsel %vm768, %v938, 0
      %v951 = vsel %vm768, %v940, 0
      %v953 = vsel %vm768, %v942, 0
      %955 = vmatpush.xpose.msra.mxu0 0.0
      %956 = vmatpush.xpose.msra.mxu0 0.0
      %957 = vmatpush.xpose.msra.mxu0 0.0
      %958 = vmatpush.xpose.msra.mxu0 0.0
      %959 = vmatpush.xpose.msra.mxu0 0.0
      %960 = vmatpush.xpose.msra.mxu0 0.0
      %961 = vmatpush.xpose.msra.mxu0 0.0
      %962 = vmatpush.xpose.msra.mxu0 0.0
      %963 = vmatpush.xpose.msra.mxu0 0.0
      %964 = vmatpush.xpose.msra.mxu0 0.0
      %965 = vmatpush.xpose.msra.mxu0 0.0
      %966 = vmatpush.xpose.msra.mxu0 0.0
      %967 = vmatpush.xpose.msra.mxu0 0.0
      %968 = vmatpush.xpose.msra.mxu0 %v953
      %969 = vmatpush.xpose.msra.mxu0 %v951
      %970 = vmatpush.xpose.msra.mxu0 %v949
      %971 = vmatmul.f32.gmra.mxu0 %v943
      %v972 = vpop.f32.mrf.mxu0
      %v973 = vadd.f32 0.0, %v972
      %974 = vmatmul.f32.gmra.mxu0 %v945
      %v975 = vpop.f32.mrf.mxu0
      %v976 = vadd.f32 0.0, %v975
      %977 = vmatmul.f32.gmra.mxu0 %v947
      %v978 = vpop.f32.mrf.mxu0
      %v979 = vadd.f32 0.0, %v978
      %980 = vdwg.mxu0
      %v981 = vmul.f32 %v973, 0.25
      %v982 = vmul.f32 %v976, 0.25
      %v983 = vmul.f32 %v979, 0.25
      %v984 = vadd.f32 %v981, %v593
      %v985 = vadd.f32 %v982, %v594
      %v986 = vadd.f32 %v983, %v595
      %v987 = vsel %vm819, %v984, -inf
      %988 = vmax.xlane.f32.xlu0 %v987
      %v989 = vpop.xlane.xlu0 %988
      %v990 = vsel %vm819, %v985, -inf
      %991 = vmax.xlane.f32.xlu0 %v990
      %v992 = vpop.xlane.xlu0 %991
      %v993 = vsel %vm826, %v986, -inf
      %994 = vmax.xlane.f32.xlu0 %v993
      %v995 = vpop.xlane.xlu0 %994
      %v996 = vsub.f32 %v984, %v989
      %v997 = vsub.f32 %v985, %v992
      %v998 = vsub.f32 %v986, %v995
      %v999 = vmul.f32 %v996, 1.442695
      %v1000 = vpow.pop %v999
      %v1001 = vmul.f32 %v997, 1.442695
      %v1002 = vpow.pop %v1001
      %v1003 = vmul.f32 %v998, 1.442695
      %v1004 = vpow.pop %v1003
      %v1005 = vsel %vm819, %v1000, 0.0
      %1006 = vadd.xlane.f32.xlu0 %v1005
      %v1007 = vpop.xlane.xlu0 %1006
      %v1008 = vsel %vm819, %v1002, 0.0
      %1009 = vadd.xlane.f32.xlu0 %v1008
      %v1010 = vpop.xlane.xlu0 %1009
      %v1011 = vsel %vm826, %v1004, 0.0
      %1012 = vadd.xlane.f32.xlu0 %v1011
      %v1013 = vpop.xlane.xlu0 %1012
      %1016 = vrot.lane.b32.xlu0 %v717, 112
      %v1017 = vpop.permute.xlu0 %1016
      %1018 = vrot.lane.b32.xlu0 %v720, 112
      %v1019 = vpop.permute.xlu0 %1018
      %1020 = vrot.lane.b32.xlu0 %v723, 112
      %v1021 = vpop.permute.xlu0 %1020
      %v1025 = vsel %vm819, %v1000, 0
      %v1028 = vsel %vm819, %v1002, 0
      %v1031 = vsel %vm819, %v1004, 0
      %v1033 = vsel %vm857, %v1021, 0
      %1035 = vmatpush.msra.mxu0 0.0
      %1036 = vmatpush.msra.mxu0 0.0
      %1037 = vmatpush.msra.mxu0 0.0
      %1038 = vmatpush.msra.mxu0 0.0
      %1039 = vmatpush.msra.mxu0 0.0
      %1040 = vmatpush.msra.mxu0 0.0
      %1041 = vmatpush.msra.mxu0 0.0
      %1042 = vmatpush.msra.mxu0 0.0
      %1043 = vmatpush.msra.mxu0 0.0
      %1044 = vmatpush.msra.mxu0 0.0
      %1045 = vmatpush.msra.mxu0 0.0
      %1046 = vmatpush.msra.mxu0 0.0
      %1047 = vmatpush.msra.mxu0 0.0
      %1048 = vmatpush.msra.mxu0 %v1033
      %1049 = vmatpush.msra.mxu0 %v1019
      %1050 = vmatpush.msra.mxu0 %v1017
      %1051 = vmatmul.f32.gmra.mxu0 %v1025
      %v1052 = vpop.f32.mrf.mxu0
      %v1053 = vadd.f32 0.0, %v1052
      %1054 = vmatmul.f32.gmra.mxu0 %v1028
      %v1055 = vpop.f32.mrf.mxu0
      %v1056 = vadd.f32 0.0, %v1055
      %1057 = vmatmul.f32.gmra.mxu0 %v1031
      %v1058 = vpop.f32.mrf.mxu0
      %v1059 = vadd.f32 0.0, %v1058
      %1060 = vdwg.mxu0
      %v1061 = vrcp.pop %v1007
      %v1062 = vrcp.pop %v1010
      %v1063 = vrcp.pop %v1013
      %v1064 = vmul.f32 %v1053, %v1061
      %v1065 = vmul.f32 %v1056, %v1062
      %v1066 = vmul.f32 %v1059, %v1063
      %v1068 = vsel %vm768, %v1064, 0
      %v1071 = vsel %vm768, %v1065, 0
      %v1074 = vsel %vm768, %v1066, 0
      %1076 = vmatpush.msra.mxu0 0.0
      %1077 = vmatpush.msra.mxu0 0.0
      %1078 = vmatpush.msra.mxu0 0.0
      %1079 = vmatpush.msra.mxu0 0.0
      %1080 = vmatpush.msra.mxu0 0.0
      %1081 = vmatpush.msra.mxu0 0.0
      %1082 = vmatpush.msra.mxu0 0.0
      %1083 = vmatpush.msra.mxu0 0.0
      %1084 = vmatpush.msra.mxu0 0.0
      %1085 = vmatpush.msra.mxu0 0.0
      %1086 = vmatpush.msra.mxu0 0.0
      %1087 = vmatpush.msra.mxu0 0.0
      %1088 = vmatpush.msra.mxu0 0.0
      %1089 = vmatpush.msra.mxu0 0.0
      %1090 = vmatpush.msra.mxu0 %v763
      %1091 = vmatpush.msra.mxu0 %v762
      %1092 = vmatmul.f32.gmra.mxu0 %v1068
      %v1093 = vpop.f32.mrf.mxu0
      %v1094 = vadd.f32 0.0, %v1093
      %1095 = vmatmul.f32.gmra.mxu0 %v1071
      %v1096 = vpop.f32.mrf.mxu0
      %v1097 = vadd.f32 0.0, %v1096
      %1098 = vmatmul.f32.gmra.mxu0 %v1074
      %v1099 = vpop.f32.mrf.mxu0
      %v1100 = vadd.f32 0.0, %v1099
      %1101 = vdwg.mxu0
      %v1102 = vadd.f32 %v928, %v1094
      %v1103 = vadd.f32 %v929, %v1097
      %v1104 = vadd.f32 %v930, %v1100
      %1105 = vrot.lane.b32.xlu0 %v647, 96
      %v1106 = vpop.permute.xlu0 %1105
      %1107 = vrot.lane.b32.xlu0 %v650, 96
      %v1108 = vpop.permute.xlu0 %1107
      %1109 = vrot.lane.b32.xlu0 %v653, 96
      %v1110 = vpop.permute.xlu0 %1109
      %1111 = vrot.lane.b32.xlu0 %v682, 96
      %v1112 = vpop.permute.xlu0 %1111
      %1113 = vrot.lane.b32.xlu0 %v685, 96
      %v1114 = vpop.permute.xlu0 %1113
      %1115 = vrot.lane.b32.xlu0 %v688, 96
      %v1116 = vpop.permute.xlu0 %1115
      %v1117 = vsel %vm768, %v1106, 0
      %v1119 = vsel %vm768, %v1108, 0
      %v1121 = vsel %vm768, %v1110, 0
      %v1123 = vsel %vm768, %v1112, 0
      %v1125 = vsel %vm768, %v1114, 0
      %v1127 = vsel %vm768, %v1116, 0
      %1129 = vmatpush.xpose.msra.mxu0 0.0
      %1130 = vmatpush.xpose.msra.mxu0 0.0
      %1131 = vmatpush.xpose.msra.mxu0 0.0
      %1132 = vmatpush.xpose.msra.mxu0 0.0
      %1133 = vmatpush.xpose.msra.mxu0 0.0
      %1134 = vmatpush.xpose.msra.mxu0 0.0
      %1135 = vmatpush.xpose.msra.mxu0 0.0
      %1136 = vmatpush.xpose.msra.mxu0 0.0
      %1137 = vmatpush.xpose.msra.mxu0 0.0
      %1138 = vmatpush.xpose.msra.mxu0 0.0
      %1139 = vmatpush.xpose.msra.mxu0 0.0
      %1140 = vmatpush.xpose.msra.mxu0 0.0
      %1141 = vmatpush.xpose.msra.mxu0 0.0
      %1142 = vmatpush.xpose.msra.mxu0 %v1127
      %1143 = vmatpush.xpose.msra.mxu0 %v1125
      %1144 = vmatpush.xpose.msra.mxu0 %v1123
      %1145 = vmatmul.f32.gmra.mxu0 %v1117
      %v1146 = vpop.f32.mrf.mxu0
      %v1147 = vadd.f32 0.0, %v1146
      %1148 = vmatmul.f32.gmra.mxu0 %v1119
      %v1149 = vpop.f32.mrf.mxu0
      %v1150 = vadd.f32 0.0, %v1149
      %1151 = vmatmul.f32.gmra.mxu0 %v1121
      %v1152 = vpop.f32.mrf.mxu0
      %v1153 = vadd.f32 0.0, %v1152
      %1154 = vdwg.mxu0
      %v1155 = vmul.f32 %v1147, 0.25
      %v1156 = vmul.f32 %v1150, 0.25
      %v1157 = vmul.f32 %v1153, 0.25
      %v1158 = vadd.f32 %v1155, %v593
      %v1159 = vadd.f32 %v1156, %v594
      %v1160 = vadd.f32 %v1157, %v595
      %v1161 = vsel %vm819, %v1158, -inf
      %1162 = vmax.xlane.f32.xlu0 %v1161
      %v1163 = vpop.xlane.xlu0 %1162
      %v1164 = vsel %vm819, %v1159, -inf
      %1165 = vmax.xlane.f32.xlu0 %v1164
      %v1166 = vpop.xlane.xlu0 %1165
      %v1167 = vsel %vm826, %v1160, -inf
      %1168 = vmax.xlane.f32.xlu0 %v1167
      %v1169 = vpop.xlane.xlu0 %1168
      %v1170 = vsub.f32 %v1158, %v1163
      %v1171 = vsub.f32 %v1159, %v1166
      %v1172 = vsub.f32 %v1160, %v1169
      %v1173 = vmul.f32 %v1170, 1.442695
      %v1174 = vpow.pop %v1173
      %v1175 = vmul.f32 %v1171, 1.442695
      %v1176 = vpow.pop %v1175
      %v1177 = vmul.f32 %v1172, 1.442695
      %v1178 = vpow.pop %v1177
      %v1179 = vsel %vm819, %v1174, 0.0
      %1180 = vadd.xlane.f32.xlu0 %v1179
      %v1181 = vpop.xlane.xlu0 %1180
      %v1182 = vsel %vm819, %v1176, 0.0
      %1183 = vadd.xlane.f32.xlu0 %v1182
      %v1184 = vpop.xlane.xlu0 %1183
      %v1185 = vsel %vm826, %v1178, 0.0
      %1186 = vadd.xlane.f32.xlu0 %v1185
      %v1187 = vpop.xlane.xlu0 %1186
      %1188 = vrot.lane.b32.xlu0 %v717, 96
      %v1189 = vpop.permute.xlu0 %1188
      %1190 = vrot.lane.b32.xlu0 %v720, 96
      %v1191 = vpop.permute.xlu0 %1190
      %1192 = vrot.lane.b32.xlu0 %v723, 96
      %v1193 = vpop.permute.xlu0 %1192
      %v1197 = vsel %vm819, %v1174, 0
      %v1200 = vsel %vm819, %v1176, 0
      %v1203 = vsel %vm819, %v1178, 0
      %v1205 = vsel %vm857, %v1193, 0
      %1207 = vmatpush.msra.mxu0 0.0
      %1208 = vmatpush.msra.mxu0 0.0
      %1209 = vmatpush.msra.mxu0 0.0
      %1210 = vmatpush.msra.mxu0 0.0
      %1211 = vmatpush.msra.mxu0 0.0
      %1212 = vmatpush.msra.mxu0 0.0
      %1213 = vmatpush.msra.mxu0 0.0
      %1214 = vmatpush.msra.mxu0 0.0
      %1215 = vmatpush.msra.mxu0 0.0
      %1216 = vmatpush.msra.mxu0 0.0
      %1217 = vmatpush.msra.mxu0 0.0
      %1218 = vmatpush.msra.mxu0 0.0
      %1219 = vmatpush.msra.mxu0 0.0
      %1220 = vmatpush.msra.mxu0 %v1205
      %1221 = vmatpush.msra.mxu0 %v1191
      %1222 = vmatpush.msra.mxu0 %v1189
      %1223 = vmatmul.f32.gmra.mxu0 %v1197
      %v1224 = vpop.f32.mrf.mxu0
      %v1225 = vadd.f32 0.0, %v1224
      %1226 = vmatmul.f32.gmra.mxu0 %v1200
      %v1227 = vpop.f32.mrf.mxu0
      %v1228 = vadd.f32 0.0, %v1227
      %1229 = vmatmul.f32.gmra.mxu0 %v1203
      %v1230 = vpop.f32.mrf.mxu0
      %v1231 = vadd.f32 0.0, %v1230
      %1232 = vdwg.mxu0
      %v1233 = vrcp.pop %v1181
      %v1234 = vrcp.pop %v1184
      %v1235 = vrcp.pop %v1187
      %v1236 = vmul.f32 %v1225, %v1233
      %v1237 = vmul.f32 %v1228, %v1234
      %v1238 = vmul.f32 %v1231, %v1235
      %v1240 = vsel %vm768, %v1236, 0
      %v1243 = vsel %vm768, %v1237, 0
      %v1246 = vsel %vm768, %v1238, 0
      %1248 = vmatpush.msra.mxu0 0.0
      %1249 = vmatpush.msra.mxu0 0.0
      %1250 = vmatpush.msra.mxu0 0.0
      %1251 = vmatpush.msra.mxu0 0.0
      %1252 = vmatpush.msra.mxu0 0.0
      %1253 = vmatpush.msra.mxu0 0.0
      %1254 = vmatpush.msra.mxu0 0.0
      %1255 = vmatpush.msra.mxu0 0.0
      %1256 = vmatpush.msra.mxu0 0.0
      %1257 = vmatpush.msra.mxu0 0.0
      %1258 = vmatpush.msra.mxu0 0.0
      %1259 = vmatpush.msra.mxu0 0.0
      %1260 = vmatpush.msra.mxu0 0.0
      %1261 = vmatpush.msra.mxu0 0.0
      %1262 = vmatpush.msra.mxu0 %v765
      %1263 = vmatpush.msra.mxu0 %v764
      %1264 = vmatmul.f32.gmra.mxu0 %v1240
      %v1265 = vpop.f32.mrf.mxu0
      %v1266 = vadd.f32 0.0, %v1265
      %1267 = vmatmul.f32.gmra.mxu0 %v1243
      %v1268 = vpop.f32.mrf.mxu0
      %v1269 = vadd.f32 0.0, %v1268
      %1270 = vmatmul.f32.gmra.mxu0 %v1246
      %v1271 = vpop.f32.mrf.mxu0
      %v1272 = vadd.f32 0.0, %v1271
      %1273 = vdwg.mxu0
      %v1274 = vadd.f32 %v1102, %v1266
      %v1275 = vadd.f32 %v1103, %v1269
      %v1276 = vadd.f32 %v1104, %v1272
      %1277 = vrot.lane.b32.xlu0 %v647, 80
      %v1278 = vpop.permute.xlu0 %1277
      %1279 = vrot.lane.b32.xlu0 %v650, 80
      %v1280 = vpop.permute.xlu0 %1279
      %1281 = vrot.lane.b32.xlu0 %v653, 80
      %v1282 = vpop.permute.xlu0 %1281
      %1283 = vrot.lane.b32.xlu0 %v682, 80
      %v1284 = vpop.permute.xlu0 %1283
      %1285 = vrot.lane.b32.xlu0 %v685, 80
      %v1286 = vpop.permute.xlu0 %1285
      %1287 = vrot.lane.b32.xlu0 %v688, 80
      %v1288 = vpop.permute.xlu0 %1287
      %v1289 = vsel %vm768, %v1278, 0
      %v1291 = vsel %vm768, %v1280, 0
      %v1293 = vsel %vm768, %v1282, 0
      %v1295 = vsel %vm768, %v1284, 0
      %v1297 = vsel %vm768, %v1286, 0
      %v1299 = vsel %vm768, %v1288, 0
      %1301 = vmatpush.xpose.msra.mxu0 0.0
      %1302 = vmatpush.xpose.msra.mxu0 0.0
      %1303 = vmatpush.xpose.msra.mxu0 0.0
      %1304 = vmatpush.xpose.msra.mxu0 0.0
      %1305 = vmatpush.xpose.msra.mxu0 0.0
      %1306 = vmatpush.xpose.msra.mxu0 0.0
      %1307 = vmatpush.xpose.msra.mxu0 0.0
      %1308 = vmatpush.xpose.msra.mxu0 0.0
      %1309 = vmatpush.xpose.msra.mxu0 0.0
      %1310 = vmatpush.xpose.msra.mxu0 0.0
      %1311 = vmatpush.xpose.msra.mxu0 0.0
      %1312 = vmatpush.xpose.msra.mxu0 0.0
      %1313 = vmatpush.xpose.msra.mxu0 0.0
      %1314 = vmatpush.xpose.msra.mxu0 %v1299
      %1315 = vmatpush.xpose.msra.mxu0 %v1297
      %1316 = vmatpush.xpose.msra.mxu0 %v1295
      %1317 = vmatmul.f32.gmra.mxu0 %v1289
      %v1318 = vpop.f32.mrf.mxu0
      %v1319 = vadd.f32 0.0, %v1318
      %1320 = vmatmul.f32.gmra.mxu0 %v1291
      %v1321 = vpop.f32.mrf.mxu0
      %v1322 = vadd.f32 0.0, %v1321
      %1323 = vmatmul.f32.gmra.mxu0 %v1293
      %v1324 = vpop.f32.mrf.mxu0
      %v1325 = vadd.f32 0.0, %v1324
      %1326 = vdwg.mxu0
      %v1327 = vmul.f32 %v1319, 0.25
      %v1328 = vmul.f32 %v1322, 0.25
      %v1329 = vmul.f32 %v1325, 0.25
      %v1330 = vadd.f32 %v1327, %v593
      %v1331 = vadd.f32 %v1328, %v594
      %v1332 = vadd.f32 %v1329, %v595
      %v1333 = vsel %vm819, %v1330, -inf
      %1334 = vmax.xlane.f32.xlu0 %v1333
      %v1335 = vpop.xlane.xlu0 %1334
      %v1336 = vsel %vm819, %v1331, -inf
      %1337 = vmax.xlane.f32.xlu0 %v1336
      %v1338 = vpop.xlane.xlu0 %1337
      %v1339 = vsel %vm826, %v1332, -inf
      %1340 = vmax.xlane.f32.xlu0 %v1339
      %v1341 = vpop.xlane.xlu0 %1340
      %v1342 = vsub.f32 %v1330, %v1335
      %v1343 = vsub.f32 %v1331, %v1338
      %v1344 = vsub.f32 %v1332, %v1341
      %v1345 = vmul.f32 %v1342, 1.442695
      %v1346 = vpow.pop %v1345
      %v1347 = vmul.f32 %v1343, 1.442695
      %v1348 = vpow.pop %v1347
      %v1349 = vmul.f32 %v1344, 1.442695
      %v1350 = vpow.pop %v1349
      %v1351 = vsel %vm819, %v1346, 0.0
      %1352 = vadd.xlane.f32.xlu0 %v1351
      %v1353 = vpop.xlane.xlu0 %1352
      %v1354 = vsel %vm819, %v1348, 0.0
      %1355 = vadd.xlane.f32.xlu0 %v1354
      %v1356 = vpop.xlane.xlu0 %1355
      %v1357 = vsel %vm826, %v1350, 0.0
      %1358 = vadd.xlane.f32.xlu0 %v1357
      %v1359 = vpop.xlane.xlu0 %1358
      %1360 = vrot.lane.b32.xlu0 %v717, 80
      %v1361 = vpop.permute.xlu0 %1360
      %1362 = vrot.lane.b32.xlu0 %v720, 80
      %v1363 = vpop.permute.xlu0 %1362
      %1364 = vrot.lane.b32.xlu0 %v723, 80
      %v1365 = vpop.permute.xlu0 %1364
      %v1369 = vsel %vm819, %v1346, 0
      %v1372 = vsel %vm819, %v1348, 0
      %v1375 = vsel %vm819, %v1350, 0
      %v1377 = vsel %vm857, %v1365, 0
      %1379 = vmatpush.msra.mxu0 0.0
      %1380 = vmatpush.msra.mxu0 0.0
      %1381 = vmatpush.msra.mxu0 0.0
      %1382 = vmatpush.msra.mxu0 0.0
      %1383 = vmatpush.msra.mxu0 0.0
      %1384 = vmatpush.msra.mxu0 0.0
      %1385 = vmatpush.msra.mxu0 0.0
      %1386 = vmatpush.msra.mxu0 0.0
      %1387 = vmatpush.msra.mxu0 0.0
      %1388 = vmatpush.msra.mxu0 0.0
      %1389 = vmatpush.msra.mxu0 0.0
      %1390 = vmatpush.msra.mxu0 0.0
      %1391 = vmatpush.msra.mxu0 0.0
      %1392 = vmatpush.msra.mxu0 %v1377
      %1393 = vmatpush.msra.mxu0 %v1363
      %1394 = vmatpush.msra.mxu0 %v1361
      %1395 = vmatmul.f32.gmra.mxu0 %v1369
      %v1396 = vpop.f32.mrf.mxu0
      %v1397 = vadd.f32 0.0, %v1396
      %1398 = vmatmul.f32.gmra.mxu0 %v1372
      %v1399 = vpop.f32.mrf.mxu0
      %v1400 = vadd.f32 0.0, %v1399
      %1401 = vmatmul.f32.gmra.mxu0 %v1375
      %v1402 = vpop.f32.mrf.mxu0
      %v1403 = vadd.f32 0.0, %v1402
      %1404 = vdwg.mxu0
      %v1405 = vrcp.pop %v1353
      %v1406 = vrcp.pop %v1356
      %v1407 = vrcp.pop %v1359
      %v1408 = vmul.f32 %v1397, %v1405
      %v1409 = vmul.f32 %v1400, %v1406
      %v1410 = vmul.f32 %v1403, %v1407
      %v1412 = vsel %vm768, %v1408, 0
      %v1415 = vsel %vm768, %v1409, 0
      %v1418 = vsel %vm768, %v1410, 0
      %1420 = vmatpush.msra.mxu0 0.0
      %1421 = vmatpush.msra.mxu0 0.0
      %1422 = vmatpush.msra.mxu0 0.0
      %1423 = vmatpush.msra.mxu0 0.0
      %1424 = vmatpush.msra.mxu0 0.0
      %1425 = vmatpush.msra.mxu0 0.0
      %1426 = vmatpush.msra.mxu0 0.0
      %1427 = vmatpush.msra.mxu0 0.0
      %1428 = vmatpush.msra.mxu0 0.0
      %1429 = vmatpush.msra.mxu0 0.0
      %1430 = vmatpush.msra.mxu0 0.0
      %1431 = vmatpush.msra.mxu0 0.0
      %1432 = vmatpush.msra.mxu0 0.0
      %1433 = vmatpush.msra.mxu0 0.0
      %1434 = vmatpush.msra.mxu0 %v767
      %1435 = vmatpush.msra.mxu0 %v766
      %1436 = vmatmul.f32.gmra.mxu0 %v1412
      %v1437 = vpop.f32.mrf.mxu0
      %v1438 = vadd.f32 0.0, %v1437
      %1439 = vmatmul.f32.gmra.mxu0 %v1415
      %v1440 = vpop.f32.mrf.mxu0
      %v1441 = vadd.f32 0.0, %v1440
      %1442 = vmatmul.f32.gmra.mxu0 %v1418
      %v1443 = vpop.f32.mrf.mxu0
      %v1444 = vadd.f32 0.0, %v1443
      %1445 = vdwg.mxu0
      %v1446 = vadd.f32 %v1274, %v1438
      %v1447 = vadd.f32 %v1275, %v1441
      %v1448 = vadd.f32 %v1276, %v1444
      %v1449 = vmax.f32 %v1446, 0.0
      %v1450 = vmax.f32 %v1447, 0.0
      %v1451 = vmax.f32 %v1448, 0.0
      %v1452 = vld [vmem:[%s249 + $0xc0] sm:$0xff]
      %v1453 = vld [vmem:[%s249 + $0xc8] sm:$0xff]
      %v1454 = vld [vmem:[%s249 + $0xd0] sm:$0xff]
      %v1455 = vld [vmem:[%s249 + $0xd8] sm:$0xff]
      %v1456 = vld [vmem:[%s249 + $0xe0] sm:$0xff]
      %v1457 = vld [vmem:[%s249 + $0xe8] sm:$0xff]
      %v1458 = vld [vmem:[%s249 + $0xf0] sm:$0xff]
      %v1459 = vld [vmem:[%s249 + $0xf8] sm:$0xff]
      %v1460 = vld [vmem:[%s249 + $0x100] sm:$0xff]
      %v1461 = vld [vmem:[%s249 + $0x108] sm:$0xff]
      %v1462 = vld [vmem:[%s249 + $0x110] sm:$0xff]
      %v1463 = vld [vmem:[%s249 + $0x118] sm:$0xff]
      %v1464 = vld [vmem:[%s249 + $0x120] sm:$0xff]
      %v1465 = vld [vmem:[%s249 + $0x128] sm:$0xff]
      %v1466 = vld [vmem:[%s249 + $0x130] sm:$0xff]
      %v1467 = vld [vmem:[%s249 + $0x138] sm:$0xff]
      %v1468 = vperm.slane %v609, 1
      %1469 = vmatpush.msra.mxu0 %v1467
      %1470 = vmatpush.msra.mxu0 %v1466
      %1471 = vmatpush.msra.mxu0 %v1465
      %1472 = vmatpush.msra.mxu0 %v1464
      %1473 = vmatpush.msra.mxu0 %v1463
      %1474 = vmatpush.msra.mxu0 %v1462
      %1475 = vmatpush.msra.mxu0 %v1461
      %1476 = vmatpush.msra.mxu0 %v1460
      %1477 = vmatpush.msra.mxu0 %v1459
      %1478 = vmatpush.msra.mxu0 %v1458
      %1479 = vmatpush.msra.mxu0 %v1457
      %1480 = vmatpush.msra.mxu0 %v1456
      %1481 = vmatpush.msra.mxu0 %v1455
      %1482 = vmatpush.msra.mxu0 %v1454
      %1483 = vmatpush.msra.mxu0 %v1453
      %1484 = vmatpush.msra.mxu0 %v1452
      %1485 = vmatmul.f32.gmra.mxu0 %v1449
      %v1486 = vpop.f32.mrf.mxu0
      %v1487 = vadd.f32 %v1468, %v1486
      %1488 = vmatmul.f32.gmra.mxu0 %v1450
      %v1489 = vpop.f32.mrf.mxu0
      %v1490 = vadd.f32 %v1468, %v1489
      %1491 = vmatmul.f32.gmra.mxu0 %v1451
      %v1492 = vpop.f32.mrf.mxu0
      %v1493 = vadd.f32 %v1468, %v1492
      %1494 = vdwg.mxu0
      %v1495 = vadd.f32 %v605, %v1487
      %v1496 = vadd.f32 %v606, %v1490
      %v1497 = vadd.f32 %v607, %v1493
      %v1498 = vld [vmem:[%s249 + $0x288] sm:$0xff]
      %v1499 = vld [vmem:[%s254 + $0x108] sm:$0xff]
      %v1500 = vld [vmem:[%s249 + $0x148] sm:$0xff]
      %v1501 = vld [vmem:[%s249 + $0x150] sm:$0xff]
      %v1502 = vld [vmem:[%s249 + $0x158] sm:$0xff]
      %v1503 = vld [vmem:[%s249 + $0x160] sm:$0xff]
      %v1504 = vld [vmem:[%s249 + $0x168] sm:$0xff]
      %v1505 = vld [vmem:[%s249 + $0x170] sm:$0xff]
      %v1506 = vld [vmem:[%s249 + $0x178] sm:$0xff]
      %v1507 = vld [vmem:[%s249 + $0x180] sm:$0xff]
      %v1508 = vperm.slane %v1498, 0
      %v1510 = vsel %vm619, %v1495, 0
      %v1513 = vsel %vm619, %v1496, 0
      %v1516 = vsel %vm619, %v1497, 0
      %1518 = vmatpush.msra.mxu0 0.0
      %1519 = vmatpush.msra.mxu0 0.0
      %1520 = vmatpush.msra.mxu0 0.0
      %1521 = vmatpush.msra.mxu0 0.0
      %1522 = vmatpush.msra.mxu0 0.0
      %1523 = vmatpush.msra.mxu0 0.0
      %1524 = vmatpush.msra.mxu0 0.0
      %1525 = vmatpush.msra.mxu0 0.0
      %1526 = vmatpush.msra.mxu0 %v1507
      %1527 = vmatpush.msra.mxu0 %v1506
      %1528 = vmatpush.msra.mxu0 %v1505
      %1529 = vmatpush.msra.mxu0 %v1504
      %1530 = vmatpush.msra.mxu0 %v1503
      %1531 = vmatpush.msra.mxu0 %v1502
      %1532 = vmatpush.msra.mxu0 %v1501
      %1533 = vmatpush.msra.mxu0 %v1500
      %1534 = vmatmul.f32.gmra.mxu0 %v1510
      %v1535 = vpop.f32.mrf.mxu0
      %v1536 = vadd.f32 %v1508, %v1535
      %1537 = vmatmul.f32.gmra.mxu0 %v1513
      %v1538 = vpop.f32.mrf.mxu0
      %v1539 = vadd.f32 %v1508, %v1538
      %1540 = vmatmul.f32.gmra.mxu0 %v1516
      %v1541 = vpop.f32.mrf.mxu0
      %v1542 = vadd.f32 %v1508, %v1541
      %1543 = vdwg.mxu0
      %v1544 = vld [vmem:[%s249 + $0x188] sm:$0xff]
      %v1545 = vld [vmem:[%s249 + $0x190] sm:$0xff]
      %v1546 = vld [vmem:[%s249 + $0x198] sm:$0xff]
      %v1547 = vld [vmem:[%s249 + $0x1a0] sm:$0xff]
      %v1548 = vld [vmem:[%s249 + $0x1a8] sm:$0xff]
      %v1549 = vld [vmem:[%s249 + $0x1b0] sm:$0xff]
      %v1550 = vld [vmem:[%s249 + $0x1b8] sm:$0xff]
      %v1551 = vld [vmem:[%s249 + $0x1c0] sm:$0xff]
      %v1552 = vperm.slane %v1498, 1
      %1553 = vmatpush.msra.mxu0 0.0
      %1554 = vmatpush.msra.mxu0 0.0
      %1555 = vmatpush.msra.mxu0 0.0
      %1556 = vmatpush.msra.mxu0 0.0
      %1557 = vmatpush.msra.mxu0 0.0
      %1558 = vmatpush.msra.mxu0 0.0
      %1559 = vmatpush.msra.mxu0 0.0
      %1560 = vmatpush.msra.mxu0 0.0
      %1561 = vmatpush.msra.mxu0 %v1551
      %1562 = vmatpush.msra.mxu0 %v1550
      %1563 = vmatpush.msra.mxu0 %v1549
      %1564 = vmatpush.msra.mxu0 %v1548
      %1565 = vmatpush.msra.mxu0 %v1547
      %1566 = vmatpush.msra.mxu0 %v1546
      %1567 = vmatpush.msra.mxu0 %v1545
      %1568 = vmatpush.msra.mxu0 %v1544
      %1569 = vmatmul.f32.gmra.mxu0 %v1510
      %v1570 = vpop.f32.mrf.mxu0
      %v1571 = vadd.f32 %v1552, %v1570
      %1572 = vmatmul.f32.gmra.mxu0 %v1513
      %v1573 = vpop.f32.mrf.mxu0
      %v1574 = vadd.f32 %v1552, %v1573
      %1575 = vmatmul.f32.gmra.mxu0 %v1516
      %v1576 = vpop.f32.mrf.mxu0
      %v1577 = vadd.f32 %v1552, %v1576
      %1578 = vdwg.mxu0
      %v1579 = vld [vmem:[%s249 + $0x1c8] sm:$0xff]
      %v1580 = vld [vmem:[%s249 + $0x1d0] sm:$0xff]
      %v1581 = vld [vmem:[%s249 + $0x1d8] sm:$0xff]
      %v1582 = vld [vmem:[%s249 + $0x1e0] sm:$0xff]
      %v1583 = vld [vmem:[%s249 + $0x1e8] sm:$0xff]
      %v1584 = vld [vmem:[%s249 + $0x1f0] sm:$0xff]
      %v1585 = vld [vmem:[%s249 + $0x1f8] sm:$0xff]
      %v1586 = vld [vmem:[%s249 + $0x200] sm:$0xff]
      %v1587 = vperm.slane %v1498, 2
      %1588 = vmatpush.msra.mxu0 0.0
      %1589 = vmatpush.msra.mxu0 0.0
      %1590 = vmatpush.msra.mxu0 0.0
      %1591 = vmatpush.msra.mxu0 0.0
      %1592 = vmatpush.msra.mxu0 0.0
      %1593 = vmatpush.msra.mxu0 0.0
      %1594 = vmatpush.msra.mxu0 0.0
      %1595 = vmatpush.msra.mxu0 0.0
      %1596 = vmatpush.msra.mxu0 %v1586
      %1597 = vmatpush.msra.mxu0 %v1585
      %1598 = vmatpush.msra.mxu0 %v1584
      %1599 = vmatpush.msra.mxu0 %v1583
      %1600 = vmatpush.msra.mxu0 %v1582
      %1601 = vmatpush.msra.mxu0 %v1581
      %1602 = vmatpush.msra.mxu0 %v1580
      %1603 = vmatpush.msra.mxu0 %v1579
      %1604 = vmatmul.f32.gmra.mxu0 %v1510
      %v1605 = vpop.f32.mrf.mxu0
      %v1606 = vadd.f32 %v1587, %v1605
      %1607 = vmatmul.f32.gmra.mxu0 %v1513
      %v1608 = vpop.f32.mrf.mxu0
      %v1609 = vadd.f32 %v1587, %v1608
      %1610 = vmatmul.f32.gmra.mxu0 %v1516
      %v1611 = vpop.f32.mrf.mxu0
      %v1612 = vadd.f32 %v1587, %v1611
      %1613 = vdwg.mxu0
      %v1614 = vld [vmem:[%s254 + $0x88] sm:$0xff]
      %v1615 = vld [vmem:[%s254 + $0x90] sm:$0xff]
      %v1616 = vld [vmem:[%s254 + $0x98] sm:$0xff]
      %v1617 = vld [vmem:[%s254 + $0xa0] sm:$0xff]
      %v1618 = vld [vmem:[%s254 + $0xa8] sm:$0xff]
      %v1619 = vld [vmem:[%s254 + $0xb0] sm:$0xff]
      %v1620 = vld [vmem:[%s254 + $0xb8] sm:$0xff]
      %v1621 = vld [vmem:[%s254 + $0xc0] sm:$0xff]
      %v1622 = vperm.slane %v1499, 0
      %1623 = vmatpush.msra.mxu0 0.0
      %1624 = vmatpush.msra.mxu0 0.0
      %1625 = vmatpush.msra.mxu0 0.0
      %1626 = vmatpush.msra.mxu0 0.0
      %1627 = vmatpush.msra.mxu0 0.0
      %1628 = vmatpush.msra.mxu0 0.0
      %1629 = vmatpush.msra.mxu0 0.0
      %1630 = vmatpush.msra.mxu0 0.0
      %1631 = vmatpush.msra.mxu0 %v1621
      %1632 = vmatpush.msra.mxu0 %v1620
      %1633 = vmatpush.msra.mxu0 %v1619
      %1634 = vmatpush.msra.mxu0 %v1618
      %1635 = vmatpush.msra.mxu0 %v1617
      %1636 = vmatpush.msra.mxu0 %v1616
      %1637 = vmatpush.msra.mxu0 %v1615
      %1638 = vmatpush.msra.mxu0 %v1614
      %1639 = vmatmul.f32.gmra.mxu0 %v1510
      %v1640 = vpop.f32.mrf.mxu0
      %v1641 = vadd.f32 %v1622, %v1640
      %1642 = vmatmul.f32.gmra.mxu0 %v1513
      %v1643 = vpop.f32.mrf.mxu0
      %v1644 = vadd.f32 %v1622, %v1643
      %1645 = vmatmul.f32.gmra.mxu0 %v1516
      %v1646 = vpop.f32.mrf.mxu0
      %v1647 = vadd.f32 %v1622, %v1646
      %1648 = vdwg.mxu0
      %v1649 = vld [vmem:[%s254 + $0xc8] sm:$0xff]
      %v1650 = vld [vmem:[%s254 + $0xd0] sm:$0xff]
      %v1651 = vld [vmem:[%s254 + $0xd8] sm:$0xff]
      %v1652 = vld [vmem:[%s254 + $0xe0] sm:$0xff]
      %v1653 = vld [vmem:[%s254 + $0xe8] sm:$0xff]
      %v1654 = vld [vmem:[%s254 + $0xf0] sm:$0xff]
      %v1655 = vld [vmem:[%s254 + $0xf8] sm:$0xff]
      %v1656 = vld [vmem:[%s254 + $0x100] sm:$0xff]
      %v1658 = vsel %vm768, %v1536, 0
      %v1661 = vsel %vm768, %v1539, 0
      %v1664 = vsel %vm768, %v1542, 0
      %v1667 = vsel %vm768, %v1571, 0
      %v1670 = vsel %vm768, %v1574, 0
      %v1673 = vsel %vm768, %v1577, 0
      %1675 = vmatpush.xpose.msra.mxu0 0.0
      %1676 = vmatpush.xpose.msra.mxu0 0.0
      %1677 = vmatpush.xpose.msra.mxu0 0.0
      %1678 = vmatpush.xpose.msra.mxu0 0.0
      %1679 = vmatpush.xpose.msra.mxu0 0.0
      %1680 = vmatpush.xpose.msra.mxu0 0.0
      %1681 = vmatpush.xpose.msra.mxu0 0.0
      %1682 = vmatpush.xpose.msra.mxu0 0.0
      %1683 = vmatpush.xpose.msra.mxu0 0.0
      %1684 = vmatpush.xpose.msra.mxu0 0.0
      %1685 = vmatpush.xpose.msra.mxu0 0.0
      %1686 = vmatpush.xpose.msra.mxu0 0.0
      %1687 = vmatpush.xpose.msra.mxu0 0.0
      %1688 = vmatpush.xpose.msra.mxu0 %v1673
      %1689 = vmatpush.xpose.msra.mxu0 %v1670
      %1690 = vmatpush.xpose.msra.mxu0 %v1667
      %1691 = vmatmul.f32.gmra.mxu0 %v1658
      %v1692 = vpop.f32.mrf.mxu0
      %v1693 = vadd.f32 0.0, %v1692
      %1694 = vmatmul.f32.gmra.mxu0 %v1661
      %v1695 = vpop.f32.mrf.mxu0
      %v1696 = vadd.f32 0.0, %v1695
      %1697 = vmatmul.f32.gmra.mxu0 %v1664
      %v1698 = vpop.f32.mrf.mxu0
      %v1699 = vadd.f32 0.0, %v1698
      %1700 = vdwg.mxu0
      %v1701 = vmul.f32 %v1693, 0.25
      %v1702 = vmul.f32 %v1696, 0.25
      %v1703 = vmul.f32 %v1699, 0.25
      %v1704 = vadd.f32 %v1701, %v599
      %v1705 = vadd.f32 %v1702, %v600
      %v1706 = vadd.f32 %v1703, %v601
      %v1707 = vsel %vm819, %v1704, -inf
      %1708 = vmax.xlane.f32.xlu0 %v1707
      %v1709 = vpop.xlane.xlu0 %1708
      %v1710 = vsel %vm819, %v1705, -inf
      %1711 = vmax.xlane.f32.xlu0 %v1710
      %v1712 = vpop.xlane.xlu0 %1711
      %v1713 = vsel %vm826, %v1706, -inf
      %1714 = vmax.xlane.f32.xlu0 %v1713
      %v1715 = vpop.xlane.xlu0 %1714
      %v1716 = vsub.f32 %v1704, %v1709
      %v1717 = vsub.f32 %v1705, %v1712
      %v1718 = vsub.f32 %v1706, %v1715
      %v1719 = vmul.f32 %v1716, 1.442695
      %v1720 = vpow.pop %v1719
      %v1721 = vmul.f32 %v1717, 1.442695
      %v1722 = vpow.pop %v1721
      %v1723 = vmul.f32 %v1718, 1.442695
      %v1724 = vpow.pop %v1723
      %v1725 = vsel %vm819, %v1720, 0.0
      %1726 = vadd.xlane.f32.xlu0 %v1725
      %v1727 = vpop.xlane.xlu0 %1726
      %v1728 = vsel %vm819, %v1722, 0.0
      %1729 = vadd.xlane.f32.xlu0 %v1728
      %v1730 = vpop.xlane.xlu0 %1729
      %v1731 = vsel %vm826, %v1724, 0.0
      %1732 = vadd.xlane.f32.xlu0 %v1731
      %v1733 = vpop.xlane.xlu0 %1732
      %v1735 = vsel %vm819, %v1720, 0
      %v1738 = vsel %vm819, %v1722, 0
      %v1741 = vsel %vm819, %v1724, 0
      %v1744 = vsel %vm857, %v1612, 0
      %1746 = vmatpush.msra.mxu0 0.0
      %1747 = vmatpush.msra.mxu0 0.0
      %1748 = vmatpush.msra.mxu0 0.0
      %1749 = vmatpush.msra.mxu0 0.0
      %1750 = vmatpush.msra.mxu0 0.0
      %1751 = vmatpush.msra.mxu0 0.0
      %1752 = vmatpush.msra.mxu0 0.0
      %1753 = vmatpush.msra.mxu0 0.0
      %1754 = vmatpush.msra.mxu0 0.0
      %1755 = vmatpush.msra.mxu0 0.0
      %1756 = vmatpush.msra.mxu0 0.0
      %1757 = vmatpush.msra.mxu0 0.0
      %1758 = vmatpush.msra.mxu0 0.0
      %1759 = vmatpush.msra.mxu0 %v1744
      %1760 = vmatpush.msra.mxu0 %v1609
      %1761 = vmatpush.msra.mxu0 %v1606
      %1762 = vmatmul.f32.gmra.mxu0 %v1735
      %v1763 = vpop.f32.mrf.mxu0
      %v1764 = vadd.f32 0.0, %v1763
      %1765 = vmatmul.f32.gmra.mxu0 %v1738
      %v1766 = vpop.f32.mrf.mxu0
      %v1767 = vadd.f32 0.0, %v1766
      %1768 = vmatmul.f32.gmra.mxu0 %v1741
      %v1769 = vpop.f32.mrf.mxu0
      %v1770 = vadd.f32 0.0, %v1769
      %1771 = vdwg.mxu0
      %v1772 = vrcp.pop %v1727
      %v1773 = vrcp.pop %v1730
      %v1774 = vrcp.pop %v1733
      %v1775 = vmul.f32 %v1764, %v1772
      %v1776 = vmul.f32 %v1767, %v1773
      %v1777 = vmul.f32 %v1770, %v1774
      %v1779 = vsel %vm768, %v1775, 0
      %v1782 = vsel %vm768, %v1776, 0
      %v1785 = vsel %vm768, %v1777, 0
      %1787 = vmatpush.msra.mxu0 0.0
      %1788 = vmatpush.msra.mxu0 0.0
      %1789 = vmatpush.msra.mxu0 0.0
      %1790 = vmatpush.msra.mxu0 0.0
      %1791 = vmatpush.msra.mxu0 0.0
      %1792 = vmatpush.msra.mxu0 0.0
      %1793 = vmatpush.msra.mxu0 0.0
      %1794 = vmatpush.msra.mxu0 0.0
      %1795 = vmatpush.msra.mxu0 0.0
      %1796 = vmatpush.msra.mxu0 0.0
      %1797 = vmatpush.msra.mxu0 0.0
      %1798 = vmatpush.msra.mxu0 0.0
      %1799 = vmatpush.msra.mxu0 0.0
      %1800 = vmatpush.msra.mxu0 0.0
      %1801 = vmatpush.msra.mxu0 %v1650
      %1802 = vmatpush.msra.mxu0 %v1649
      %1803 = vmatmul.f32.gmra.mxu0 %v1779
      %v1804 = vpop.f32.mrf.mxu0
      %v1805 = vadd.f32 0.0, %v1804
      %1806 = vmatmul.f32.gmra.mxu0 %v1782
      %v1807 = vpop.f32.mrf.mxu0
      %v1808 = vadd.f32 0.0, %v1807
      %1809 = vmatmul.f32.gmra.mxu0 %v1785
      %v1810 = vpop.f32.mrf.mxu0
      %v1811 = vadd.f32 0.0, %v1810
      %1812 = vdwg.mxu0
      %v1813 = vadd.f32 %v1641, %v1805
      %v1814 = vadd.f32 %v1644, %v1808
      %v1815 = vadd.f32 %v1647, %v1811
      %1816 = vrot.lane.b32.xlu0 %v1536, 112
      %v1817 = vpop.permute.xlu0 %1816
      %1818 = vrot.lane.b32.xlu0 %v1539, 112
      %v1819 = vpop.permute.xlu0 %1818
      %1820 = vrot.lane.b32.xlu0 %v1542, 112
      %v1821 = vpop.permute.xlu0 %1820
      %1822 = vrot.lane.b32.xlu0 %v1571, 112
      %v1823 = vpop.permute.xlu0 %1822
      %1824 = vrot.lane.b32.xlu0 %v1574, 112
      %v1825 = vpop.permute.xlu0 %1824
      %1826 = vrot.lane.b32.xlu0 %v1577, 112
      %v1827 = vpop.permute.xlu0 %1826
      %v1828 = vsel %vm768, %v1817, 0
      %v1830 = vsel %vm768, %v1819, 0
      %v1832 = vsel %vm768, %v1821, 0
      %v1834 = vsel %vm768, %v1823, 0
      %v1836 = vsel %vm768, %v1825, 0
      %v1838 = vsel %vm768, %v1827, 0
      %1840 = vmatpush.xpose.msra.mxu0 0.0
      %1841 = vmatpush.xpose.msra.mxu0 0.0
      %1842 = vmatpush.xpose.msra.mxu0 0.0
      %1843 = vmatpush.xpose.msra.mxu0 0.0
      %1844 = vmatpush.xpose.msra.mxu0 0.0
      %1845 = vmatpush.xpose.msra.mxu0 0.0
      %1846 = vmatpush.xpose.msra.mxu0 0.0
      %1847 = vmatpush.xpose.msra.mxu0 0.0
      %1848 = vmatpush.xpose.msra.mxu0 0.0
      %1849 = vmatpush.xpose.msra.mxu0 0.0
      %1850 = vmatpush.xpose.msra.mxu0 0.0
      %1851 = vmatpush.xpose.msra.mxu0 0.0
      %1852 = vmatpush.xpose.msra.mxu0 0.0
      %1853 = vmatpush.xpose.msra.mxu0 %v1838
      %1854 = vmatpush.xpose.msra.mxu0 %v1836
      %1855 = vmatpush.xpose.msra.mxu0 %v1834
      %1856 = vmatmul.f32.gmra.mxu0 %v1828
      %v1857 = vpop.f32.mrf.mxu0
      %v1858 = vadd.f32 0.0, %v1857
      %1859 = vmatmul.f32.gmra.mxu0 %v1830
      %v1860 = vpop.f32.mrf.mxu0
      %v1861 = vadd.f32 0.0, %v1860
      %1862 = vmatmul.f32.gmra.mxu0 %v1832
      %v1863 = vpop.f32.mrf.mxu0
      %v1864 = vadd.f32 0.0, %v1863
      %1865 = vdwg.mxu0
      %v1866 = vmul.f32 %v1858, 0.25
      %v1867 = vmul.f32 %v1861, 0.25
      %v1868 = vmul.f32 %v1864, 0.25
      %v1869 = vadd.f32 %v1866, %v599
      %v1870 = vadd.f32 %v1867, %v600
      %v1871 = vadd.f32 %v1868, %v601
      %v1872 = vsel %vm819, %v1869, -inf
      %1873 = vmax.xlane.f32.xlu0 %v1872
      %v1874 = vpop.xlane.xlu0 %1873
      %v1875 = vsel %vm819, %v1870, -inf
      %1876 = vmax.xlane.f32.xlu0 %v1875
      %v1877 = vpop.xlane.xlu0 %1876
      %v1878 = vsel %vm826, %v1871, -inf
      %1879 = vmax.xlane.f32.xlu0 %v1878
      %v1880 = vpop.xlane.xlu0 %1879
      %v1881 = vsub.f32 %v1869, %v1874
      %v1882 = vsub.f32 %v1870, %v1877
      %v1883 = vsub.f32 %v1871, %v1880
      %v1884 = vmul.f32 %v1881, 1.442695
      %v1885 = vpow.pop %v1884
      %v1886 = vmul.f32 %v1882, 1.442695
      %v1887 = vpow.pop %v1886
      %v1888 = vmul.f32 %v1883, 1.442695
      %v1889 = vpow.pop %v1888
      %v1890 = vsel %vm819, %v1885, 0.0
      %1891 = vadd.xlane.f32.xlu0 %v1890
      %v1892 = vpop.xlane.xlu0 %1891
      %v1893 = vsel %vm819, %v1887, 0.0
      %1894 = vadd.xlane.f32.xlu0 %v1893
      %v1895 = vpop.xlane.xlu0 %1894
      %v1896 = vsel %vm826, %v1889, 0.0
      %1897 = vadd.xlane.f32.xlu0 %v1896
      %v1898 = vpop.xlane.xlu0 %1897
      %1901 = vrot.lane.b32.xlu0 %v1606, 112
      %v1902 = vpop.permute.xlu0 %1901
      %1903 = vrot.lane.b32.xlu0 %v1609, 112
      %v1904 = vpop.permute.xlu0 %1903
      %1905 = vrot.lane.b32.xlu0 %v1612, 112
      %v1906 = vpop.permute.xlu0 %1905
      %v1910 = vsel %vm819, %v1885, 0
      %v1913 = vsel %vm819, %v1887, 0
      %v1916 = vsel %vm819, %v1889, 0
      %v1918 = vsel %vm857, %v1906, 0
      %1920 = vmatpush.msra.mxu0 0.0
      %1921 = vmatpush.msra.mxu0 0.0
      %1922 = vmatpush.msra.mxu0 0.0
      %1923 = vmatpush.msra.mxu0 0.0
      %1924 = vmatpush.msra.mxu0 0.0
      %1925 = vmatpush.msra.mxu0 0.0
      %1926 = vmatpush.msra.mxu0 0.0
      %1927 = vmatpush.msra.mxu0 0.0
      %1928 = vmatpush.msra.mxu0 0.0
      %1929 = vmatpush.msra.mxu0 0.0
      %1930 = vmatpush.msra.mxu0 0.0
      %1931 = vmatpush.msra.mxu0 0.0
      %1932 = vmatpush.msra.mxu0 0.0
      %1933 = vmatpush.msra.mxu0 %v1918
      %1934 = vmatpush.msra.mxu0 %v1904
      %1935 = vmatpush.msra.mxu0 %v1902
      %1936 = vmatmul.f32.gmra.mxu0 %v1910
      %v1937 = vpop.f32.mrf.mxu0
      %v1938 = vadd.f32 0.0, %v1937
      %1939 = vmatmul.f32.gmra.mxu0 %v1913
      %v1940 = vpop.f32.mrf.mxu0
      %v1941 = vadd.f32 0.0, %v1940
      %1942 = vmatmul.f32.gmra.mxu0 %v1916
      %v1943 = vpop.f32.mrf.mxu0
      %v1944 = vadd.f32 0.0, %v1943
      %1945 = vdwg.mxu0
      %v1946 = vrcp.pop %v1892
      %v1947 = vrcp.pop %v1895
      %v1948 = vrcp.pop %v1898
      %v1949 = vmul.f32 %v1938, %v1946
      %v1950 = vmul.f32 %v1941, %v1947
      %v1951 = vmul.f32 %v1944, %v1948
      %v1953 = vsel %vm768, %v1949, 0
      %v1956 = vsel %vm768, %v1950, 0
      %v1959 = vsel %vm768, %v1951, 0
      %1961 = vmatpush.msra.mxu0 0.0
      %1962 = vmatpush.msra.mxu0 0.0
      %1963 = vmatpush.msra.mxu0 0.0
      %1964 = vmatpush.msra.mxu0 0.0
      %1965 = vmatpush.msra.mxu0 0.0
      %1966 = vmatpush.msra.mxu0 0.0
      %1967 = vmatpush.msra.mxu0 0.0
      %1968 = vmatpush.msra.mxu0 0.0
      %1969 = vmatpush.msra.mxu0 0.0
      %1970 = vmatpush.msra.mxu0 0.0
      %1971 = vmatpush.msra.mxu0 0.0
      %1972 = vmatpush.msra.mxu0 0.0
      %1973 = vmatpush.msra.mxu0 0.0
      %1974 = vmatpush.msra.mxu0 0.0
      %1975 = vmatpush.msra.mxu0 %v1652
      %1976 = vmatpush.msra.mxu0 %v1651
      %1977 = vmatmul.f32.gmra.mxu0 %v1953
      %v1978 = vpop.f32.mrf.mxu0
      %v1979 = vadd.f32 0.0, %v1978
      %1980 = vmatmul.f32.gmra.mxu0 %v1956
      %v1981 = vpop.f32.mrf.mxu0
      %v1982 = vadd.f32 0.0, %v1981
      %1983 = vmatmul.f32.gmra.mxu0 %v1959
      %v1984 = vpop.f32.mrf.mxu0
      %v1985 = vadd.f32 0.0, %v1984
      %1986 = vdwg.mxu0
      %v1987 = vadd.f32 %v1813, %v1979
      %v1988 = vadd.f32 %v1814, %v1982
      %v1989 = vadd.f32 %v1815, %v1985
      %1990 = vrot.lane.b32.xlu0 %v1536, 96
      %v1991 = vpop.permute.xlu0 %1990
      %1992 = vrot.lane.b32.xlu0 %v1539, 96
      %v1993 = vpop.permute.xlu0 %1992
      %1994 = vrot.lane.b32.xlu0 %v1542, 96
      %v1995 = vpop.permute.xlu0 %1994
      %1996 = vrot.lane.b32.xlu0 %v1571, 96
      %v1997 = vpop.permute.xlu0 %1996
      %1998 = vrot.lane.b32.xlu0 %v1574, 96
      %v1999 = vpop.permute.xlu0 %1998
      %2000 = vrot.lane.b32.xlu0 %v1577, 96
      %v2001 = vpop.permute.xlu0 %2000
      %v2002 = vsel %vm768, %v1991, 0
      %v2004 = vsel %vm768, %v1993, 0
      %v2006 = vsel %vm768, %v1995, 0
      %v2008 = vsel %vm768, %v1997, 0
      %v2010 = vsel %vm768, %v1999, 0
      %v2012 = vsel %vm768, %v2001, 0
      %2014 = vmatpush.xpose.msra.mxu0 0.0
      %2015 = vmatpush.xpose.msra.mxu0 0.0
      %2016 = vmatpush.xpose.msra.mxu0 0.0
      %2017 = vmatpush.xpose.msra.mxu0 0.0
      %2018 = vmatpush.xpose.msra.mxu0 0.0
      %2019 = vmatpush.xpose.msra.mxu0 0.0
      %2020 = vmatpush.xpose.msra.mxu0 0.0
      %2021 = vmatpush.xpose.msra.mxu0 0.0
      %2022 = vmatpush.xpose.msra.mxu0 0.0
      %2023 = vmatpush.xpose.msra.mxu0 0.0
      %2024 = vmatpush.xpose.msra.mxu0 0.0
      %2025 = vmatpush.xpose.msra.mxu0 0.0
      %2026 = vmatpush.xpose.msra.mxu0 0.0
      %2027 = vmatpush.xpose.msra.mxu0 %v2012
      %2028 = vmatpush.xpose.msra.mxu0 %v2010
      %2029 = vmatpush.xpose.msra.mxu0 %v2008
      %2030 = vmatmul.f32.gmra.mxu0 %v2002
      %v2031 = vpop.f32.mrf.mxu0
      %v2032 = vadd.f32 0.0, %v2031
      %2033 = vmatmul.f32.gmra.mxu0 %v2004
      %v2034 = vpop.f32.mrf.mxu0
      %v2035 = vadd.f32 0.0, %v2034
      %2036 = vmatmul.f32.gmra.mxu0 %v2006
      %v2037 = vpop.f32.mrf.mxu0
      %v2038 = vadd.f32 0.0, %v2037
      %2039 = vdwg.mxu0
      %v2040 = vmul.f32 %v2032, 0.25
      %v2041 = vmul.f32 %v2035, 0.25
      %v2042 = vmul.f32 %v2038, 0.25
      %v2043 = vadd.f32 %v2040, %v599
      %v2044 = vadd.f32 %v2041, %v600
      %v2045 = vadd.f32 %v2042, %v601
      %v2046 = vsel %vm819, %v2043, -inf
      %2047 = vmax.xlane.f32.xlu0 %v2046
      %v2048 = vpop.xlane.xlu0 %2047
      %v2049 = vsel %vm819, %v2044, -inf
      %2050 = vmax.xlane.f32.xlu0 %v2049
      %v2051 = vpop.xlane.xlu0 %2050
      %v2052 = vsel %vm826, %v2045, -inf
      %2053 = vmax.xlane.f32.xlu0 %v2052
      %v2054 = vpop.xlane.xlu0 %2053
      %v2055 = vsub.f32 %v2043, %v2048
      %v2056 = vsub.f32 %v2044, %v2051
      %v2057 = vsub.f32 %v2045, %v2054
      %v2058 = vmul.f32 %v2055, 1.442695
      %v2059 = vpow.pop %v2058
      %v2060 = vmul.f32 %v2056, 1.442695
      %v2061 = vpow.pop %v2060
      %v2062 = vmul.f32 %v2057, 1.442695
      %v2063 = vpow.pop %v2062
      %v2064 = vsel %vm819, %v2059, 0.0
      %2065 = vadd.xlane.f32.xlu0 %v2064
      %v2066 = vpop.xlane.xlu0 %2065
      %v2067 = vsel %vm819, %v2061, 0.0
      %2068 = vadd.xlane.f32.xlu0 %v2067
      %v2069 = vpop.xlane.xlu0 %2068
      %v2070 = vsel %vm826, %v2063, 0.0
      %2071 = vadd.xlane.f32.xlu0 %v2070
      %v2072 = vpop.xlane.xlu0 %2071
      %2073 = vrot.lane.b32.xlu0 %v1606, 96
      %v2074 = vpop.permute.xlu0 %2073
      %2075 = vrot.lane.b32.xlu0 %v1609, 96
      %v2076 = vpop.permute.xlu0 %2075
      %2077 = vrot.lane.b32.xlu0 %v1612, 96
      %v2078 = vpop.permute.xlu0 %2077
      %v2082 = vsel %vm819, %v2059, 0
      %v2085 = vsel %vm819, %v2061, 0
      %v2088 = vsel %vm819, %v2063, 0
      %v2090 = vsel %vm857, %v2078, 0
      %2092 = vmatpush.msra.mxu0 0.0
      %2093 = vmatpush.msra.mxu0 0.0
      %2094 = vmatpush.msra.mxu0 0.0
      %2095 = vmatpush.msra.mxu0 0.0
      %2096 = vmatpush.msra.mxu0 0.0
      %2097 = vmatpush.msra.mxu0 0.0
      %2098 = vmatpush.msra.mxu0 0.0
      %2099 = vmatpush.msra.mxu0 0.0
      %2100 = vmatpush.msra.mxu0 0.0
      %2101 = vmatpush.msra.mxu0 0.0
      %2102 = vmatpush.msra.mxu0 0.0
      %2103 = vmatpush.msra.mxu0 0.0
      %2104 = vmatpush.msra.mxu0 0.0
      %2105 = vmatpush.msra.mxu0 %v2090
      %2106 = vmatpush.msra.mxu0 %v2076
      %2107 = vmatpush.msra.mxu0 %v2074
      %2108 = vmatmul.f32.gmra.mxu0 %v2082
      %v2109 = vpop.f32.mrf.mxu0
      %v2110 = vadd.f32 0.0, %v2109
      %2111 = vmatmul.f32.gmra.mxu0 %v2085
      %v2112 = vpop.f32.mrf.mxu0
      %v2113 = vadd.f32 0.0, %v2112
      %2114 = vmatmul.f32.gmra.mxu0 %v2088
      %v2115 = vpop.f32.mrf.mxu0
      %v2116 = vadd.f32 0.0, %v2115
      %2117 = vdwg.mxu0
      %v2118 = vrcp.pop %v2066
      %v2119 = vrcp.pop %v2069
      %v2120 = vrcp.pop %v2072
      %v2121 = vmul.f32 %v2110, %v2118
      %v2122 = vmul.f32 %v2113, %v2119
      %v2123 = vmul.f32 %v2116, %v2120
      %v2125 = vsel %vm768, %v2121, 0
      %v2128 = vsel %vm768, %v2122, 0
      %v2131 = vsel %vm768, %v2123, 0
      %2133 = vmatpush.msra.mxu0 0.0
      %2134 = vmatpush.msra.mxu0 0.0
      %2135 = vmatpush.msra.mxu0 0.0
      %2136 = vmatpush.msra.mxu0 0.0
      %2137 = vmatpush.msra.mxu0 0.0
      %2138 = vmatpush.msra.mxu0 0.0
      %2139 = vmatpush.msra.mxu0 0.0
      %2140 = vmatpush.msra.mxu0 0.0
      %2141 = vmatpush.msra.mxu0 0.0
      %2142 = vmatpush.msra.mxu0 0.0
      %2143 = vmatpush.msra.mxu0 0.0
      %2144 = vmatpush.msra.mxu0 0.0
      %2145 = vmatpush.msra.mxu0 0.0
      %2146 = vmatpush.msra.mxu0 0.0
      %2147 = vmatpush.msra.mxu0 %v1654
      %2148 = vmatpush.msra.mxu0 %v1653
      %2149 = vmatmul.f32.gmra.mxu0 %v2125
      %v2150 = vpop.f32.mrf.mxu0
      %v2151 = vadd.f32 0.0, %v2150
      %2152 = vmatmul.f32.gmra.mxu0 %v2128
      %v2153 = vpop.f32.mrf.mxu0
      %v2154 = vadd.f32 0.0, %v2153
      %2155 = vmatmul.f32.gmra.mxu0 %v2131
      %v2156 = vpop.f32.mrf.mxu0
      %v2157 = vadd.f32 0.0, %v2156
      %2158 = vdwg.mxu0
      %v2159 = vadd.f32 %v1987, %v2151
      %v2160 = vadd.f32 %v1988, %v2154
      %v2161 = vadd.f32 %v1989, %v2157
      %2162 = vrot.lane.b32.xlu0 %v1536, 80
      %v2163 = vpop.permute.xlu0 %2162
      %2164 = vrot.lane.b32.xlu0 %v1539, 80
      %v2165 = vpop.permute.xlu0 %2164
      %2166 = vrot.lane.b32.xlu0 %v1542, 80
      %v2167 = vpop.permute.xlu0 %2166
      %2168 = vrot.lane.b32.xlu0 %v1571, 80
      %v2169 = vpop.permute.xlu0 %2168
      %2170 = vrot.lane.b32.xlu0 %v1574, 80
      %v2171 = vpop.permute.xlu0 %2170
      %2172 = vrot.lane.b32.xlu0 %v1577, 80
      %v2173 = vpop.permute.xlu0 %2172
      %v2174 = vsel %vm768, %v2163, 0
      %v2176 = vsel %vm768, %v2165, 0
      %v2178 = vsel %vm768, %v2167, 0
      %v2180 = vsel %vm768, %v2169, 0
      %v2182 = vsel %vm768, %v2171, 0
      %v2184 = vsel %vm768, %v2173, 0
      %2186 = vmatpush.xpose.msra.mxu0 0.0
      %2187 = vmatpush.xpose.msra.mxu0 0.0
      %2188 = vmatpush.xpose.msra.mxu0 0.0
      %2189 = vmatpush.xpose.msra.mxu0 0.0
      %2190 = vmatpush.xpose.msra.mxu0 0.0
      %2191 = vmatpush.xpose.msra.mxu0 0.0
      %2192 = vmatpush.xpose.msra.mxu0 0.0
      %2193 = vmatpush.xpose.msra.mxu0 0.0
      %2194 = vmatpush.xpose.msra.mxu0 0.0
      %2195 = vmatpush.xpose.msra.mxu0 0.0
      %2196 = vmatpush.xpose.msra.mxu0 0.0
      %2197 = vmatpush.xpose.msra.mxu0 0.0
      %2198 = vmatpush.xpose.msra.mxu0 0.0
      %2199 = vmatpush.xpose.msra.mxu0 %v2184
      %2200 = vmatpush.xpose.msra.mxu0 %v2182
      %2201 = vmatpush.xpose.msra.mxu0 %v2180
      %2202 = vmatmul.f32.gmra.mxu0 %v2174
      %v2203 = vpop.f32.mrf.mxu0
      %v2204 = vadd.f32 0.0, %v2203
      %2205 = vmatmul.f32.gmra.mxu0 %v2176
      %v2206 = vpop.f32.mrf.mxu0
      %v2207 = vadd.f32 0.0, %v2206
      %2208 = vmatmul.f32.gmra.mxu0 %v2178
      %v2209 = vpop.f32.mrf.mxu0
      %v2210 = vadd.f32 0.0, %v2209
      %2211 = vdwg.mxu0
      %v2212 = vmul.f32 %v2204, 0.25
      %v2213 = vmul.f32 %v2207, 0.25
      %v2214 = vmul.f32 %v2210, 0.25
      %v2215 = vadd.f32 %v2212, %v599
      %v2216 = vadd.f32 %v2213, %v600
      %v2217 = vadd.f32 %v2214, %v601
      %v2218 = vsel %vm819, %v2215, -inf
      %2219 = vmax.xlane.f32.xlu0 %v2218
      %v2220 = vpop.xlane.xlu0 %2219
      %v2221 = vsel %vm819, %v2216, -inf
      %2222 = vmax.xlane.f32.xlu0 %v2221
      %v2223 = vpop.xlane.xlu0 %2222
      %v2224 = vsel %vm826, %v2217, -inf
      %2225 = vmax.xlane.f32.xlu0 %v2224
      %v2226 = vpop.xlane.xlu0 %2225
      %v2227 = vsub.f32 %v2215, %v2220
      %v2228 = vsub.f32 %v2216, %v2223
      %v2229 = vsub.f32 %v2217, %v2226
      %v2230 = vmul.f32 %v2227, 1.442695
      %v2231 = vpow.pop %v2230
      %v2232 = vmul.f32 %v2228, 1.442695
      %v2233 = vpow.pop %v2232
      %v2234 = vmul.f32 %v2229, 1.442695
      %v2235 = vpow.pop %v2234
      %v2236 = vsel %vm819, %v2231, 0.0
      %2237 = vadd.xlane.f32.xlu0 %v2236
      %v2238 = vpop.xlane.xlu0 %2237
      %v2239 = vsel %vm819, %v2233, 0.0
      %2240 = vadd.xlane.f32.xlu0 %v2239
      %v2241 = vpop.xlane.xlu0 %2240
      %v2242 = vsel %vm826, %v2235, 0.0
      %2243 = vadd.xlane.f32.xlu0 %v2242
      %v2244 = vpop.xlane.xlu0 %2243
      %2245 = vrot.lane.b32.xlu0 %v1606, 80
      %v2246 = vpop.permute.xlu0 %2245
      %2247 = vrot.lane.b32.xlu0 %v1609, 80
      %v2248 = vpop.permute.xlu0 %2247
      %2249 = vrot.lane.b32.xlu0 %v1612, 80
      %v2250 = vpop.permute.xlu0 %2249
      %v2254 = vsel %vm819, %v2231, 0
      %v2257 = vsel %vm819, %v2233, 0
      %v2260 = vsel %vm819, %v2235, 0
      %v2262 = vsel %vm857, %v2250, 0
      %2264 = vmatpush.msra.mxu0 0.0
      %2265 = vmatpush.msra.mxu0 0.0
      %2266 = vmatpush.msra.mxu0 0.0
      %2267 = vmatpush.msra.mxu0 0.0
      %2268 = vmatpush.msra.mxu0 0.0
      %2269 = vmatpush.msra.mxu0 0.0
      %2270 = vmatpush.msra.mxu0 0.0
      %2271 = vmatpush.msra.mxu0 0.0
      %2272 = vmatpush.msra.mxu0 0.0
      %2273 = vmatpush.msra.mxu0 0.0
      %2274 = vmatpush.msra.mxu0 0.0
      %2275 = vmatpush.msra.mxu0 0.0
      %2276 = vmatpush.msra.mxu0 0.0
      %2277 = vmatpush.msra.mxu0 %v2262
      %2278 = vmatpush.msra.mxu0 %v2248
      %2279 = vmatpush.msra.mxu0 %v2246
      %2280 = vmatmul.f32.gmra.mxu0 %v2254
      %v2281 = vpop.f32.mrf.mxu0
      %v2282 = vadd.f32 0.0, %v2281
      %2283 = vmatmul.f32.gmra.mxu0 %v2257
      %v2284 = vpop.f32.mrf.mxu0
      %v2285 = vadd.f32 0.0, %v2284
      %2286 = vmatmul.f32.gmra.mxu0 %v2260
      %v2287 = vpop.f32.mrf.mxu0
      %v2288 = vadd.f32 0.0, %v2287
      %2289 = vdwg.mxu0
      %v2290 = vrcp.pop %v2238
      %v2291 = vrcp.pop %v2241
      %v2292 = vrcp.pop %v2244
      %v2293 = vmul.f32 %v2282, %v2290
      %v2294 = vmul.f32 %v2285, %v2291
      %v2295 = vmul.f32 %v2288, %v2292
      %v2297 = vsel %vm768, %v2293, 0
      %v2300 = vsel %vm768, %v2294, 0
      %v2303 = vsel %vm768, %v2295, 0
      %2305 = vmatpush.msra.mxu0 0.0
      %2306 = vmatpush.msra.mxu0 0.0
      %2307 = vmatpush.msra.mxu0 0.0
      %2308 = vmatpush.msra.mxu0 0.0
      %2309 = vmatpush.msra.mxu0 0.0
      %2310 = vmatpush.msra.mxu0 0.0
      %2311 = vmatpush.msra.mxu0 0.0
      %2312 = vmatpush.msra.mxu0 0.0
      %2313 = vmatpush.msra.mxu0 0.0
      %2314 = vmatpush.msra.mxu0 0.0
      %2315 = vmatpush.msra.mxu0 0.0
      %2316 = vmatpush.msra.mxu0 0.0
      %2317 = vmatpush.msra.mxu0 0.0
      %2318 = vmatpush.msra.mxu0 0.0
      %2319 = vmatpush.msra.mxu0 %v1656
      %2320 = vmatpush.msra.mxu0 %v1655
      %2321 = vmatmul.f32.gmra.mxu0 %v2297
      %v2322 = vpop.f32.mrf.mxu0
      %v2323 = vadd.f32 0.0, %v2322
      %2324 = vmatmul.f32.gmra.mxu0 %v2300
      %v2325 = vpop.f32.mrf.mxu0
      %v2326 = vadd.f32 0.0, %v2325
      %2327 = vmatmul.f32.gmra.mxu0 %v2303
      %v2328 = vpop.f32.mrf.mxu0
      %v2329 = vadd.f32 0.0, %v2328
      %2330 = vdwg.mxu0
      %v2331 = vadd.f32 %v2159, %v2323
      %v2332 = vadd.f32 %v2160, %v2326
      %v2333 = vadd.f32 %v2161, %v2329
      %v2334 = vmax.f32 %v2331, 0.0
      %v2335 = vmax.f32 %v2332, 0.0
      %v2336 = vmax.f32 %v2333, 0.0
      %v2337 = vld [vmem:[%s249 + $0x208] sm:$0xff]
      %v2338 = vld [vmem:[%s249 + $0x210] sm:$0xff]
      %v2339 = vld [vmem:[%s249 + $0x218] sm:$0xff]
      %v2340 = vld [vmem:[%s249 + $0x220] sm:$0xff]
      %v2341 = vld [vmem:[%s249 + $0x228] sm:$0xff]
      %v2342 = vld [vmem:[%s249 + $0x230] sm:$0xff]
      %v2343 = vld [vmem:[%s249 + $0x238] sm:$0xff]
      %v2344 = vld [vmem:[%s249 + $0x240] sm:$0xff]
      %v2345 = vld [vmem:[%s249 + $0x248] sm:$0xff]
      %v2346 = vld [vmem:[%s249 + $0x250] sm:$0xff]
      %v2347 = vld [vmem:[%s249 + $0x258] sm:$0xff]
      %v2348 = vld [vmem:[%s249 + $0x260] sm:$0xff]
      %v2349 = vld [vmem:[%s249 + $0x268] sm:$0xff]
      %v2350 = vld [vmem:[%s249 + $0x270] sm:$0xff]
      %v2351 = vld [vmem:[%s249 + $0x278] sm:$0xff]
      %v2352 = vld [vmem:[%s249 + $0x280] sm:$0xff]
      %v2353 = vperm.slane %v1499, 1
      %2354 = vmatpush.msra.mxu0 %v2352
      %2355 = vmatpush.msra.mxu0 %v2351
      %2356 = vmatpush.msra.mxu0 %v2350
      %2357 = vmatpush.msra.mxu0 %v2349
      %2358 = vmatpush.msra.mxu0 %v2348
      %2359 = vmatpush.msra.mxu0 %v2347
      %2360 = vmatpush.msra.mxu0 %v2346
      %2361 = vmatpush.msra.mxu0 %v2345
      %2362 = vmatpush.msra.mxu0 %v2344
      %2363 = vmatpush.msra.mxu0 %v2343
      %2364 = vmatpush.msra.mxu0 %v2342
      %2365 = vmatpush.msra.mxu0 %v2341
      %2366 = vmatpush.msra.mxu0 %v2340
      %2367 = vmatpush.msra.mxu0 %v2339
      %2368 = vmatpush.msra.mxu0 %v2338
      %2369 = vmatpush.msra.mxu0 %v2337
      %2370 = vmatmul.f32.gmra.mxu0 %v2334
      %v2371 = vpop.f32.mrf.mxu0
      %v2372 = vadd.f32 %v2353, %v2371
      %2373 = vmatmul.f32.gmra.mxu0 %v2335
      %v2374 = vpop.f32.mrf.mxu0
      %v2375 = vadd.f32 %v2353, %v2374
      %2376 = vmatmul.f32.gmra.mxu0 %v2336
      %v2377 = vpop.f32.mrf.mxu0
      %v2378 = vadd.f32 %v2353, %v2377
      %2379 = vdwg.mxu0
      %v2380 = vadd.f32 %v1495, %v2372
      %v2381 = vadd.f32 %v1496, %v2375
      %v2382 = vadd.f32 %v1497, %v2378
      %v2383 = vsel %vm602, 1, 0
      %v2384 = vsel %vm603, 1, 0
      %v2385 = vsel %vm604, 1, 0
      %vm2386 = vcmp.eq.s32.totalorder %v2383, 1
      %vm2387 = vcmp.eq.s32.totalorder %v2384, 1
      %vm2388 = vcmp.eq.s32.totalorder %v2385, 1
      %v2389 = vsel %vm2386, %v2380, 0.0
      %v2390 = vsel %vm2387, %v2381, 0.0
      %v2391 = vsel %vm2388, %v2382, 0.0
      %2392 = vst.msk [vmem:[#allocation2] sm:$0xff] %vm619, %v2389
      %2393 = vst.msk [vmem:[#allocation2 + $0x8] sm:$0xff] %vm619, %v2390
      %vm2394 = vcmask 516096
      %2395 = vst.msk [vmem:[#allocation2 + $0x10] sm:$0x1] %vm2394, %v2391
      %p2396 = scmp.eq.s32.totalorder %s18, 8
      // Predicated region
      $region45: #{track_fuse_forward.2} parent=39 // pred_check
        %p2397 = pneg %p2396
      $region46: #{track_fuse_forward.2} parent=39 // pred_check_branch
        %2399 = sbr.rel (%p2397) target = $region48
      $region47: #{track_fuse_forward.2} parent=39 // pred_region
        %v2400 = vld [vmem:[%s2 + $0x140] sm:$0xff]
        %v2401 = vld [vmem:[%s2 + $0x100] sm:$0xff]
        %v2402 = vld [vmem:[%s2 + $0x108] sm:$0xff]
        %v2403 = vld [vmem:[%s2 + $0x110] sm:$0xff]
        %v2404 = vld [vmem:[%s2 + $0x118] sm:$0xff]
        %v2405 = vld [vmem:[%s2 + $0x120] sm:$0xff]
        %v2406 = vld [vmem:[%s2 + $0x128] sm:$0xff]
        %v2407 = vld [vmem:[%s2 + $0x130] sm:$0xff]
        %v2408 = vld [vmem:[%s2 + $0x138] sm:$0xff]
        %v2409 = vperm.slane %v2400, 5
        %v2411 = vsel %vm619, %v2389, 0
        %v2414 = vsel %vm619, %v2390, 0
        %v2417 = vsel %vm619, %v2391, 0
        %2419 = vmatpush.msra.mxu0 0.0
        %2420 = vmatpush.msra.mxu0 0.0
        %2421 = vmatpush.msra.mxu0 0.0
        %2422 = vmatpush.msra.mxu0 0.0
        %2423 = vmatpush.msra.mxu0 0.0
        %2424 = vmatpush.msra.mxu0 0.0
        %2425 = vmatpush.msra.mxu0 0.0
        %2426 = vmatpush.msra.mxu0 0.0
        %2427 = vmatpush.msra.mxu0 %v2408
        %2428 = vmatpush.msra.mxu0 %v2407
        %2429 = vmatpush.msra.mxu0 %v2406
        %2430 = vmatpush.msra.mxu0 %v2405
        %2431 = vmatpush.msra.mxu0 %v2404
        %2432 = vmatpush.msra.mxu0 %v2403
        %2433 = vmatpush.msra.mxu0 %v2402
        %2434 = vmatpush.msra.mxu0 %v2401
        %2435 = vmatmul.f32.gmra.mxu0 %v2411
        %v2436 = vpop.f32.mrf.mxu0
        %v2437 = vadd.f32 %v2409, %v2436
        %2438 = vmatmul.f32.gmra.mxu0 %v2414
        %v2439 = vpop.f32.mrf.mxu0
        %v2440 = vadd.f32 %v2409, %v2439
        %2441 = vmatmul.f32.gmra.mxu0 %v2417
        %v2442 = vpop.f32.mrf.mxu0
        %v2443 = vadd.f32 %v2409, %v2442
        %2444 = vdwg.mxu0
        %v2446 = vsel %vm619, %v2437, 0
        %v2449 = vsel %vm619, %v2440, 0
        %v2452 = vsel %vm619, %v2443, 0
        %2454 = vmatpush.xpose.msra.mxu0 0.0
        %2455 = vmatpush.xpose.msra.mxu0 0.0
        %2456 = vmatpush.xpose.msra.mxu0 0.0
        %2457 = vmatpush.xpose.msra.mxu0 0.0
        %2458 = vmatpush.xpose.msra.mxu0 0.0
        %2459 = vmatpush.xpose.msra.mxu0 0.0
        %2460 = vmatpush.xpose.msra.mxu0 0.0
        %2461 = vmatpush.xpose.msra.mxu0 0.0
        %2462 = vmatpush.xpose.msra.mxu0 0.0
        %2463 = vmatpush.xpose.msra.mxu0 0.0
        %2464 = vmatpush.xpose.msra.mxu0 0.0
        %2465 = vmatpush.xpose.msra.mxu0 0.0
        %2466 = vmatpush.xpose.msra.mxu0 0.0
        %2467 = vmatpush.xpose.msra.mxu0 0.0
        %2468 = vmatpush.xpose.msra.mxu0 %v2452
        %2469 = vmatpush.xpose.msra.mxu0 %v2449
        %2470 = vmatmul.f32.gmra.mxu0 %v2446
        %v2471 = vpop.f32.mrf.mxu0
        %v2472 = vadd.f32 0.0, %v2471
        %2473 = vmatmul.f32.gmra.mxu0 %v2449
        %v2474 = vpop.f32.mrf.mxu0
        %v2475 = vadd.f32 0.0, %v2474
        %2476 = vdwg.mxu0
        %v2477 = vmul.f32 %v2472, 0.125
        %v2478 = vmul.f32 %v2475, 0.125
        %vm2479 = vcmp.lt.s32.totalorder %v565, 8
        %vm2480 = vcmp.lt.s32.totalorder %v566, 8
        %vm2481 = vcmp.lt.s32.totalorder %v569, 8
        %vm2482 = vmand %vm2479, %vm2481
        %vm2483 = vmand %vm2480, %vm2481
        %v2485 = vrot.slane %v2400, 6
        %s2486 = vtos %v2485
        %v2487 = vstv %s2486
        %v2489 = vsel %vm2482, %v2477, %v2487
        %v2490 = vsel %vm2483, %v2478, %v2487
        %v2491 = vsel %vm2479, -2.7725887, -0.6931472
        %v2492 = vsel %vm2480, -2.7725887, -0.6931472
        %v2493 = vsel %vm2481, -2.7725887, -0.6931472
        loop: start=0, step=1, limit=20
        $region49: #{track_fuse_forward.2} parent=47 // loop_pre_header
          _
        $region50: #{track_fuse_forward.2} parent=47 // loop_header
          %s2495 = sphi 0, %s2499
          %p2496 = scmp.ge.s32.totalorder %s2495, 20
          %v2500 = vphi 0.0, %v2763
          %v2501 = vphi 0.0, %v2764
          %v2502 = vphi 0.0, %v2794
        $region51: #{track_fuse_forward.2} parent=47 // loop_header_branch
          %2498 = sbr.rel (%p2496) target = $region55
        $region52: #{track_fuse_forward.2} parent=47 // loop_body
          %v2503 = vadd.f32 %v2489, %v2502
          %v2504 = vadd.f32 %v2490, %v2502
          %vm2505 = vcmask 72704
          %v2506 = vsel %vm2505, %v2503, -inf
          %2507 = vmax.xlane.f32.xlu0 %v2506
          %v2508 = vpop.xlane.xlu0 %2507
          %vm2509 = vcmask 65536
          %v2510 = vsel %vm2509, %v2504, -inf
          %2511 = vmax.xlane.f32.xlu0 %v2510
          %v2512 = vpop.xlane.xlu0 %2511
          %v2513 = vsub.f32 %v2503, %v2508
          %v2514 = vsub.f32 %v2504, %v2512
          %v2515 = vmul.f32 %v2513, 1.442695
          %v2516 = vpow.pop %v2515
          %v2517 = vmul.f32 %v2514, 1.442695
          %v2518 = vpow.pop %v2517
          %v2519 = vsel %vm2505, %v2516, 0.0
          %2520 = vadd.xlane.f32.xlu0 %v2519
          %v2521 = vpop.xlane.xlu0 %2520
          %v2522 = vsel %vm2509, %v2518, 0.0
          %2523 = vadd.xlane.f32.xlu0 %v2522
          %v2524 = vpop.xlane.xlu0 %2523
          %v2525 = vlog2.pop %v2521
          %v2526 = vmul.f32 %v2525, 0.6931472
          %v2527 = vlog2.pop %v2524
          %v2528 = vmul.f32 %v2527, 0.6931472
          %v2529 = vadd.f32 %v2508, %v2526
          %v2530 = vadd.f32 %v2512, %v2528
          %v2531 = vsub.f32 %v2491, %v2529
          %v2532 = vsub.f32 %v2492, %v2530
          %v2533 = vadd.f32 %v2489, %v2531
          %v2534 = vadd.f32 %v2490, %v2532
          %v2535 = vsel %vm2505, %v2533, -inf
          %v2536 = vsel %vm2509, %v2534, -inf
          %v2537 = vmax.f32 %v2535, %v2536
          %v2538 = vrot.slane %v2537, 4
          %v2539 = vmax.f32 %v2537, %v2538
          %v2540 = vrot.slane %v2539, 2
          %v2541 = vmax.f32 %v2539, %v2540
          %v2542 = vrot.slane %v2541, 1
          %v2543 = vmax.f32 %v2541, %v2542
          %v2544 = vsub.f32 %v2533, %v2543
          %v2545 = vsub.f32 %v2534, %v2543
          %v2546 = vmul.f32 %v2544, 1.442695
          %v2547 = vpow.pop %v2546
          %v2548 = vmul.f32 %v2545, 1.442695
          %v2549 = vpow.pop %v2548
          %v2550 = vsel %vm2505, %v2547, 0.0
          %v2551 = vsel %vm2509, %v2549, 0.0
          %v2552 = vadd.f32 %v2550, %v2551
          %v2553 = vrot.slane %v2552, 4
          %v2554 = vadd.f32 %v2552, %v2553
          %v2555 = vrot.slane %v2554, 2
          %v2556 = vadd.f32 %v2554, %v2555
          %v2557 = vrot.slane %v2556, 1
          %v2558 = vadd.f32 %v2556, %v2557
          %v2559 = vlog2.pop %v2558
          %v2560 = vmul.f32 %v2559, 0.6931472
          %v2561 = vadd.f32 %v2543, %v2560
          %v2562 = vsub.f32 %v2493, %v2561
          %v2563 = vadd.f32 %v2489, %v2562
          %v2564 = vadd.f32 %v2490, %v2562
          %v2565 = vsel %vm2505, %v2563, -inf
          %2566 = vmax.xlane.f32.xlu0 %v2565
          %v2567 = vpop.xlane.xlu0 %2566
          %v2568 = vsel %vm2509, %v2564, -inf
          %2569 = vmax.xlane.f32.xlu0 %v2568
          %v2570 = vpop.xlane.xlu0 %2569
          %v2571 = vsub.f32 %v2563, %v2567
          %v2572 = vsub.f32 %v2564, %v2570
          %v2573 = vmul.f32 %v2571, 1.442695
          %v2574 = vpow.pop %v2573
          %v2575 = vmul.f32 %v2572, 1.442695
          %v2576 = vpow.pop %v2575
          %v2577 = vsel %vm2505, %v2574, 0.0
          %2578 = vadd.xlane.f32.xlu0 %v2577
          %v2579 = vpop.xlane.xlu0 %2578
          %v2580 = vsel %vm2509, %v2576, 0.0
          %2581 = vadd.xlane.f32.xlu0 %v2580
          %v2582 = vpop.xlane.xlu0 %2581
          %v2583 = vlog2.pop %v2579
          %v2584 = vmul.f32 %v2583, 0.6931472
          %v2585 = vlog2.pop %v2582
          %v2586 = vmul.f32 %v2585, 0.6931472
          %v2587 = vadd.f32 %v2567, %v2584
          %v2588 = vadd.f32 %v2570, %v2586
          %v2589 = vsub.f32 %v2491, %v2587
          %v2590 = vsub.f32 %v2492, %v2588
          %v2591 = vadd.f32 %v2489, %v2589
          %v2592 = vadd.f32 %v2490, %v2590
          %v2593 = vsel %vm2505, %v2591, -inf
          %v2594 = vsel %vm2509, %v2592, -inf
          %v2595 = vmax.f32 %v2593, %v2594
          %v2596 = vrot.slane %v2595, 4
          %v2597 = vmax.f32 %v2595, %v2596
          %v2598 = vrot.slane %v2597, 2
          %v2599 = vmax.f32 %v2597, %v2598
          %v2600 = vrot.slane %v2599, 1
          %v2601 = vmax.f32 %v2599, %v2600
          %v2602 = vsub.f32 %v2591, %v2601
          %v2603 = vsub.f32 %v2592, %v2601
          %v2604 = vmul.f32 %v2602, 1.442695
          %v2605 = vpow.pop %v2604
          %v2606 = vmul.f32 %v2603, 1.442695
          %v2607 = vpow.pop %v2606
          %v2608 = vsel %vm2505, %v2605, 0.0
          %v2609 = vsel %vm2509, %v2607, 0.0
          %v2610 = vadd.f32 %v2608, %v2609
          %v2611 = vrot.slane %v2610, 4
          %v2612 = vadd.f32 %v2610, %v2611
          %v2613 = vrot.slane %v2612, 2
          %v2614 = vadd.f32 %v2612, %v2613
          %v2615 = vrot.slane %v2614, 1
          %v2616 = vadd.f32 %v2614, %v2615
          %v2617 = vlog2.pop %v2616
          %v2618 = vmul.f32 %v2617, 0.6931472
          %v2619 = vadd.f32 %v2601, %v2618
          %v2620 = vsub.f32 %v2493, %v2619
          %v2621 = vadd.f32 %v2489, %v2620
          %v2622 = vadd.f32 %v2490, %v2620
          %v2623 = vsel %vm2505, %v2621, -inf
          %2624 = vmax.xlane.f32.xlu0 %v2623
          %v2625 = vpop.xlane.xlu0 %2624
          %v2626 = vsel %vm2509, %v2622, -inf
          %2627 = vmax.xlane.f32.xlu0 %v2626
          %v2628 = vpop.xlane.xlu0 %2627
          %v2629 = vsub.f32 %v2621, %v2625
          %v2630 = vsub.f32 %v2622, %v2628
          %v2631 = vmul.f32 %v2629, 1.442695
          %v2632 = vpow.pop %v2631
          %v2633 = vmul.f32 %v2630, 1.442695
          %v2634 = vpow.pop %v2633
          %v2635 = vsel %vm2505, %v2632, 0.0
          %2636 = vadd.xlane.f32.xlu0 %v2635
          %v2637 = vpop.xlane.xlu0 %2636
          %v2638 = vsel %vm2509, %v2634, 0.0
          %2639 = vadd.xlane.f32.xlu0 %v2638
          %v2640 = vpop.xlane.xlu0 %2639
          %v2641 = vlog2.pop %v2637
          %v2642 = vmul.f32 %v2641, 0.6931472
          %v2643 = vlog2.pop %v2640
          %v2644 = vmul.f32 %v2643, 0.6931472
          %v2645 = vadd.f32 %v2625, %v2642
          %v2646 = vadd.f32 %v2628, %v2644
          %v2647 = vsub.f32 %v2491, %v2645
          %v2648 = vsub.f32 %v2492, %v2646
          %v2649 = vadd.f32 %v2489, %v2647
          %v2650 = vadd.f32 %v2490, %v2648
          %v2651 = vsel %vm2505, %v2649, -inf
          %v2652 = vsel %vm2509, %v2650, -inf
          %v2653 = vmax.f32 %v2651, %v2652
          %v2654 = vrot.slane %v2653, 4
          %v2655 = vmax.f32 %v2653, %v2654
          %v2656 = vrot.slane %v2655, 2
          %v2657 = vmax.f32 %v2655, %v2656
          %v2658 = vrot.slane %v2657, 1
          %v2659 = vmax.f32 %v2657, %v2658
          %v2660 = vsub.f32 %v2649, %v2659
          %v2661 = vsub.f32 %v2650, %v2659
          %v2662 = vmul.f32 %v2660, 1.442695
          %v2663 = vpow.pop %v2662
          %v2664 = vmul.f32 %v2661, 1.442695
          %v2665 = vpow.pop %v2664
          %v2666 = vsel %vm2505, %v2663, 0.0
          %v2667 = vsel %vm2509, %v2665, 0.0
          %v2668 = vadd.f32 %v2666, %v2667
          %v2669 = vrot.slane %v2668, 4
          %v2670 = vadd.f32 %v2668, %v2669
          %v2671 = vrot.slane %v2670, 2
          %v2672 = vadd.f32 %v2670, %v2671
          %v2673 = vrot.slane %v2672, 1
          %v2674 = vadd.f32 %v2672, %v2673
          %v2675 = vlog2.pop %v2674
          %v2676 = vmul.f32 %v2675, 0.6931472
          %v2677 = vadd.f32 %v2659, %v2676
          %v2678 = vsub.f32 %v2493, %v2677
          %v2679 = vadd.f32 %v2489, %v2678
          %v2680 = vadd.f32 %v2490, %v2678
          %v2681 = vsel %vm2505, %v2679, -inf
          %2682 = vmax.xlane.f32.xlu0 %v2681
          %v2683 = vpop.xlane.xlu0 %2682
          %v2684 = vsel %vm2509, %v2680, -inf
          %2685 = vmax.xlane.f32.xlu0 %v2684
          %v2686 = vpop.xlane.xlu0 %2685
          %v2687 = vsub.f32 %v2679, %v2683
          %v2688 = vsub.f32 %v2680, %v2686
          %v2689 = vmul.f32 %v2687, 1.442695
          %v2690 = vpow.pop %v2689
          %v2691 = vmul.f32 %v2688, 1.442695
          %v2692 = vpow.pop %v2691
          %v2693 = vsel %vm2505, %v2690, 0.0
          %2694 = vadd.xlane.f32.xlu0 %v2693
          %v2695 = vpop.xlane.xlu0 %2694
          %v2696 = vsel %vm2509, %v2692, 0.0
          %2697 = vadd.xlane.f32.xlu0 %v2696
          %v2698 = vpop.xlane.xlu0 %2697
          %v2699 = vlog2.pop %v2695
          %v2700 = vmul.f32 %v2699, 0.6931472
          %v2701 = vlog2.pop %v2698
          %v2702 = vmul.f32 %v2701, 0.6931472
          %v2703 = vadd.f32 %v2683, %v2700
          %v2704 = vadd.f32 %v2686, %v2702
          %v2705 = vsub.f32 %v2491, %v2703
          %v2706 = vsub.f32 %v2492, %v2704
          %v2707 = vadd.f32 %v2489, %v2705
          %v2708 = vadd.f32 %v2490, %v2706
          %v2709 = vsel %vm2505, %v2707, -inf
          %v2710 = vsel %vm2509, %v2708, -inf
          %v2711 = vmax.f32 %v2709, %v2710
          %v2712 = vrot.slane %v2711, 4
          %v2713 = vmax.f32 %v2711, %v2712
          %v2714 = vrot.slane %v2713, 2
          %v2715 = vmax.f32 %v2713, %v2714
          %v2716 = vrot.slane %v2715, 1
          %v2717 = vmax.f32 %v2715, %v2716
          %v2718 = vsub.f32 %v2707, %v2717
          %v2719 = vsub.f32 %v2708, %v2717
          %v2720 = vmul.f32 %v2718, 1.442695
          %v2721 = vpow.pop %v2720
          %v2722 = vmul.f32 %v2719, 1.442695
          %v2723 = vpow.pop %v2722
          %v2724 = vsel %vm2505, %v2721, 0.0
          %v2725 = vsel %vm2509, %v2723, 0.0
          %v2726 = vadd.f32 %v2724, %v2725
          %v2727 = vrot.slane %v2726, 4
          %v2728 = vadd.f32 %v2726, %v2727
          %v2729 = vrot.slane %v2728, 2
          %v2730 = vadd.f32 %v2728, %v2729
          %v2731 = vrot.slane %v2730, 1
          %v2732 = vadd.f32 %v2730, %v2731
          %v2733 = vlog2.pop %v2732
          %v2734 = vmul.f32 %v2733, 0.6931472
          %v2735 = vadd.f32 %v2717, %v2734
          %v2736 = vsub.f32 %v2493, %v2735
          %v2737 = vadd.f32 %v2489, %v2736
          %v2738 = vadd.f32 %v2490, %v2736
          %v2739 = vsel %vm2505, %v2737, -inf
          %2740 = vmax.xlane.f32.xlu0 %v2739
          %v2741 = vpop.xlane.xlu0 %2740
          %v2742 = vsel %vm2509, %v2738, -inf
          %2743 = vmax.xlane.f32.xlu0 %v2742
          %v2744 = vpop.xlane.xlu0 %2743
          %v2745 = vsub.f32 %v2737, %v2741
          %v2746 = vsub.f32 %v2738, %v2744
          %v2747 = vmul.f32 %v2745, 1.442695
          %v2748 = vpow.pop %v2747
          %v2749 = vmul.f32 %v2746, 1.442695
          %v2750 = vpow.pop %v2749
          %v2751 = vsel %vm2505, %v2748, 0.0
          %2752 = vadd.xlane.f32.xlu0 %v2751
          %v2753 = vpop.xlane.xlu0 %2752
          %v2754 = vsel %vm2509, %v2750, 0.0
          %2755 = vadd.xlane.f32.xlu0 %v2754
          %v2756 = vpop.xlane.xlu0 %2755
          %v2757 = vlog2.pop %v2753
          %v2758 = vmul.f32 %v2757, 0.6931472
          %v2759 = vlog2.pop %v2756
          %v2760 = vmul.f32 %v2759, 0.6931472
          %v2761 = vadd.f32 %v2741, %v2758
          %v2762 = vadd.f32 %v2744, %v2760
          %v2763 = vsub.f32 %v2491, %v2761
          %v2764 = vsub.f32 %v2492, %v2762
          %v2765 = vadd.f32 %v2489, %v2763
          %v2766 = vadd.f32 %v2490, %v2764
          %v2767 = vsel %vm2505, %v2765, -inf
          %v2768 = vsel %vm2509, %v2766, -inf
          %v2769 = vmax.f32 %v2767, %v2768
          %v2770 = vrot.slane %v2769, 4
          %v2771 = vmax.f32 %v2769, %v2770
          %v2772 = vrot.slane %v2771, 2
          %v2773 = vmax.f32 %v2771, %v2772
          %v2774 = vrot.slane %v2773, 1
          %v2775 = vmax.f32 %v2773, %v2774
          %v2776 = vsub.f32 %v2765, %v2775
          %v2777 = vsub.f32 %v2766, %v2775
          %v2778 = vmul.f32 %v2776, 1.442695
          %v2779 = vpow.pop %v2778
          %v2780 = vmul.f32 %v2777, 1.442695
          %v2781 = vpow.pop %v2780
          %v2782 = vsel %vm2505, %v2779, 0.0
          %v2783 = vsel %vm2509, %v2781, 0.0
          %v2784 = vadd.f32 %v2782, %v2783
          %v2785 = vrot.slane %v2784, 4
          %v2786 = vadd.f32 %v2784, %v2785
          %v2787 = vrot.slane %v2786, 2
          %v2788 = vadd.f32 %v2786, %v2787
          %v2789 = vrot.slane %v2788, 1
          %v2790 = vadd.f32 %v2788, %v2789
          %v2791 = vlog2.pop %v2790
          %v2792 = vmul.f32 %v2791, 0.6931472
          %v2793 = vadd.f32 %v2775, %v2792
          %v2794 = vsub.f32 %v2493, %v2793
        $region53: #{track_fuse_forward.2} parent=47 // loop_footer
          %s2499 = sadd.s32 1, %s2495
        $region54: #{track_fuse_forward.2} parent=47 // loop_footer_branch
          %2494 = sbr.rel target = $region50
        $region55: #{track_fuse_forward.2} parent=47 // loop_exit
          _
        %v2795 = vadd.f32 %v2489, %v2500
        %v2796 = vadd.f32 %v2490, %v2501
        %v2797 = vadd.f32 %v2795, %v2502
        %v2798 = vadd.f32 %v2796, %v2502
        %v2799 = vsub.f32 %v2797, -2.7725887
        %v2800 = vsub.f32 %v2798, -2.7725887
        %vm2801 = vcmask 72704
        %2802 = vst.msk [vmem:[%s6] sm:$0xff] %vm2801, %v2799
        %vm2803 = vcmask 65536
        %2804 = vst.msk [vmem:[%s6 + $0x8] sm:$0x1] %vm2803, %v2800
      $region48: #{track_fuse_forward.2} parent=39 // pred_fallthru
        _
      // Predicated region
      $region56: #{track_fuse_forward.2} parent=39 // pred_check
        %p2805 = pneg %p146
      $region57: #{track_fuse_forward.2} parent=39 // pred_check_branch
        %2807 = sbr.rel (%p2805) target = $region59
      $region58: #{track_fuse_forward.2} parent=39 // pred_region
        _
      $region59: #{track_fuse_forward.2} parent=39 // pred_fallthru
        _
      // Predicated region
      $region60: #{track_fuse_forward.2} parent=39 // pred_check
        %p2808 = pneg %p167
      $region61: #{track_fuse_forward.2} parent=39 // pred_check_branch
        %2810 = sbr.rel (%p2808) target = $region63
      $region62: #{track_fuse_forward.2} parent=39 // pred_region
        _
      $region63: #{track_fuse_forward.2} parent=39 // pred_fallthru
        _
      // Predicated region
      $region64: #{track_fuse_forward.2} parent=39 // pred_check
        %p2811 = pneg %p146
      $region65: #{track_fuse_forward.2} parent=39 // pred_check_branch
        %2813 = sbr.rel (%p2811) target = $region67
      $region66: #{track_fuse_forward.2} parent=39 // pred_region
        _
      $region67: #{track_fuse_forward.2} parent=39 // pred_fallthru
        _
      // Predicated region
      $region68: #{track_fuse_forward.2} parent=39 // pred_check
        %p2814 = pneg %p167
      $region69: #{track_fuse_forward.2} parent=39 // pred_check_branch
        %2816 = sbr.rel (%p2814) target = $region71
      $region70: #{track_fuse_forward.2} parent=39 // pred_region
        _
      $region71: #{track_fuse_forward.2} parent=39 // pred_fallthru
        _
    $region40: #{track_fuse_forward.2} parent=5 // pred_fallthru
      _
    %p2817 = scmp.le.s32.totalorder 2, %s13
    // Predicated region
    $region72: #{track_fuse_forward.2} parent=5 // pred_check
      %p2818 = pneg %p2817
    $region73: #{track_fuse_forward.2} parent=5 // pred_check_branch
      %2820 = sbr.rel (%p2818) target = $region75
    $region74: #{track_fuse_forward.2} parent=5 // pred_region
      %s2821 = ssub.s32 %s13, 2
    $region75: #{track_fuse_forward.2} parent=5 // pred_fallthru
      _
  $region6: #{track_fuse_forward.2} parent=0 // loop_footer
    %s17 = sadd.s32 1, %s13
  $region7: #{track_fuse_forward.2} parent=0 // loop_footer_branch
    %12 = sbr.rel target = $region3
  $region8: #{track_fuse_forward.2} parent=0 // loop_exit
    _

</llo_original>
